<compile_context>
chip_gen: v7x
topology: tpu7x:2x2x1
jax: 0.10.0
libtpu: 0.0.40
codegen_flags: <defaults>
</compile_context>

<pallas_src>
import functools

import jax
import jax.numpy as jnp
from jax.experimental import pallas as pl
from jax.experimental.pallas import tpu as pltpu


def pose_rnn_kernel(x_ref, h0_ref, c0_ref,
                    wih0_ref, whh0_ref, b0_ref,
                    wih1_ref, whh1_ref, b1_ref,
                    rw1_ref, rb1_ref, rw2_ref, rb2_ref,
                    pose_ref, hN_ref, cN_ref,
                    *, B, T, F, H):
    # NOTE: B here is the per-grid-block batch size.
    # -------- head: hoisted, TIME-major layer-0 input->hidden matmul --------
    x_tm = jnp.transpose(x_ref[...], (1, 0, 2)).reshape(T * B, F)   # one XLU transpose
    gx = (jnp.dot(x_tm, wih0_ref[...], preferred_element_type=jnp.float32)
          + b0_ref[...])
    gx = gx.reshape(T, B, 4 * H)                                    # time-major slices

    # Hoist weight / bias loads (and bias broadcast) out of the unrolled loop.
    whh0 = whh0_ref[...]
    wih1 = wih1_ref[...]
    whh1 = whh1_ref[...]
    b1 = jnp.broadcast_to(b1_ref[...], (B, 4 * H))

    hc_in = h0_ref[...]          # (B, 2, H) batch-first
    cc_in = c0_ref[...]
    h0 = hc_in[:, 0, :]
    h1 = hc_in[:, 1, :]
    c0 = cc_in[:, 0, :]
    c1 = cc_in[:, 1, :]

    def gates_to_hc(gates, c):
        # Gate columns were permuted in the wrapper to (i, f, o, g):
        # one sigmoid over a contiguous 3H-lane slice, one tanh over H lanes.
        sig = jax.nn.sigmoid(gates[:, :3 * H])
        g = jnp.tanh(gates[:, 3 * H:])
        i = sig[:, :H]
        f = sig[:, H:2 * H]
        o = sig[:, 2 * H:3 * H]
        c_new = f * c + i * g
        h_new = o * jnp.tanh(c_new)
        return h_new, c_new

    # -------- recurrence: fully unrolled over T (T is small & static) --------
    # TODO(synk): for large T (>~32) switch to lax.fori_loop(..., unroll=8)
    # storing h1_t into a pltpu.VMEM((T*B, H)) scratch to bound live ranges.
    h1_list = []
    for t in range(T):
        # Layer-1's recurrent half depends only on h1_{t-1}: issue it first so
        # the scheduler can overlap it with layer-0's matmul + sigmoid/tanh.
        r1 = jnp.dot(h1, whh1, preferred_element_type=jnp.float32)
        g0 = gx[t] + jnp.dot(h0, whh0, preferred_element_type=jnp.float32)
        h0, c0 = gates_to_hc(g0, c0)
        g1 = jnp.dot(h0, wih1, preferred_element_type=jnp.float32) + r1 + b1
        h1, c1 = gates_to_hc(g1, c1)
        h1_list.append(h1)

    # Final hidden / cell states (batch-first, matching the module's hc layout).
    hN_ref[...] = jnp.stack([h0, h1], axis=1)
    cN_ref[...] = jnp.stack([c0, c1], axis=1)

    # -------- tail: regressor over the whole sequence --------
    h1_seq = jnp.stack(h1_list, axis=0).reshape(T * B, H)            # time-major
    z = (jnp.dot(h1_seq, rw1_ref[...], preferred_element_type=jnp.float32)
         + rb1_ref[...])
    z = jnp.where(z > 0, z, 0.1 * z)                                  # LeakyReLU(0.1)
    # rw2/rb2 are zero-padded to 128 output lanes -> lane-dense unmasked store.
    pose = (jnp.dot(z, rw2_ref[...], preferred_element_type=jnp.float32)
            + rb2_ref[...])
    pose_ref[...] = jnp.transpose(pose.reshape(T, B, 128), (1, 0, 2))  # batch-first


def _permute_gates_ifog(w):
    """Reorder LSTM gate columns from PyTorch (i,f,g,o) to (i,f,o,g)."""
    h4 = w.shape[-1]
    h = h4 // 4
    return jnp.concatenate(
        [w[..., :2 * h], w[..., 3 * h:4 * h], w[..., 2 * h:3 * h]], axis=-1)


def _tensorcores_per_device():
    """Best-effort TensorCore count per JAX device (2 on v4/v5p megacore, v7x)."""
    try:
        dev = jax.devices()[0]
        for attr in ("num_cores", "core_count"):
            v = getattr(dev, attr, None)
            if isinstance(v, int) and v > 1:
                return v
        kind = str(getattr(dev, "device_kind", "")).lower()
        if any(tag in kind for tag in ("v4", "v5p", "v7")):
            return 2
    except Exception:
        pass
    return 1


def pose_rnn_forward(fused, params, prev=None, num_batch_blocks=None):
    """fused: (B, T, F) float32.  prev: optional ((B, 2, H), (B, 2, H))."""
    B, T, F = fused.shape
    H = params["whh0"].shape[0]

    if prev is None:
        h_init = jnp.zeros((B, 2, H), jnp.float32)
        c_init = jnp.zeros((B, 2, H), jnp.float32)
    else:
        h_init = prev[0].astype(jnp.float32)       # (B, 2, H), batch-first
        c_init = prev[1].astype(jnp.float32)

    # Batch-parallel grid only when >1 TensorCore sits behind one device and
    # the batch splits evenly; on single-TC chips keep one grid point so the
    # serial recurrence chain is not lengthened.
    if num_batch_blocks is None:
        tc = _tensorcores_per_device()
        num_batch_blocks = tc if (tc > 1 and B % tc == 0) else 1
    bb = B // num_batch_blocks

    # One-time weight preparation (plain XLA, outside the kernel):
    #  - permute gate columns to (i, f, o, g) for contiguous sigmoid/tanh,
    #  - pad the final regressor weight/bias to 128 output lanes.
    wih0 = _permute_gates_ifog(params["wih0"])
    whh0 = _permute_gates_ifog(params["whh0"])
    b0 = _permute_gates_ifog(params["b0"])
    wih1 = _permute_gates_ifog(params["wih1"])
    whh1 = _permute_gates_ifog(params["whh1"])
    b1 = _permute_gates_ifog(params["b1"])
    rw2_pad = jnp.zeros((128, 128), jnp.float32).at[:, :6].set(params["w2"])
    rb2_pad = jnp.zeros((1, 128), jnp.float32).at[:, :6].set(params["bw2"])

    kernel = functools.partial(pose_rnn_kernel, B=bb, T=T, F=F, H=H)

    def batch_spec(shape):
        n = len(shape)
        return pl.BlockSpec((bb,) + tuple(shape[1:]),
                            lambda i, _n=n: (i,) + (0,) * (_n - 1))

    def full_spec(shape):
        n = len(shape)
        return pl.BlockSpec(tuple(shape), lambda i, _n=n: (0,) * _n)

    in_specs = [
        batch_spec((B, T, F)),        # x (batch-first)
        batch_spec((B, 2, H)),        # h_init
        batch_spec((B, 2, H)),        # c_init
        full_spec((F, 4 * H)),        # W_ih layer0
        full_spec((H, 4 * H)),        # W_hh layer0
        full_spec((1, 4 * H)),        # bias layer0 (b_ih + b_hh)
        full_spec((H, 4 * H)),        # W_ih layer1
        full_spec((H, 4 * H)),        # W_hh layer1
        full_spec((1, 4 * H)),        # bias layer1
        full_spec((H, 128)),          # regressor W1
        full_spec((1, 128)),          # regressor b1
        full_spec((128, 128)),        # regressor W2 (lane-padded)
        full_spec((1, 128)),          # regressor b2 (lane-padded)
    ]

    pose_pad, h_fin, c_fin = pl.pallas_call(
        kernel,
        out_shape=(
            jax.ShapeDtypeStruct((B, T, 128), jnp.float32),
            jax.ShapeDtypeStruct((B, 2, H), jnp.float32),
            jax.ShapeDtypeStruct((B, 2, H), jnp.float32),
        ),
        grid=(num_batch_blocks,),
        in_specs=in_specs,
        out_specs=(
            batch_spec((B, T, 128)),
            batch_spec((B, 2, H)),
            batch_spec((B, 2, H)),
        ),
        compiler_params=pltpu.CompilerParams(
            dimension_semantics=("parallel",)),
    )(fused.astype(jnp.float32), h_init, c_init,
      wih0, whh0, b0, wih1, whh1, b1,
      params["w1"], params["bw1"], rw2_pad, rb2_pad)

    pose = pose_pad[..., :6]                      # (B, T, 6)
    return pose, (h_fin, c_fin)                   # hc batch-first (B, 2, H)


def make_params(key, f_len, hidden):
    """Deterministic synthetic parameters (PyTorch-style uniform init)."""
    ks = jax.random.split(key, 12)
    k = 1.0 / jnp.sqrt(hidden)
    u = lambda kk, shape, scale: jax.random.uniform(
        kk, shape, jnp.float32, minval=-scale, maxval=scale)
    params = {
        # LSTM weights stored transposed: (in_features, 4H), PyTorch gate order
        # (i,f,g,o); biases (b_ih + b_hh) fused.
        "wih0": u(ks[0], (f_len, 4 * hidden), k),
        "whh0": u(ks[1], (hidden, 4 * hidden), k),
        "b0":   u(ks[2], (1, 4 * hidden), k) + u(ks[3], (1, 4 * hidden), k),
        "wih1": u(ks[4], (hidden, 4 * hidden), k),
        "whh1": u(ks[5], (hidden, 4 * hidden), k),
        "b1":   u(ks[6], (1, 4 * hidden), k) + u(ks[7], (1, 4 * hidden), k),
        # Regressor (stored transposed: (in, out)).
        "w1":  u(ks[8], (hidden, 128), 1.0 / jnp.sqrt(hidden)),
        "bw1": u(ks[9], (1, 128), 1.0 / jnp.sqrt(hidden)),
        "w2":  u(ks[10], (128, 6), 1.0 / jnp.sqrt(128.0)),
        "bw2": u(ks[11], (1, 6), 1.0 / jnp.sqrt(128.0)),
    }
    return params


def reference_forward(fused, params, h_init, c_init):
    """Pure-JAX reference (lax.scan) in the original (i,f,g,o) gate order."""
    H = params["whh0"].shape[0]

    def cell(x, h, c, wih, whh, b):
        gates = x @ wih + h @ whh + b
        i = jax.nn.sigmoid(gates[:, :H])
        f = jax.nn.sigmoid(gates[:, H:2 * H])
        g = jnp.tanh(gates[:, 2 * H:3 * H])
        o = jax.nn.sigmoid(gates[:, 3 * H:])
        c = f * c + i * g
        h = o * jnp.tanh(c)
        return h, c

    def step(carry, x):
        h0, c0, h1, c1 = carry
        h0, c0 = cell(x, h0, c0, params["wih0"], params["whh0"], params["b0"])
        h1, c1 = cell(h0, h1, c1, params["wih1"], params["whh1"], params["b1"])
        z = h1 @ params["w1"] + params["bw1"]
        z = jnp.where(z > 0, z, 0.1 * z)
        pose = z @ params["w2"] + params["bw2"]
        return (h0, c0, h1, c1), pose

    xs = jnp.transpose(fused, (1, 0, 2))
    (h0, c0, h1, c1), poses = jax.lax.scan(
        step, (h_init[:, 0], c_init[:, 0], h_init[:, 1], c_init[:, 1]), xs)
    pose = jnp.transpose(poses, (1, 0, 2))
    h_fin = jnp.stack([h0, h1], axis=1)   # (B, 2, H)
    c_fin = jnp.stack([c0, c1], axis=1)
    return pose, (h_fin, c_fin)


if __name__ == "__main__":
    # opt: v_f_len=32, i_f_len=16 -> f_len=48; rnn_hidden_size=32
    B, T, V_F, I_F, H = 2, 8, 32, 16, 32
    F = V_F + I_F

    key = jax.random.PRNGKey(0)
    k_in, k_par = jax.random.split(key)
    fused = jax.random.normal(k_in, (B, T, F), jnp.float32)
    params = make_params(k_par, F, H)

    pose, (h_fin, c_fin) = pose_rnn_forward(fused, params, prev=None)
    jax.block_until_ready((pose, h_fin, c_fin))

    # Sanity check against pure-JAX reference (unpermuted weights).
    h0 = jnp.zeros((B, 2, H), jnp.float32)
    c0 = jnp.zeros((B, 2, H), jnp.float32)
    pose_ref, (h_ref, c_ref) = reference_forward(fused, params, h0, c0)
    assert pose.shape == (B, T, 6)
    assert h_fin.shape == (B, 2, H) and c_fin.shape == (B, 2, H)
    assert jnp.allclose(pose, pose_ref, atol=1e-4, rtol=1e-4)
    assert jnp.allclose(h_fin, h_ref, atol=1e-4, rtol=1e-4)
    assert jnp.allclose(c_fin, c_ref, atol=1e-4, rtol=1e-4)

    # Exercise the prev-state path once as well (second chunk of a sequence).
    pose2, hc2 = pose_rnn_forward(fused, params, prev=(h_fin, c_fin))
    jax.block_until_ready((pose2, hc2))
    pose2_ref, hc2_ref = reference_forward(fused, params, h_ref, c_ref)
    assert jnp.allclose(pose2, pose2_ref, atol=1e-4, rtol=1e-4)
    assert jnp.allclose(hc2[0], hc2_ref[0], atol=1e-4, rtol=1e-4)
    assert jnp.allclose(hc2[1], hc2_ref[1], atol=1e-4, rtol=1e-4)

    print("KERNEL_OK")
</pallas_src>

<mosaic_0001>
module attributes {stable_mosaic.version = 11 : i64} {
  func.func @pose_rnn_kernel(%arg0: i32, %arg1: memref<2x8x48xf32, #tpu.memory_space<vmem>>, %arg2: memref<2x2x32xf32, #tpu.memory_space<vmem>>, %arg3: memref<2x2x32xf32, #tpu.memory_space<vmem>>, %arg4: memref<48x128xf32, #tpu.memory_space<vmem>>, %arg5: memref<32x128xf32, #tpu.memory_space<vmem>>, %arg6: memref<1x128xf32, #tpu.memory_space<vmem>>, %arg7: memref<32x128xf32, #tpu.memory_space<vmem>>, %arg8: memref<32x128xf32, #tpu.memory_space<vmem>>, %arg9: memref<1x128xf32, #tpu.memory_space<vmem>>, %arg10: memref<32x128xf32, #tpu.memory_space<vmem>>, %arg11: memref<1x128xf32, #tpu.memory_space<vmem>>, %arg12: memref<128x128xf32, #tpu.memory_space<vmem>>, %arg13: memref<1x128xf32, #tpu.memory_space<vmem>>, %arg14: memref<2x8x128xf32, #tpu.memory_space<vmem>>, %arg15: memref<2x2x32xf32, #tpu.memory_space<vmem>>, %arg16: memref<2x2x32xf32, #tpu.memory_space<vmem>>) attributes {dimension_semantics = [#tpu.dimension_semantics<parallel>], iteration_bounds = array<i64: 1>, scalar_prefetch = 0 : i64, scratch_operands = 0 : i64, tpu.core_type = #tpu.core_type<tc>, window_params = [{transform_indices = @transform_0, window_bounds = array<i64: 2, 8, 48>}, {transform_indices = @transform_1, window_bounds = array<i64: 2, 2, 32>}, {transform_indices = @transform_2, window_bounds = array<i64: 2, 2, 32>}, {pipeline_mode = #tpu.pipeline_mode<synchronous>, transform_indices = @transform_3, window_bounds = array<i64: 48, 128>}, {pipeline_mode = #tpu.pipeline_mode<synchronous>, transform_indices = @transform_4, window_bounds = array<i64: 32, 128>}, {pipeline_mode = #tpu.pipeline_mode<synchronous>, transform_indices = @transform_5, window_bounds = array<i64: 1, 128>}, {pipeline_mode = #tpu.pipeline_mode<synchronous>, transform_indices = @transform_6, window_bounds = array<i64: 32, 128>}, {pipeline_mode = #tpu.pipeline_mode<synchronous>, transform_indices = @transform_7, window_bounds = array<i64: 32, 128>}, {pipeline_mode = #tpu.pipeline_mode<synchronous>, transform_indices = @transform_8, window_bounds = array<i64: 1, 128>}, {pipeline_mode = #tpu.pipeline_mode<synchronous>, transform_indices = @transform_9, window_bounds = array<i64: 32, 128>}, {pipeline_mode = #tpu.pipeline_mode<synchronous>, transform_indices = @transform_10, window_bounds = array<i64: 1, 128>}, {pipeline_mode = #tpu.pipeline_mode<synchronous>, transform_indices = @transform_11, window_bounds = array<i64: 128, 128>}, {pipeline_mode = #tpu.pipeline_mode<synchronous>, transform_indices = @transform_12, window_bounds = array<i64: 1, 128>}, {transform_indices = @transform_13, window_bounds = array<i64: 2, 8, 128>}, {transform_indices = @transform_14, window_bounds = array<i64: 2, 2, 32>}, {transform_indices = @transform_15, window_bounds = array<i64: 2, 2, 32>}]} {
    %c0 = arith.constant 0 : index
    %c0_0 = arith.constant 0 : index
    %c0_1 = arith.constant 0 : index
    %0 = vector.load %arg1[%c0, %c0_0, %c0_1] : memref<2x8x48xf32, #tpu.memory_space<vmem>>, vector<2x8x48xf32>
    %1 = tpu.transpose %0, [1, 0, 2] : vector<2x8x48xf32> -> vector<8x2x48xf32>
    %2 = vector.shape_cast %1 : vector<8x2x48xf32> to vector<16x48xf32>
    %c0_2 = arith.constant 0 : index
    %c0_3 = arith.constant 0 : index
    %3 = vector.load %arg4[%c0_2, %c0_3] : memref<48x128xf32, #tpu.memory_space<vmem>>, vector<48x128xf32>
    %cst = arith.constant dense<0.000000e+00> : vector<16x128xf32>
    %4 = tpu.matmul %2, %3, %cst {dimension_numbers = #tpu.dot_dimension_numbers<[1], [0], [0], [1], [0, 0, 1, 1], [], []>} : vector<16x48xf32>, vector<48x128xf32>, vector<16x128xf32> -> vector<16x128xf32>
    %c0_4 = arith.constant 0 : index
    %c0_5 = arith.constant 0 : index
    %5 = vector.load %arg6[%c0_4, %c0_5] : memref<1x128xf32, #tpu.memory_space<vmem>>, vector<1x128xf32>
    %6 = vector.broadcast %5 : vector<1x128xf32> to vector<16x128xf32>
    %7 = arith.addf %4, %6 : vector<16x128xf32>
    %8 = vector.shape_cast %7 : vector<16x128xf32> to vector<8x2x128xf32>
    %c0_6 = arith.constant 0 : index
    %c0_7 = arith.constant 0 : index
    %9 = vector.load %arg5[%c0_6, %c0_7] : memref<32x128xf32, #tpu.memory_space<vmem>>, vector<32x128xf32>
    %c0_8 = arith.constant 0 : index
    %c0_9 = arith.constant 0 : index
    %10 = vector.load %arg7[%c0_8, %c0_9] : memref<32x128xf32, #tpu.memory_space<vmem>>, vector<32x128xf32>
    %c0_10 = arith.constant 0 : index
    %c0_11 = arith.constant 0 : index
    %11 = vector.load %arg8[%c0_10, %c0_11] : memref<32x128xf32, #tpu.memory_space<vmem>>, vector<32x128xf32>
    %c0_12 = arith.constant 0 : index
    %c0_13 = arith.constant 0 : index
    %12 = vector.load %arg9[%c0_12, %c0_13] : memref<1x128xf32, #tpu.memory_space<vmem>>, vector<1x128xf32>
    %13 = vector.shape_cast %12 : vector<1x128xf32> to vector<1x128xf32>
    %14 = vector.broadcast %13 : vector<1x128xf32> to vector<2x128xf32>
    %c0_14 = arith.constant 0 : index
    %c0_15 = arith.constant 0 : index
    %c0_16 = arith.constant 0 : index
    %15 = vector.load %arg2[%c0_14, %c0_15, %c0_16] : memref<2x2x32xf32, #tpu.memory_space<vmem>>, vector<2x2x32xf32>
    %c0_17 = arith.constant 0 : index
    %c0_18 = arith.constant 0 : index
    %c0_19 = arith.constant 0 : index
    %16 = vector.load %arg3[%c0_17, %c0_18, %c0_19] : memref<2x2x32xf32, #tpu.memory_space<vmem>>, vector<2x2x32xf32>
    %17 = vector.extract_strided_slice %15 {offsets = [0, 0, 0], sizes = [2, 1, 32], strides = [1, 1, 1]} : vector<2x2x32xf32> to vector<2x1x32xf32>
    %18 = vector.shape_cast %17 : vector<2x1x32xf32> to vector<2x32xf32>
    %19 = vector.extract_strided_slice %15 {offsets = [0, 1, 0], sizes = [2, 1, 32], strides = [1, 1, 1]} : vector<2x2x32xf32> to vector<2x1x32xf32>
    %20 = vector.shape_cast %19 : vector<2x1x32xf32> to vector<2x32xf32>
    %21 = vector.extract_strided_slice %16 {offsets = [0, 0, 0], sizes = [2, 1, 32], strides = [1, 1, 1]} : vector<2x2x32xf32> to vector<2x1x32xf32>
    %22 = vector.shape_cast %21 : vector<2x1x32xf32> to vector<2x32xf32>
    %23 = vector.extract_strided_slice %16 {offsets = [0, 1, 0], sizes = [2, 1, 32], strides = [1, 1, 1]} : vector<2x2x32xf32> to vector<2x1x32xf32>
    %24 = vector.shape_cast %23 : vector<2x1x32xf32> to vector<2x32xf32>
    %cst_20 = arith.constant dense<0.000000e+00> : vector<2x128xf32>
    %25 = tpu.matmul %20, %11, %cst_20 {dimension_numbers = #tpu.dot_dimension_numbers<[1], [0], [0], [1], [0, 0, 1, 1], [], []>} : vector<2x32xf32>, vector<32x128xf32>, vector<2x128xf32> -> vector<2x128xf32>
    %26 = vector.extract_strided_slice %8 {offsets = [0, 0, 0], sizes = [1, 2, 128], strides = [1, 1, 1]} : vector<8x2x128xf32> to vector<1x2x128xf32>
    %27 = vector.shape_cast %26 : vector<1x2x128xf32> to vector<2x128xf32>
    %cst_21 = arith.constant dense<0.000000e+00> : vector<2x128xf32>
    %28 = tpu.matmul %18, %9, %cst_21 {dimension_numbers = #tpu.dot_dimension_numbers<[1], [0], [0], [1], [0, 0, 1, 1], [], []>} : vector<2x32xf32>, vector<32x128xf32>, vector<2x128xf32> -> vector<2x128xf32>
    %29 = arith.addf %27, %28 : vector<2x128xf32>
    %30 = vector.extract_strided_slice %29 {offsets = [0, 0], sizes = [2, 96], strides = [1, 1]} : vector<2x128xf32> to vector<2x96xf32>
    %31 = arith.negf %30 : vector<2x96xf32>
    %32 = math.exp %31 : vector<2x96xf32>
    %cst_22 = arith.constant 1.000000e+00 : f32
    %33 = vector.broadcast %cst_22 : f32 to vector<2x96xf32>
    %34 = arith.addf %33, %32 : vector<2x96xf32>
    %35 = arith.divf %33, %34 : vector<2x96xf32>
    %36 = vector.extract_strided_slice %29 {offsets = [0, 96], sizes = [2, 32], strides = [1, 1]} : vector<2x128xf32> to vector<2x32xf32>
    %37 = math.tanh %36 : vector<2x32xf32>
    %38 = vector.extract_strided_slice %35 {offsets = [0, 0], sizes = [2, 32], strides = [1, 1]} : vector<2x96xf32> to vector<2x32xf32>
    %39 = vector.extract_strided_slice %35 {offsets = [0, 32], sizes = [2, 32], strides = [1, 1]} : vector<2x96xf32> to vector<2x32xf32>
    %40 = vector.extract_strided_slice %35 {offsets = [0, 64], sizes = [2, 32], strides = [1, 1]} : vector<2x96xf32> to vector<2x32xf32>
    %41 = arith.mulf %39, %22 : vector<2x32xf32>
    %42 = arith.mulf %38, %37 : vector<2x32xf32>
    %43 = arith.addf %41, %42 : vector<2x32xf32>
    %44 = math.tanh %43 : vector<2x32xf32>
    %45 = arith.mulf %40, %44 : vector<2x32xf32>
    %cst_23 = arith.constant dense<0.000000e+00> : vector<2x128xf32>
    %46 = tpu.matmul %45, %10, %cst_23 {dimension_numbers = #tpu.dot_dimension_numbers<[1], [0], [0], [1], [0, 0, 1, 1], [], []>} : vector<2x32xf32>, vector<32x128xf32>, vector<2x128xf32> -> vector<2x128xf32>
    %47 = arith.addf %46, %25 : vector<2x128xf32>
    %48 = arith.addf %47, %14 : vector<2x128xf32>
    %49 = vector.extract_strided_slice %48 {offsets = [0, 0], sizes = [2, 96], strides = [1, 1]} : vector<2x128xf32> to vector<2x96xf32>
    %50 = arith.negf %49 : vector<2x96xf32>
    %51 = math.exp %50 : vector<2x96xf32>
    %cst_24 = arith.constant 1.000000e+00 : f32
    %52 = vector.broadcast %cst_24 : f32 to vector<2x96xf32>
    %53 = arith.addf %52, %51 : vector<2x96xf32>
    %54 = arith.divf %52, %53 : vector<2x96xf32>
    %55 = vector.extract_strided_slice %48 {offsets = [0, 96], sizes = [2, 32], strides = [1, 1]} : vector<2x128xf32> to vector<2x32xf32>
    %56 = math.tanh %55 : vector<2x32xf32>
    %57 = vector.extract_strided_slice %54 {offsets = [0, 0], sizes = [2, 32], strides = [1, 1]} : vector<2x96xf32> to vector<2x32xf32>
    %58 = vector.extract_strided_slice %54 {offsets = [0, 32], sizes = [2, 32], strides = [1, 1]} : vector<2x96xf32> to vector<2x32xf32>
    %59 = vector.extract_strided_slice %54 {offsets = [0, 64], sizes = [2, 32], strides = [1, 1]} : vector<2x96xf32> to vector<2x32xf32>
    %60 = arith.mulf %58, %24 : vector<2x32xf32>
    %61 = arith.mulf %57, %56 : vector<2x32xf32>
    %62 = arith.addf %60, %61 : vector<2x32xf32>
    %63 = math.tanh %62 : vector<2x32xf32>
    %64 = arith.mulf %59, %63 : vector<2x32xf32>
    %cst_25 = arith.constant dense<0.000000e+00> : vector<2x128xf32>
    %65 = tpu.matmul %64, %11, %cst_25 {dimension_numbers = #tpu.dot_dimension_numbers<[1], [0], [0], [1], [0, 0, 1, 1], [], []>} : vector<2x32xf32>, vector<32x128xf32>, vector<2x128xf32> -> vector<2x128xf32>
    %66 = vector.extract_strided_slice %8 {offsets = [1, 0, 0], sizes = [1, 2, 128], strides = [1, 1, 1]} : vector<8x2x128xf32> to vector<1x2x128xf32>
    %67 = vector.shape_cast %66 : vector<1x2x128xf32> to vector<2x128xf32>
    %cst_26 = arith.constant dense<0.000000e+00> : vector<2x128xf32>
    %68 = tpu.matmul %45, %9, %cst_26 {dimension_numbers = #tpu.dot_dimension_numbers<[1], [0], [0], [1], [0, 0, 1, 1], [], []>} : vector<2x32xf32>, vector<32x128xf32>, vector<2x128xf32> -> vector<2x128xf32>
    %69 = arith.addf %67, %68 : vector<2x128xf32>
    %70 = vector.extract_strided_slice %69 {offsets = [0, 0], sizes = [2, 96], strides = [1, 1]} : vector<2x128xf32> to vector<2x96xf32>
    %71 = arith.negf %70 : vector<2x96xf32>
    %72 = math.exp %71 : vector<2x96xf32>
    %cst_27 = arith.constant 1.000000e+00 : f32
    %73 = vector.broadcast %cst_27 : f32 to vector<2x96xf32>
    %74 = arith.addf %73, %72 : vector<2x96xf32>
    %75 = arith.divf %73, %74 : vector<2x96xf32>
    %76 = vector.extract_strided_slice %69 {offsets = [0, 96], sizes = [2, 32], strides = [1, 1]} : vector<2x128xf32> to vector<2x32xf32>
    %77 = math.tanh %76 : vector<2x32xf32>
    %78 = vector.extract_strided_slice %75 {offsets = [0, 0], sizes = [2, 32], strides = [1, 1]} : vector<2x96xf32> to vector<2x32xf32>
    %79 = vector.extract_strided_slice %75 {offsets = [0, 32], sizes = [2, 32], strides = [1, 1]} : vector<2x96xf32> to vector<2x32xf32>
    %80 = vector.extract_strided_slice %75 {offsets = [0, 64], sizes = [2, 32], strides = [1, 1]} : vector<2x96xf32> to vector<2x32xf32>
    %81 = arith.mulf %79, %43 : vector<2x32xf32>
    %82 = arith.mulf %78, %77 : vector<2x32xf32>
    %83 = arith.addf %81, %82 : vector<2x32xf32>
    %84 = math.tanh %83 : vector<2x32xf32>
    %85 = arith.mulf %80, %84 : vector<2x32xf32>
    %cst_28 = arith.constant dense<0.000000e+00> : vector<2x128xf32>
    %86 = tpu.matmul %85, %10, %cst_28 {dimension_numbers = #tpu.dot_dimension_numbers<[1], [0], [0], [1], [0, 0, 1, 1], [], []>} : vector<2x32xf32>, vector<32x128xf32>, vector<2x128xf32> -> vector<2x128xf32>
    %87 = arith.addf %86, %65 : vector<2x128xf32>
    %88 = arith.addf %87, %14 : vector<2x128xf32>
    %89 = vector.extract_strided_slice %88 {offsets = [0, 0], sizes = [2, 96], strides = [1, 1]} : vector<2x128xf32> to vector<2x96xf32>
    %90 = arith.negf %89 : vector<2x96xf32>
    %91 = math.exp %90 : vector<2x96xf32>
    %cst_29 = arith.constant 1.000000e+00 : f32
    %92 = vector.broadcast %cst_29 : f32 to vector<2x96xf32>
    %93 = arith.addf %92, %91 : vector<2x96xf32>
    %94 = arith.divf %92, %93 : vector<2x96xf32>
    %95 = vector.extract_strided_slice %88 {offsets = [0, 96], sizes = [2, 32], strides = [1, 1]} : vector<2x128xf32> to vector<2x32xf32>
    %96 = math.tanh %95 : vector<2x32xf32>
    %97 = vector.extract_strided_slice %94 {offsets = [0, 0], sizes = [2, 32], strides = [1, 1]} : vector<2x96xf32> to vector<2x32xf32>
    %98 = vector.extract_strided_slice %94 {offsets = [0, 32], sizes = [2, 32], strides = [1, 1]} : vector<2x96xf32> to vector<2x32xf32>
    %99 = vector.extract_strided_slice %94 {offsets = [0, 64], sizes = [2, 32], strides = [1, 1]} : vector<2x96xf32> to vector<2x32xf32>
    %100 = arith.mulf %98, %62 : vector<2x32xf32>
    %101 = arith.mulf %97, %96 : vector<2x32xf32>
    %102 = arith.addf %100, %101 : vector<2x32xf32>
    %103 = math.tanh %102 : vector<2x32xf32>
    %104 = arith.mulf %99, %103 : vector<2x32xf32>
    %cst_30 = arith.constant dense<0.000000e+00> : vector<2x128xf32>
    %105 = tpu.matmul %104, %11, %cst_30 {dimension_numbers = #tpu.dot_dimension_numbers<[1], [0], [0], [1], [0, 0, 1, 1], [], []>} : vector<2x32xf32>, vector<32x128xf32>, vector<2x128xf32> -> vector<2x128xf32>
    %106 = vector.extract_strided_slice %8 {offsets = [2, 0, 0], sizes = [1, 2, 128], strides = [1, 1, 1]} : vector<8x2x128xf32> to vector<1x2x128xf32>
    %107 = vector.shape_cast %106 : vector<1x2x128xf32> to vector<2x128xf32>
    %cst_31 = arith.constant dense<0.000000e+00> : vector<2x128xf32>
    %108 = tpu.matmul %85, %9, %cst_31 {dimension_numbers = #tpu.dot_dimension_numbers<[1], [0], [0], [1], [0, 0, 1, 1], [], []>} : vector<2x32xf32>, vector<32x128xf32>, vector<2x128xf32> -> vector<2x128xf32>
    %109 = arith.addf %107, %108 : vector<2x128xf32>
    %110 = vector.extract_strided_slice %109 {offsets = [0, 0], sizes = [2, 96], strides = [1, 1]} : vector<2x128xf32> to vector<2x96xf32>
    %111 = arith.negf %110 : vector<2x96xf32>
    %112 = math.exp %111 : vector<2x96xf32>
    %cst_32 = arith.constant 1.000000e+00 : f32
    %113 = vector.broadcast %cst_32 : f32 to vector<2x96xf32>
    %114 = arith.addf %113, %112 : vector<2x96xf32>
    %115 = arith.divf %113, %114 : vector<2x96xf32>
    %116 = vector.extract_strided_slice %109 {offsets = [0, 96], sizes = [2, 32], strides = [1, 1]} : vector<2x128xf32> to vector<2x32xf32>
    %117 = math.tanh %116 : vector<2x32xf32>
    %118 = vector.extract_strided_slice %115 {offsets = [0, 0], sizes = [2, 32], strides = [1, 1]} : vector<2x96xf32> to vector<2x32xf32>
    %119 = vector.extract_strided_slice %115 {offsets = [0, 32], sizes = [2, 32], strides = [1, 1]} : vector<2x96xf32> to vector<2x32xf32>
    %120 = vector.extract_strided_slice %115 {offsets = [0, 64], sizes = [2, 32], strides = [1, 1]} : vector<2x96xf32> to vector<2x32xf32>
    %121 = arith.mulf %119, %83 : vector<2x32xf32>
    %122 = arith.mulf %118, %117 : vector<2x32xf32>
    %123 = arith.addf %121, %122 : vector<2x32xf32>
    %124 = math.tanh %123 : vector<2x32xf32>
    %125 = arith.mulf %120, %124 : vector<2x32xf32>
    %cst_33 = arith.constant dense<0.000000e+00> : vector<2x128xf32>
    %126 = tpu.matmul %125, %10, %cst_33 {dimension_numbers = #tpu.dot_dimension_numbers<[1], [0], [0], [1], [0, 0, 1, 1], [], []>} : vector<2x32xf32>, vector<32x128xf32>, vector<2x128xf32> -> vector<2x128xf32>
    %127 = arith.addf %126, %105 : vector<2x128xf32>
    %128 = arith.addf %127, %14 : vector<2x128xf32>
    %129 = vector.extract_strided_slice %128 {offsets = [0, 0], sizes = [2, 96], strides = [1, 1]} : vector<2x128xf32> to vector<2x96xf32>
    %130 = arith.negf %129 : vector<2x96xf32>
    %131 = math.exp %130 : vector<2x96xf32>
    %cst_34 = arith.constant 1.000000e+00 : f32
    %132 = vector.broadcast %cst_34 : f32 to vector<2x96xf32>
    %133 = arith.addf %132, %131 : vector<2x96xf32>
    %134 = arith.divf %132, %133 : vector<2x96xf32>
    %135 = vector.extract_strided_slice %128 {offsets = [0, 96], sizes = [2, 32], strides = [1, 1]} : vector<2x128xf32> to vector<2x32xf32>
    %136 = math.tanh %135 : vector<2x32xf32>
    %137 = vector.extract_strided_slice %134 {offsets = [0, 0], sizes = [2, 32], strides = [1, 1]} : vector<2x96xf32> to vector<2x32xf32>
    %138 = vector.extract_strided_slice %134 {offsets = [0, 32], sizes = [2, 32], strides = [1, 1]} : vector<2x96xf32> to vector<2x32xf32>
    %139 = vector.extract_strided_slice %134 {offsets = [0, 64], sizes = [2, 32], strides = [1, 1]} : vector<2x96xf32> to vector<2x32xf32>
    %140 = arith.mulf %138, %102 : vector<2x32xf32>
    %141 = arith.mulf %137, %136 : vector<2x32xf32>
    %142 = arith.addf %140, %141 : vector<2x32xf32>
    %143 = math.tanh %142 : vector<2x32xf32>
    %144 = arith.mulf %139, %143 : vector<2x32xf32>
    %cst_35 = arith.constant dense<0.000000e+00> : vector<2x128xf32>
    %145 = tpu.matmul %144, %11, %cst_35 {dimension_numbers = #tpu.dot_dimension_numbers<[1], [0], [0], [1], [0, 0, 1, 1], [], []>} : vector<2x32xf32>, vector<32x128xf32>, vector<2x128xf32> -> vector<2x128xf32>
    %146 = vector.extract_strided_slice %8 {offsets = [3, 0, 0], sizes = [1, 2, 128], strides = [1, 1, 1]} : vector<8x2x128xf32> to vector<1x2x128xf32>
    %147 = vector.shape_cast %146 : vector<1x2x128xf32> to vector<2x128xf32>
    %cst_36 = arith.constant dense<0.000000e+00> : vector<2x128xf32>
    %148 = tpu.matmul %125, %9, %cst_36 {dimension_numbers = #tpu.dot_dimension_numbers<[1], [0], [0], [1], [0, 0, 1, 1], [], []>} : vector<2x32xf32>, vector<32x128xf32>, vector<2x128xf32> -> vector<2x128xf32>
    %149 = arith.addf %147, %148 : vector<2x128xf32>
    %150 = vector.extract_strided_slice %149 {offsets = [0, 0], sizes = [2, 96], strides = [1, 1]} : vector<2x128xf32> to vector<2x96xf32>
    %151 = arith.negf %150 : vector<2x96xf32>
    %152 = math.exp %151 : vector<2x96xf32>
    %cst_37 = arith.constant 1.000000e+00 : f32
    %153 = vector.broadcast %cst_37 : f32 to vector<2x96xf32>
    %154 = arith.addf %153, %152 : vector<2x96xf32>
    %155 = arith.divf %153, %154 : vector<2x96xf32>
    %156 = vector.extract_strided_slice %149 {offsets = [0, 96], sizes = [2, 32], strides = [1, 1]} : vector<2x128xf32> to vector<2x32xf32>
    %157 = math.tanh %156 : vector<2x32xf32>
    %158 = vector.extract_strided_slice %155 {offsets = [0, 0], sizes = [2, 32], strides = [1, 1]} : vector<2x96xf32> to vector<2x32xf32>
    %159 = vector.extract_strided_slice %155 {offsets = [0, 32], sizes = [2, 32], strides = [1, 1]} : vector<2x96xf32> to vector<2x32xf32>
    %160 = vector.extract_strided_slice %155 {offsets = [0, 64], sizes = [2, 32], strides = [1, 1]} : vector<2x96xf32> to vector<2x32xf32>
    %161 = arith.mulf %159, %123 : vector<2x32xf32>
    %162 = arith.mulf %158, %157 : vector<2x32xf32>
    %163 = arith.addf %161, %162 : vector<2x32xf32>
    %164 = math.tanh %163 : vector<2x32xf32>
    %165 = arith.mulf %160, %164 : vector<2x32xf32>
    %cst_38 = arith.constant dense<0.000000e+00> : vector<2x128xf32>
    %166 = tpu.matmul %165, %10, %cst_38 {dimension_numbers = #tpu.dot_dimension_numbers<[1], [0], [0], [1], [0, 0, 1, 1], [], []>} : vector<2x32xf32>, vector<32x128xf32>, vector<2x128xf32> -> vector<2x128xf32>
    %167 = arith.addf %166, %145 : vector<2x128xf32>
    %168 = arith.addf %167, %14 : vector<2x128xf32>
    %169 = vector.extract_strided_slice %168 {offsets = [0, 0], sizes = [2, 96], strides = [1, 1]} : vector<2x128xf32> to vector<2x96xf32>
    %170 = arith.negf %169 : vector<2x96xf32>
    %171 = math.exp %170 : vector<2x96xf32>
    %cst_39 = arith.constant 1.000000e+00 : f32
    %172 = vector.broadcast %cst_39 : f32 to vector<2x96xf32>
    %173 = arith.addf %172, %171 : vector<2x96xf32>
    %174 = arith.divf %172, %173 : vector<2x96xf32>
    %175 = vector.extract_strided_slice %168 {offsets = [0, 96], sizes = [2, 32], strides = [1, 1]} : vector<2x128xf32> to vector<2x32xf32>
    %176 = math.tanh %175 : vector<2x32xf32>
    %177 = vector.extract_strided_slice %174 {offsets = [0, 0], sizes = [2, 32], strides = [1, 1]} : vector<2x96xf32> to vector<2x32xf32>
    %178 = vector.extract_strided_slice %174 {offsets = [0, 32], sizes = [2, 32], strides = [1, 1]} : vector<2x96xf32> to vector<2x32xf32>
    %179 = vector.extract_strided_slice %174 {offsets = [0, 64], sizes = [2, 32], strides = [1, 1]} : vector<2x96xf32> to vector<2x32xf32>
    %180 = arith.mulf %178, %142 : vector<2x32xf32>
    %181 = arith.mulf %177, %176 : vector<2x32xf32>
    %182 = arith.addf %180, %181 : vector<2x32xf32>
    %183 = math.tanh %182 : vector<2x32xf32>
    %184 = arith.mulf %179, %183 : vector<2x32xf32>
    %cst_40 = arith.constant dense<0.000000e+00> : vector<2x128xf32>
    %185 = tpu.matmul %184, %11, %cst_40 {dimension_numbers = #tpu.dot_dimension_numbers<[1], [0], [0], [1], [0, 0, 1, 1], [], []>} : vector<2x32xf32>, vector<32x128xf32>, vector<2x128xf32> -> vector<2x128xf32>
    %186 = vector.extract_strided_slice %8 {offsets = [4, 0, 0], sizes = [1, 2, 128], strides = [1, 1, 1]} : vector<8x2x128xf32> to vector<1x2x128xf32>
    %187 = vector.shape_cast %186 : vector<1x2x128xf32> to vector<2x128xf32>
    %cst_41 = arith.constant dense<0.000000e+00> : vector<2x128xf32>
    %188 = tpu.matmul %165, %9, %cst_41 {dimension_numbers = #tpu.dot_dimension_numbers<[1], [0], [0], [1], [0, 0, 1, 1], [], []>} : vector<2x32xf32>, vector<32x128xf32>, vector<2x128xf32> -> vector<2x128xf32>
    %189 = arith.addf %187, %188 : vector<2x128xf32>
    %190 = vector.extract_strided_slice %189 {offsets = [0, 0], sizes = [2, 96], strides = [1, 1]} : vector<2x128xf32> to vector<2x96xf32>
    %191 = arith.negf %190 : vector<2x96xf32>
    %192 = math.exp %191 : vector<2x96xf32>
    %cst_42 = arith.constant 1.000000e+00 : f32
    %193 = vector.broadcast %cst_42 : f32 to vector<2x96xf32>
    %194 = arith.addf %193, %192 : vector<2x96xf32>
    %195 = arith.divf %193, %194 : vector<2x96xf32>
    %196 = vector.extract_strided_slice %189 {offsets = [0, 96], sizes = [2, 32], strides = [1, 1]} : vector<2x128xf32> to vector<2x32xf32>
    %197 = math.tanh %196 : vector<2x32xf32>
    %198 = vector.extract_strided_slice %195 {offsets = [0, 0], sizes = [2, 32], strides = [1, 1]} : vector<2x96xf32> to vector<2x32xf32>
    %199 = vector.extract_strided_slice %195 {offsets = [0, 32], sizes = [2, 32], strides = [1, 1]} : vector<2x96xf32> to vector<2x32xf32>
    %200 = vector.extract_strided_slice %195 {offsets = [0, 64], sizes = [2, 32], strides = [1, 1]} : vector<2x96xf32> to vector<2x32xf32>
    %201 = arith.mulf %199, %163 : vector<2x32xf32>
    %202 = arith.mulf %198, %197 : vector<2x32xf32>
    %203 = arith.addf %201, %202 : vector<2x32xf32>
    %204 = math.tanh %203 : vector<2x32xf32>
    %205 = arith.mulf %200, %204 : vector<2x32xf32>
    %cst_43 = arith.constant dense<0.000000e+00> : vector<2x128xf32>
    %206 = tpu.matmul %205, %10, %cst_43 {dimension_numbers = #tpu.dot_dimension_numbers<[1], [0], [0], [1], [0, 0, 1, 1], [], []>} : vector<2x32xf32>, vector<32x128xf32>, vector<2x128xf32> -> vector<2x128xf32>
    %207 = arith.addf %206, %185 : vector<2x128xf32>
    %208 = arith.addf %207, %14 : vector<2x128xf32>
    %209 = vector.extract_strided_slice %208 {offsets = [0, 0], sizes = [2, 96], strides = [1, 1]} : vector<2x128xf32> to vector<2x96xf32>
    %210 = arith.negf %209 : vector<2x96xf32>
    %211 = math.exp %210 : vector<2x96xf32>
    %cst_44 = arith.constant 1.000000e+00 : f32
    %212 = vector.broadcast %cst_44 : f32 to vector<2x96xf32>
    %213 = arith.addf %212, %211 : vector<2x96xf32>
    %214 = arith.divf %212, %213 : vector<2x96xf32>
    %215 = vector.extract_strided_slice %208 {offsets = [0, 96], sizes = [2, 32], strides = [1, 1]} : vector<2x128xf32> to vector<2x32xf32>
    %216 = math.tanh %215 : vector<2x32xf32>
    %217 = vector.extract_strided_slice %214 {offsets = [0, 0], sizes = [2, 32], strides = [1, 1]} : vector<2x96xf32> to vector<2x32xf32>
    %218 = vector.extract_strided_slice %214 {offsets = [0, 32], sizes = [2, 32], strides = [1, 1]} : vector<2x96xf32> to vector<2x32xf32>
    %219 = vector.extract_strided_slice %214 {offsets = [0, 64], sizes = [2, 32], strides = [1, 1]} : vector<2x96xf32> to vector<2x32xf32>
    %220 = arith.mulf %218, %182 : vector<2x32xf32>
    %221 = arith.mulf %217, %216 : vector<2x32xf32>
    %222 = arith.addf %220, %221 : vector<2x32xf32>
    %223 = math.tanh %222 : vector<2x32xf32>
    %224 = arith.mulf %219, %223 : vector<2x32xf32>
    %cst_45 = arith.constant dense<0.000000e+00> : vector<2x128xf32>
    %225 = tpu.matmul %224, %11, %cst_45 {dimension_numbers = #tpu.dot_dimension_numbers<[1], [0], [0], [1], [0, 0, 1, 1], [], []>} : vector<2x32xf32>, vector<32x128xf32>, vector<2x128xf32> -> vector<2x128xf32>
    %226 = vector.extract_strided_slice %8 {offsets = [5, 0, 0], sizes = [1, 2, 128], strides = [1, 1, 1]} : vector<8x2x128xf32> to vector<1x2x128xf32>
    %227 = vector.shape_cast %226 : vector<1x2x128xf32> to vector<2x128xf32>
    %cst_46 = arith.constant dense<0.000000e+00> : vector<2x128xf32>
    %228 = tpu.matmul %205, %9, %cst_46 {dimension_numbers = #tpu.dot_dimension_numbers<[1], [0], [0], [1], [0, 0, 1, 1], [], []>} : vector<2x32xf32>, vector<32x128xf32>, vector<2x128xf32> -> vector<2x128xf32>
    %229 = arith.addf %227, %228 : vector<2x128xf32>
    %230 = vector.extract_strided_slice %229 {offsets = [0, 0], sizes = [2, 96], strides = [1, 1]} : vector<2x128xf32> to vector<2x96xf32>
    %231 = arith.negf %230 : vector<2x96xf32>
    %232 = math.exp %231 : vector<2x96xf32>
    %cst_47 = arith.constant 1.000000e+00 : f32
    %233 = vector.broadcast %cst_47 : f32 to vector<2x96xf32>
    %234 = arith.addf %233, %232 : vector<2x96xf32>
    %235 = arith.divf %233, %234 : vector<2x96xf32>
    %236 = vector.extract_strided_slice %229 {offsets = [0, 96], sizes = [2, 32], strides = [1, 1]} : vector<2x128xf32> to vector<2x32xf32>
    %237 = math.tanh %236 : vector<2x32xf32>
    %238 = vector.extract_strided_slice %235 {offsets = [0, 0], sizes = [2, 32], strides = [1, 1]} : vector<2x96xf32> to vector<2x32xf32>
    %239 = vector.extract_strided_slice %235 {offsets = [0, 32], sizes = [2, 32], strides = [1, 1]} : vector<2x96xf32> to vector<2x32xf32>
    %240 = vector.extract_strided_slice %235 {offsets = [0, 64], sizes = [2, 32], strides = [1, 1]} : vector<2x96xf32> to vector<2x32xf32>
    %241 = arith.mulf %239, %203 : vector<2x32xf32>
    %242 = arith.mulf %238, %237 : vector<2x32xf32>
    %243 = arith.addf %241, %242 : vector<2x32xf32>
    %244 = math.tanh %243 : vector<2x32xf32>
    %245 = arith.mulf %240, %244 : vector<2x32xf32>
    %cst_48 = arith.constant dense<0.000000e+00> : vector<2x128xf32>
    %246 = tpu.matmul %245, %10, %cst_48 {dimension_numbers = #tpu.dot_dimension_numbers<[1], [0], [0], [1], [0, 0, 1, 1], [], []>} : vector<2x32xf32>, vector<32x128xf32>, vector<2x128xf32> -> vector<2x128xf32>
    %247 = arith.addf %246, %225 : vector<2x128xf32>
    %248 = arith.addf %247, %14 : vector<2x128xf32>
    %249 = vector.extract_strided_slice %248 {offsets = [0, 0], sizes = [2, 96], strides = [1, 1]} : vector<2x128xf32> to vector<2x96xf32>
    %250 = arith.negf %249 : vector<2x96xf32>
    %251 = math.exp %250 : vector<2x96xf32>
    %cst_49 = arith.constant 1.000000e+00 : f32
    %252 = vector.broadcast %cst_49 : f32 to vector<2x96xf32>
    %253 = arith.addf %252, %251 : vector<2x96xf32>
    %254 = arith.divf %252, %253 : vector<2x96xf32>
    %255 = vector.extract_strided_slice %248 {offsets = [0, 96], sizes = [2, 32], strides = [1, 1]} : vector<2x128xf32> to vector<2x32xf32>
    %256 = math.tanh %255 : vector<2x32xf32>
    %257 = vector.extract_strided_slice %254 {offsets = [0, 0], sizes = [2, 32], strides = [1, 1]} : vector<2x96xf32> to vector<2x32xf32>
    %258 = vector.extract_strided_slice %254 {offsets = [0, 32], sizes = [2, 32], strides = [1, 1]} : vector<2x96xf32> to vector<2x32xf32>
    %259 = vector.extract_strided_slice %254 {offsets = [0, 64], sizes = [2, 32], strides = [1, 1]} : vector<2x96xf32> to vector<2x32xf32>
    %260 = arith.mulf %258, %222 : vector<2x32xf32>
    %261 = arith.mulf %257, %256 : vector<2x32xf32>
    %262 = arith.addf %260, %261 : vector<2x32xf32>
    %263 = math.tanh %262 : vector<2x32xf32>
    %264 = arith.mulf %259, %263 : vector<2x32xf32>
    %cst_50 = arith.constant dense<0.000000e+00> : vector<2x128xf32>
    %265 = tpu.matmul %264, %11, %cst_50 {dimension_numbers = #tpu.dot_dimension_numbers<[1], [0], [0], [1], [0, 0, 1, 1], [], []>} : vector<2x32xf32>, vector<32x128xf32>, vector<2x128xf32> -> vector<2x128xf32>
    %266 = vector.extract_strided_slice %8 {offsets = [6, 0, 0], sizes = [1, 2, 128], strides = [1, 1, 1]} : vector<8x2x128xf32> to vector<1x2x128xf32>
    %267 = vector.shape_cast %266 : vector<1x2x128xf32> to vector<2x128xf32>
    %cst_51 = arith.constant dense<0.000000e+00> : vector<2x128xf32>
    %268 = tpu.matmul %245, %9, %cst_51 {dimension_numbers = #tpu.dot_dimension_numbers<[1], [0], [0], [1], [0, 0, 1, 1], [], []>} : vector<2x32xf32>, vector<32x128xf32>, vector<2x128xf32> -> vector<2x128xf32>
    %269 = arith.addf %267, %268 : vector<2x128xf32>
    %270 = vector.extract_strided_slice %269 {offsets = [0, 0], sizes = [2, 96], strides = [1, 1]} : vector<2x128xf32> to vector<2x96xf32>
    %271 = arith.negf %270 : vector<2x96xf32>
    %272 = math.exp %271 : vector<2x96xf32>
    %cst_52 = arith.constant 1.000000e+00 : f32
    %273 = vector.broadcast %cst_52 : f32 to vector<2x96xf32>
    %274 = arith.addf %273, %272 : vector<2x96xf32>
    %275 = arith.divf %273, %274 : vector<2x96xf32>
    %276 = vector.extract_strided_slice %269 {offsets = [0, 96], sizes = [2, 32], strides = [1, 1]} : vector<2x128xf32> to vector<2x32xf32>
    %277 = math.tanh %276 : vector<2x32xf32>
    %278 = vector.extract_strided_slice %275 {offsets = [0, 0], sizes = [2, 32], strides = [1, 1]} : vector<2x96xf32> to vector<2x32xf32>
    %279 = vector.extract_strided_slice %275 {offsets = [0, 32], sizes = [2, 32], strides = [1, 1]} : vector<2x96xf32> to vector<2x32xf32>
    %280 = vector.extract_strided_slice %275 {offsets = [0, 64], sizes = [2, 32], strides = [1, 1]} : vector<2x96xf32> to vector<2x32xf32>
    %281 = arith.mulf %279, %243 : vector<2x32xf32>
    %282 = arith.mulf %278, %277 : vector<2x32xf32>
    %283 = arith.addf %281, %282 : vector<2x32xf32>
    %284 = math.tanh %283 : vector<2x32xf32>
    %285 = arith.mulf %280, %284 : vector<2x32xf32>
    %cst_53 = arith.constant dense<0.000000e+00> : vector<2x128xf32>
    %286 = tpu.matmul %285, %10, %cst_53 {dimension_numbers = #tpu.dot_dimension_numbers<[1], [0], [0], [1], [0, 0, 1, 1], [], []>} : vector<2x32xf32>, vector<32x128xf32>, vector<2x128xf32> -> vector<2x128xf32>
    %287 = arith.addf %286, %265 : vector<2x128xf32>
    %288 = arith.addf %287, %14 : vector<2x128xf32>
    %289 = vector.extract_strided_slice %288 {offsets = [0, 0], sizes = [2, 96], strides = [1, 1]} : vector<2x128xf32> to vector<2x96xf32>
    %290 = arith.negf %289 : vector<2x96xf32>
    %291 = math.exp %290 : vector<2x96xf32>
    %cst_54 = arith.constant 1.000000e+00 : f32
    %292 = vector.broadcast %cst_54 : f32 to vector<2x96xf32>
    %293 = arith.addf %292, %291 : vector<2x96xf32>
    %294 = arith.divf %292, %293 : vector<2x96xf32>
    %295 = vector.extract_strided_slice %288 {offsets = [0, 96], sizes = [2, 32], strides = [1, 1]} : vector<2x128xf32> to vector<2x32xf32>
    %296 = math.tanh %295 : vector<2x32xf32>
    %297 = vector.extract_strided_slice %294 {offsets = [0, 0], sizes = [2, 32], strides = [1, 1]} : vector<2x96xf32> to vector<2x32xf32>
    %298 = vector.extract_strided_slice %294 {offsets = [0, 32], sizes = [2, 32], strides = [1, 1]} : vector<2x96xf32> to vector<2x32xf32>
    %299 = vector.extract_strided_slice %294 {offsets = [0, 64], sizes = [2, 32], strides = [1, 1]} : vector<2x96xf32> to vector<2x32xf32>
    %300 = arith.mulf %298, %262 : vector<2x32xf32>
    %301 = arith.mulf %297, %296 : vector<2x32xf32>
    %302 = arith.addf %300, %301 : vector<2x32xf32>
    %303 = math.tanh %302 : vector<2x32xf32>
    %304 = arith.mulf %299, %303 : vector<2x32xf32>
    %cst_55 = arith.constant dense<0.000000e+00> : vector<2x128xf32>
    %305 = tpu.matmul %304, %11, %cst_55 {dimension_numbers = #tpu.dot_dimension_numbers<[1], [0], [0], [1], [0, 0, 1, 1], [], []>} : vector<2x32xf32>, vector<32x128xf32>, vector<2x128xf32> -> vector<2x128xf32>
    %306 = vector.extract_strided_slice %8 {offsets = [7, 0, 0], sizes = [1, 2, 128], strides = [1, 1, 1]} : vector<8x2x128xf32> to vector<1x2x128xf32>
    %307 = vector.shape_cast %306 : vector<1x2x128xf32> to vector<2x128xf32>
    %cst_56 = arith.constant dense<0.000000e+00> : vector<2x128xf32>
    %308 = tpu.matmul %285, %9, %cst_56 {dimension_numbers = #tpu.dot_dimension_numbers<[1], [0], [0], [1], [0, 0, 1, 1], [], []>} : vector<2x32xf32>, vector<32x128xf32>, vector<2x128xf32> -> vector<2x128xf32>
    %309 = arith.addf %307, %308 : vector<2x128xf32>
    %310 = vector.extract_strided_slice %309 {offsets = [0, 0], sizes = [2, 96], strides = [1, 1]} : vector<2x128xf32> to vector<2x96xf32>
    %311 = arith.negf %310 : vector<2x96xf32>
    %312 = math.exp %311 : vector<2x96xf32>
    %cst_57 = arith.constant 1.000000e+00 : f32
    %313 = vector.broadcast %cst_57 : f32 to vector<2x96xf32>
    %314 = arith.addf %313, %312 : vector<2x96xf32>
    %315 = arith.divf %313, %314 : vector<2x96xf32>
    %316 = vector.extract_strided_slice %309 {offsets = [0, 96], sizes = [2, 32], strides = [1, 1]} : vector<2x128xf32> to vector<2x32xf32>
    %317 = math.tanh %316 : vector<2x32xf32>
    %318 = vector.extract_strided_slice %315 {offsets = [0, 0], sizes = [2, 32], strides = [1, 1]} : vector<2x96xf32> to vector<2x32xf32>
    %319 = vector.extract_strided_slice %315 {offsets = [0, 32], sizes = [2, 32], strides = [1, 1]} : vector<2x96xf32> to vector<2x32xf32>
    %320 = vector.extract_strided_slice %315 {offsets = [0, 64], sizes = [2, 32], strides = [1, 1]} : vector<2x96xf32> to vector<2x32xf32>
    %321 = arith.mulf %319, %283 : vector<2x32xf32>
    %322 = arith.mulf %318, %317 : vector<2x32xf32>
    %323 = arith.addf %321, %322 : vector<2x32xf32>
    %324 = math.tanh %323 : vector<2x32xf32>
    %325 = arith.mulf %320, %324 : vector<2x32xf32>
    %cst_58 = arith.constant dense<0.000000e+00> : vector<2x128xf32>
    %326 = tpu.matmul %325, %10, %cst_58 {dimension_numbers = #tpu.dot_dimension_numbers<[1], [0], [0], [1], [0, 0, 1, 1], [], []>} : vector<2x32xf32>, vector<32x128xf32>, vector<2x128xf32> -> vector<2x128xf32>
    %327 = arith.addf %326, %305 : vector<2x128xf32>
    %328 = arith.addf %327, %14 : vector<2x128xf32>
    %329 = vector.extract_strided_slice %328 {offsets = [0, 0], sizes = [2, 96], strides = [1, 1]} : vector<2x128xf32> to vector<2x96xf32>
    %330 = arith.negf %329 : vector<2x96xf32>
    %331 = math.exp %330 : vector<2x96xf32>
    %cst_59 = arith.constant 1.000000e+00 : f32
    %332 = vector.broadcast %cst_59 : f32 to vector<2x96xf32>
    %333 = arith.addf %332, %331 : vector<2x96xf32>
    %334 = arith.divf %332, %333 : vector<2x96xf32>
    %335 = vector.extract_strided_slice %328 {offsets = [0, 96], sizes = [2, 32], strides = [1, 1]} : vector<2x128xf32> to vector<2x32xf32>
    %336 = math.tanh %335 : vector<2x32xf32>
    %337 = vector.extract_strided_slice %334 {offsets = [0, 0], sizes = [2, 32], strides = [1, 1]} : vector<2x96xf32> to vector<2x32xf32>
    %338 = vector.extract_strided_slice %334 {offsets = [0, 32], sizes = [2, 32], strides = [1, 1]} : vector<2x96xf32> to vector<2x32xf32>
    %339 = vector.extract_strided_slice %334 {offsets = [0, 64], sizes = [2, 32], strides = [1, 1]} : vector<2x96xf32> to vector<2x32xf32>
    %340 = arith.mulf %338, %302 : vector<2x32xf32>
    %341 = arith.mulf %337, %336 : vector<2x32xf32>
    %342 = arith.addf %340, %341 : vector<2x32xf32>
    %343 = math.tanh %342 : vector<2x32xf32>
    %344 = arith.mulf %339, %343 : vector<2x32xf32>
    %345 = vector.shape_cast %325 : vector<2x32xf32> to vector<2x1x32xf32>
    %346 = vector.shape_cast %344 : vector<2x32xf32> to vector<2x1x32xf32>
    %347 = tpu.concatenate %345, %346 in 1 : vector<2x1x32xf32>, vector<2x1x32xf32> -> vector<2x2x32xf32>
    %c0_60 = arith.constant 0 : index
    %c0_61 = arith.constant 0 : index
    %c0_62 = arith.constant 0 : index
    %348 = vector.load %arg15[%c0_60, %c0_61, %c0_62] : memref<2x2x32xf32, #tpu.memory_space<vmem>>, vector<2x2x32xf32>
    tpu.vector_store %arg15[%c0_60, %c0_61, %c0_62], %347 {strides = array<i32>} : memref<2x2x32xf32, #tpu.memory_space<vmem>>, vector<2x2x32xf32>,
    %349 = vector.shape_cast %323 : vector<2x32xf32> to vector<2x1x32xf32>
    %350 = vector.shape_cast %342 : vector<2x32xf32> to vector<2x1x32xf32>
    %351 = tpu.concatenate %349, %350 in 1 : vector<2x1x32xf32>, vector<2x1x32xf32> -> vector<2x2x32xf32>
    %c0_63 = arith.constant 0 : index
    %c0_64 = arith.constant 0 : index
    %c0_65 = arith.constant 0 : index
    %352 = vector.load %arg16[%c0_63, %c0_64, %c0_65] : memref<2x2x32xf32, #tpu.memory_space<vmem>>, vector<2x2x32xf32>
    tpu.vector_store %arg16[%c0_63, %c0_64, %c0_65], %351 {strides = array<i32>} : memref<2x2x32xf32, #tpu.memory_space<vmem>>, vector<2x2x32xf32>,
    %353 = vector.shape_cast %64 : vector<2x32xf32> to vector<1x2x32xf32>
    %354 = vector.shape_cast %104 : vector<2x32xf32> to vector<1x2x32xf32>
    %355 = vector.shape_cast %144 : vector<2x32xf32> to vector<1x2x32xf32>
    %356 = vector.shape_cast %184 : vector<2x32xf32> to vector<1x2x32xf32>
    %357 = vector.shape_cast %224 : vector<2x32xf32> to vector<1x2x32xf32>
    %358 = vector.shape_cast %264 : vector<2x32xf32> to vector<1x2x32xf32>
    %359 = vector.shape_cast %304 : vector<2x32xf32> to vector<1x2x32xf32>
    %360 = vector.shape_cast %344 : vector<2x32xf32> to vector<1x2x32xf32>
    %361 = tpu.concatenate %353, %354, %355, %356, %357, %358, %359, %360 in 0 : vector<1x2x32xf32>, vector<1x2x32xf32>, vector<1x2x32xf32>, vector<1x2x32xf32>, vector<1x2x32xf32>, vector<1x2x32xf32>, vector<1x2x32xf32>, vector<1x2x32xf32> -> vector<8x2x32xf32>
    %362 = vector.shape_cast %361 : vector<8x2x32xf32> to vector<16x32xf32>
    %c0_66 = arith.constant 0 : index
    %c0_67 = arith.constant 0 : index
    %363 = vector.load %arg10[%c0_66, %c0_67] : memref<32x128xf32, #tpu.memory_space<vmem>>, vector<32x128xf32>
    %cst_68 = arith.constant dense<0.000000e+00> : vector<16x128xf32>
    %364 = tpu.matmul %362, %363, %cst_68 {dimension_numbers = #tpu.dot_dimension_numbers<[1], [0], [0], [1], [0, 0, 1, 1], [], []>} : vector<16x32xf32>, vector<32x128xf32>, vector<16x128xf32> -> vector<16x128xf32>
    %c0_69 = arith.constant 0 : index
    %c0_70 = arith.constant 0 : index
    %365 = vector.load %arg11[%c0_69, %c0_70] : memref<1x128xf32, #tpu.memory_space<vmem>>, vector<1x128xf32>
    %366 = vector.broadcast %365 : vector<1x128xf32> to vector<16x128xf32>
    %367 = arith.addf %364, %366 : vector<16x128xf32>
    %cst_71 = arith.constant 0.000000e+00 : f32
    %368 = vector.broadcast %cst_71 : f32 to vector<16x128xf32>
    %369 = arith.cmpf ogt, %367, %368 : vector<16x128xf32>
    %cst_72 = arith.constant 1.000000e-01 : f32
    %370 = vector.broadcast %cst_72 : f32 to vector<16x128xf32>
    %371 = arith.mulf %370, %367 : vector<16x128xf32>
    %372 = arith.select %369, %367, %371 : vector<16x128xi1>, vector<16x128xf32>
    %c0_73 = arith.constant 0 : index
    %c0_74 = arith.constant 0 : index
    %373 = vector.load %arg12[%c0_73, %c0_74] : memref<128x128xf32, #tpu.memory_space<vmem>>, vector<128x128xf32>
    %cst_75 = arith.constant dense<0.000000e+00> : vector<16x128xf32>
    %374 = tpu.matmul %372, %373, %cst_75 {dimension_numbers = #tpu.dot_dimension_numbers<[1], [0], [0], [1], [0, 0, 1, 1], [], []>} : vector<16x128xf32>, vector<128x128xf32>, vector<16x128xf32> -> vector<16x128xf32>
    %c0_76 = arith.constant 0 : index
    %c0_77 = arith.constant 0 : index
    %375 = vector.load %arg13[%c0_76, %c0_77] : memref<1x128xf32, #tpu.memory_space<vmem>>, vector<1x128xf32>
    %376 = vector.broadcast %375 : vector<1x128xf32> to vector<16x128xf32>
    %377 = arith.addf %374, %376 : vector<16x128xf32>
    %378 = vector.shape_cast %377 : vector<16x128xf32> to vector<8x2x128xf32>
    %379 = tpu.transpose %378, [1, 0, 2] : vector<8x2x128xf32> -> vector<2x8x128xf32>
    %c0_78 = arith.constant 0 : index
    %c0_79 = arith.constant 0 : index
    %c0_80 = arith.constant 0 : index
    %380 = vector.load %arg14[%c0_78, %c0_79, %c0_80] : memref<2x8x128xf32, #tpu.memory_space<vmem>>, vector<2x8x128xf32>
    tpu.vector_store %arg14[%c0_78, %c0_79, %c0_80], %379 {strides = array<i32>} : memref<2x8x128xf32, #tpu.memory_space<vmem>>, vector<2x8x128xf32>,
    return
  }
  func.func @transform_0(%arg0: i32) -> (i32, i32, i32) {
    %c0_i32 = arith.constant 0 : i32
    %c0_i32_0 = arith.constant 0 : i32
    %c0_i32_1 = arith.constant 0 : i32
    return %arg0, %c0_i32, %c0_i32_0 : i32, i32, i32
  }
  func.func @transform_1(%arg0: i32) -> (i32, i32, i32) {
    %c0_i32 = arith.constant 0 : i32
    %c0_i32_0 = arith.constant 0 : i32
    %c0_i32_1 = arith.constant 0 : i32
    return %arg0, %c0_i32, %c0_i32_0 : i32, i32, i32
  }
  func.func @transform_2(%arg0: i32) -> (i32, i32, i32) {
    %c0_i32 = arith.constant 0 : i32
    %c0_i32_0 = arith.constant 0 : i32
    %c0_i32_1 = arith.constant 0 : i32
    return %arg0, %c0_i32, %c0_i32_0 : i32, i32, i32
  }
  func.func @transform_3(%arg0: i32) -> (i32, i32) {
    %c0_i32 = arith.constant 0 : i32
    %c0_i32_0 = arith.constant 0 : i32
    %c0_i32_1 = arith.constant 0 : i32
    return %c0_i32, %c0_i32_0 : i32, i32
  }
  func.func @transform_4(%arg0: i32) -> (i32, i32) {
    %c0_i32 = arith.constant 0 : i32
    %c0_i32_0 = arith.constant 0 : i32
    %c0_i32_1 = arith.constant 0 : i32
    return %c0_i32, %c0_i32_0 : i32, i32
  }
  func.func @transform_5(%arg0: i32) -> (i32, i32) {
    %c0_i32 = arith.constant 0 : i32
    %c0_i32_0 = arith.constant 0 : i32
    %c0_i32_1 = arith.constant 0 : i32
    return %c0_i32, %c0_i32_0 : i32, i32
  }
  func.func @transform_6(%arg0: i32) -> (i32, i32) {
    %c0_i32 = arith.constant 0 : i32
    %c0_i32_0 = arith.constant 0 : i32
    %c0_i32_1 = arith.constant 0 : i32
    return %c0_i32, %c0_i32_0 : i32, i32
  }
  func.func @transform_7(%arg0: i32) -> (i32, i32) {
    %c0_i32 = arith.constant 0 : i32
    %c0_i32_0 = arith.constant 0 : i32
    %c0_i32_1 = arith.constant 0 : i32
    return %c0_i32, %c0_i32_0 : i32, i32
  }
  func.func @transform_8(%arg0: i32) -> (i32, i32) {
    %c0_i32 = arith.constant 0 : i32
    %c0_i32_0 = arith.constant 0 : i32
    %c0_i32_1 = arith.constant 0 : i32
    return %c0_i32, %c0_i32_0 : i32, i32
  }
  func.func @transform_9(%arg0: i32) -> (i32, i32) {
    %c0_i32 = arith.constant 0 : i32
    %c0_i32_0 = arith.constant 0 : i32
    %c0_i32_1 = arith.constant 0 : i32
    return %c0_i32, %c0_i32_0 : i32, i32
  }
  func.func @transform_10(%arg0: i32) -> (i32, i32) {
    %c0_i32 = arith.constant 0 : i32
    %c0_i32_0 = arith.constant 0 : i32
    %c0_i32_1 = arith.constant 0 : i32
    return %c0_i32, %c0_i32_0 : i32, i32
  }
  func.func @transform_11(%arg0: i32) -> (i32, i32) {
    %c0_i32 = arith.constant 0 : i32
    %c0_i32_0 = arith.constant 0 : i32
    %c0_i32_1 = arith.constant 0 : i32
    return %c0_i32, %c0_i32_0 : i32, i32
  }
  func.func @transform_12(%arg0: i32) -> (i32, i32) {
    %c0_i32 = arith.constant 0 : i32
    %c0_i32_0 = arith.constant 0 : i32
    %c0_i32_1 = arith.constant 0 : i32
    return %c0_i32, %c0_i32_0 : i32, i32
  }
  func.func @transform_13(%arg0: i32) -> (i32, i32, i32) {
    %c0_i32 = arith.constant 0 : i32
    %c0_i32_0 = arith.constant 0 : i32
    %c0_i32_1 = arith.constant 0 : i32
    return %arg0, %c0_i32, %c0_i32_0 : i32, i32, i32
  }
  func.func @transform_14(%arg0: i32) -> (i32, i32, i32) {
    %c0_i32 = arith.constant 0 : i32
    %c0_i32_0 = arith.constant 0 : i32
    %c0_i32_1 = arith.constant 0 : i32
    return %arg0, %c0_i32, %c0_i32_0 : i32, i32, i32
  }
  func.func @transform_15(%arg0: i32) -> (i32, i32, i32) {
    %c0_i32 = arith.constant 0 : i32
    %c0_i32_0 = arith.constant 0 : i32
    %c0_i32_1 = arith.constant 0 : i32
    return %arg0, %c0_i32, %c0_i32_0 : i32, i32, i32
  }
}

</mosaic_0001>

<llo_original>
// kernel: tpu_custom_call.1
$region0: #{tpu_custom_call.1}
  #allocation0 [shape = 'u32[]', space=smem, size = 0x4, offset = 0x4, fixed_abs, tag = 'smem constant byte address 0x4 - core index']
  #allocation1 [shape = 'u32[144,128]{1,0:T(1,128)}', space=vmem, size = 0x12000, scoped, tag = 'internal scratch']
  %s0 = inlined_call_operand.hbm [shape: f32[2,8,48], index: 0, kind: input, shape index: {}]
  %s1 = inlined_call_operand.hbm [shape: f32[2,2,32], index: 1, kind: input, shape index: {}]
  %s2 = inlined_call_operand.hbm [shape: f32[2,2,32], index: 2, kind: input, shape index: {}]
  %s3 = inlined_call_operand.hbm [shape: f32[48,128], index: 3, kind: input, shape index: {}]
  %s4 = inlined_call_operand.hbm [shape: f32[32,128], index: 4, kind: input, shape index: {}]
  %s5 = inlined_call_operand.vmem [shape: f32[1,128], index: 5, kind: input, shape index: {}]
  %s6 = inlined_call_operand.hbm [shape: f32[32,128], index: 6, kind: input, shape index: {}]
  %s7 = inlined_call_operand.hbm [shape: f32[32,128], index: 7, kind: input, shape index: {}]
  %s8 = inlined_call_operand.vmem [shape: f32[1,128], index: 8, kind: input, shape index: {}]
  %s9 = inlined_call_operand.vmem [shape: f32[32,128], index: 9, kind: input, shape index: {}]
  %s10 = inlined_call_operand.vmem [shape: f32[1,128], index: 10, kind: input, shape index: {}]
  %s11 = inlined_call_operand.hbm [shape: f32[128,128], index: 11, kind: input, shape index: {}]
  %s12 = inlined_call_operand.vmem [shape: f32[1,128], index: 12, kind: input, shape index: {}]
  %s13 = inlined_call_operand.hbm [shape: f32[2,8,128], index: 13, kind: output, shape index: {0}]
  %s14 = inlined_call_operand.hbm [shape: f32[2,2,32], index: 14, kind: output, shape index: {1}]
  %s15 = inlined_call_operand.hbm [shape: f32[2,2,32], index: 15, kind: output, shape index: {2}]
  %16 = xla_tuple %s13, %s14, %s15
  %s17 = sld [smem:[#allocation0]]
  $region110: #{tpu_custom_call.1} parent=0
    _
  %s19 = ssub.s32 1, %s17
  %s20 = scalar_select 0, %s19, %s17
  $region1: #{tpu_custom_call.1} parent=0
    #allocation2 [shape = 'u8[8192]{0}', space=vmem, size = 0x2000, scoped, tag = 'input window, operand 0, single buffered']
    #allocation3 [shape = 's32[1]{0}', space=sflag, size = 0x4, scoped, tag = 'scoped memory for tpu_custom_call.1']
    #allocation4 [shape = 's32[1]{0}', space=sflag, size = 0x4, scoped, tag = 'scoped memory for tpu_custom_call.1']
    #allocation5 [shape = 'u8[2048]{0}', space=vmem, size = 0x800, scoped, tag = 'input window, operand 1, single buffered']
    #allocation6 [shape = 's32[1]{0}', space=sflag, size = 0x4, scoped, tag = 'scoped memory for tpu_custom_call.1']
    #allocation7 [shape = 'u8[2048]{0}', space=vmem, size = 0x800, scoped, tag = 'input window, operand 2, single buffered']
    #allocation8 [shape = 'u8[24576]{0}', space=vmem, size = 0x6000, scoped, tag = 'input window, operand 3, single buffered']
    #allocation9 [shape = 's32[1]{0}', space=sflag, size = 0x4, scoped, tag = 'scoped memory for tpu_custom_call.1']
    #allocation10 [shape = 'u8[16384]{0}', space=vmem, size = 0x4000, scoped, tag = 'input window, operand 4, single buffered']
    #allocation11 [shape = 'u8[16384]{0}', space=vmem, size = 0x4000, scoped, tag = 'input window, operand 6, single buffered']
    #allocation12 [shape = 's32[1]{0}', space=sflag, size = 0x4, scoped, tag = 'scoped memory for tpu_custom_call.1']
    #allocation13 [shape = 'u8[16384]{0}', space=vmem, size = 0x4000, scoped, tag = 'input window, operand 7, single buffered']
    #allocation14 [shape = 'u8[65536]{0}', space=vmem, size = 0x10000, scoped, tag = 'input window, operand 11, single buffered']
    #allocation15 [shape = 's32[1]{0}', space=sflag, size = 0x4, scoped, tag = 'scoped memory for tpu_custom_call.1']
    #allocation16 [shape = 'u8[8192]{0}', space=vmem, size = 0x2000, scoped, tag = 'output window, operand 0, single buffered']
    #allocation17 [shape = 'u8[2048]{0}', space=vmem, size = 0x800, scoped, tag = 'output window, operand 1, single buffered']
    #allocation18 [shape = 's32[1]{0}', space=sflag, size = 0x4, scoped, tag = 'scoped memory for tpu_custom_call.1']
    #allocation19 [shape = 'u8[2048]{0}', space=vmem, size = 0x800, scoped, tag = 'output window, operand 2, single buffered']
    %21 = vsyncpa [#allocation3], 0
    %22 = vsyncpa [#allocation6], 0
    %23 = vsyncpa [#allocation9], 0
    %24 = vsyncpa [#allocation12], 0
    %25 = vsyncpa [#allocation15], 0
    %26 = vsyncpa [#allocation4], 0
    %27 = vsyncpa [#allocation18], 0
    // Predicated region
    $region2: #{tpu_custom_call.1} parent=1 // pred_check
      _
    $region3: #{tpu_custom_call.1} parent=1 // pred_check_branch
      %29 = sbr.rel (0) target = $region5
    $region4: #{tpu_custom_call.1} parent=1 // pred_region
      %s31 = ssub.s32 256, 256
      %32 = vsyncadd [#allocation3], %s31
      %s33 = sshll.u32 [#allocation2], 4
      %s34 = int_to_ptr.vmem [resolvable:$true] %s33
      %39 = dma.hbm_to_vmem [thread:$0]  %s0, 256, %s34, [#allocation3], 128, 128, 8
    $region5: #{tpu_custom_call.1} parent=1 // pred_fallthru
      _
    // Predicated region
    $region6: #{tpu_custom_call.1} parent=1 // pred_check
      _
    $region7: #{tpu_custom_call.1} parent=1 // pred_check_branch
      %41 = sbr.rel (0) target = $region9
    $region8: #{tpu_custom_call.1} parent=1 // pred_region
      %s43 = ssub.s32 64, 64
      %44 = vsyncadd [#allocation6], %s43
      %s45 = sshll.u32 [#allocation5], 4
      %s46 = int_to_ptr.vmem [resolvable:$true] %s45
      %51 = dma.hbm_to_vmem [thread:$0]  %s1, 64, %s46, [#allocation6], 32, 32, 2
    $region9: #{tpu_custom_call.1} parent=1 // pred_fallthru
      _
    // Predicated region
    $region10: #{tpu_custom_call.1} parent=1 // pred_check
      _
    $region11: #{tpu_custom_call.1} parent=1 // pred_check_branch
      %53 = sbr.rel (0) target = $region13
    $region12: #{tpu_custom_call.1} parent=1 // pred_region
      %s55 = ssub.s32 64, 64
      %56 = vsyncadd [#allocation6], %s55
      %s57 = sshll.u32 [#allocation7], 4
      %s58 = int_to_ptr.vmem [resolvable:$true] %s57
      %63 = dma.hbm_to_vmem [thread:$0]  %s2, 64, %s58, [#allocation6], 32, 32, 2
    $region13: #{tpu_custom_call.1} parent=1 // pred_fallthru
      _
    // Predicated region
    $region14: #{tpu_custom_call.1} parent=1 // pred_check
      _
    $region15: #{tpu_custom_call.1} parent=1 // pred_check_branch
      %65 = sbr.rel (0) target = $region17
    $region16: #{tpu_custom_call.1} parent=1 // pred_region
      %s67 = ssub.s32 768, 768
      %68 = vsyncadd [#allocation9], %s67
      %s69 = sshll.u32 [#allocation8], 4
      %s70 = int_to_ptr.vmem [resolvable:$true] %s69
      %75 = dma.hbm_to_vmem [thread:$0]  %s3, 768, %s70, [#allocation9], 128, 128, 8
    $region17: #{tpu_custom_call.1} parent=1 // pred_fallthru
      _
    // Predicated region
    $region18: #{tpu_custom_call.1} parent=1 // pred_check
      _
    $region19: #{tpu_custom_call.1} parent=1 // pred_check_branch
      %77 = sbr.rel (0) target = $region21
    $region20: #{tpu_custom_call.1} parent=1 // pred_region
      %s79 = ssub.s32 512, 512
      %80 = vsyncadd [#allocation9], %s79
      %s81 = sshll.u32 [#allocation10], 4
      %s82 = int_to_ptr.vmem [resolvable:$true] %s81
      %87 = dma.hbm_to_vmem [thread:$0]  %s4, 512, %s82, [#allocation9], 128, 128, 8
    $region21: #{tpu_custom_call.1} parent=1 // pred_fallthru
      _
    // Predicated region
    $region22: #{tpu_custom_call.1} parent=1 // pred_check
      _
    $region23: #{tpu_custom_call.1} parent=1 // pred_check_branch
      %89 = sbr.rel (0) target = $region25
    $region24: #{tpu_custom_call.1} parent=1 // pred_region
      _
    $region25: #{tpu_custom_call.1} parent=1 // pred_fallthru
      _
    // Predicated region
    $region26: #{tpu_custom_call.1} parent=1 // pred_check
      _
    $region27: #{tpu_custom_call.1} parent=1 // pred_check_branch
      %91 = sbr.rel (0) target = $region29
    $region28: #{tpu_custom_call.1} parent=1 // pred_region
      %s93 = ssub.s32 512, 512
      %94 = vsyncadd [#allocation12], %s93
      %s95 = sshll.u32 [#allocation11], 4
      %s96 = int_to_ptr.vmem [resolvable:$true] %s95
      %101 = dma.hbm_to_vmem [thread:$0]  %s6, 512, %s96, [#allocation12], 128, 128, 8
    $region29: #{tpu_custom_call.1} parent=1 // pred_fallthru
      _
    // Predicated region
    $region30: #{tpu_custom_call.1} parent=1 // pred_check
      _
    $region31: #{tpu_custom_call.1} parent=1 // pred_check_branch
      %103 = sbr.rel (0) target = $region33
    $region32: #{tpu_custom_call.1} parent=1 // pred_region
      %s105 = ssub.s32 512, 512
      %106 = vsyncadd [#allocation12], %s105
      %s107 = sshll.u32 [#allocation13], 4
      %s108 = int_to_ptr.vmem [resolvable:$true] %s107
      %113 = dma.hbm_to_vmem [thread:$0]  %s7, 512, %s108, [#allocation12], 128, 128, 8
    $region33: #{tpu_custom_call.1} parent=1 // pred_fallthru
      _
    // Predicated region
    $region34: #{tpu_custom_call.1} parent=1 // pred_check
      _
    $region35: #{tpu_custom_call.1} parent=1 // pred_check_branch
      %115 = sbr.rel (0) target = $region37
    $region36: #{tpu_custom_call.1} parent=1 // pred_region
      _
    $region37: #{tpu_custom_call.1} parent=1 // pred_fallthru
      _
    // Predicated region
    $region38: #{tpu_custom_call.1} parent=1 // pred_check
      _
    $region39: #{tpu_custom_call.1} parent=1 // pred_check_branch
      %117 = sbr.rel (0) target = $region41
    $region40: #{tpu_custom_call.1} parent=1 // pred_region
      _
    $region41: #{tpu_custom_call.1} parent=1 // pred_fallthru
      _
    // Predicated region
    $region42: #{tpu_custom_call.1} parent=1 // pred_check
      _
    $region43: #{tpu_custom_call.1} parent=1 // pred_check_branch
      %119 = sbr.rel (0) target = $region45
    $region44: #{tpu_custom_call.1} parent=1 // pred_region
      _
    $region45: #{tpu_custom_call.1} parent=1 // pred_fallthru
      _
    // Predicated region
    $region46: #{tpu_custom_call.1} parent=1 // pred_check
      _
    $region47: #{tpu_custom_call.1} parent=1 // pred_check_branch
      %121 = sbr.rel (0) target = $region49
    $region48: #{tpu_custom_call.1} parent=1 // pred_region
      %s123 = ssub.s32 2048, 2048
      %124 = vsyncadd [#allocation15], %s123
      %s125 = sshll.u32 [#allocation14], 4
      %s126 = int_to_ptr.vmem [resolvable:$true] %s125
      %131 = dma.hbm_to_vmem [thread:$0]  %s11, 2048, %s126, [#allocation15], 128, 128, 8
    $region49: #{tpu_custom_call.1} parent=1 // pred_fallthru
      _
    // Predicated region
    $region50: #{tpu_custom_call.1} parent=1 // pred_check
      _
    $region51: #{tpu_custom_call.1} parent=1 // pred_check_branch
      %133 = sbr.rel (0) target = $region53
    $region52: #{tpu_custom_call.1} parent=1 // pred_region
      _
    $region53: #{tpu_custom_call.1} parent=1 // pred_fallthru
      _
    // Predicated region
    $region54: #{tpu_custom_call.1} parent=1 // pred_check
      _
    $region55: #{tpu_custom_call.1} parent=1 // pred_check_branch
      %135 = sbr.rel (0) target = $region57
    $region56: #{tpu_custom_call.1} parent=1 // pred_region
      %136 = dma.done [#allocation3], 256
    $region57: #{tpu_custom_call.1} parent=1 // pred_fallthru
      _
    // Predicated region
    $region58: #{tpu_custom_call.1} parent=1 // pred_check
      _
    $region59: #{tpu_custom_call.1} parent=1 // pred_check_branch
      %138 = sbr.rel (0) target = $region61
    $region60: #{tpu_custom_call.1} parent=1 // pred_region
      %139 = dma.done [#allocation6], 64
    $region61: #{tpu_custom_call.1} parent=1 // pred_fallthru
      _
    // Predicated region
    $region62: #{tpu_custom_call.1} parent=1 // pred_check
      _
    $region63: #{tpu_custom_call.1} parent=1 // pred_check_branch
      %141 = sbr.rel (0) target = $region65
    $region64: #{tpu_custom_call.1} parent=1 // pred_region
      %142 = dma.done [#allocation6], 64
    $region65: #{tpu_custom_call.1} parent=1 // pred_fallthru
      _
    // Predicated region
    $region66: #{tpu_custom_call.1} parent=1 // pred_check
      _
    $region67: #{tpu_custom_call.1} parent=1 // pred_check_branch
      %144 = sbr.rel (0) target = $region69
    $region68: #{tpu_custom_call.1} parent=1 // pred_region
      %145 = dma.done [#allocation9], 768
    $region69: #{tpu_custom_call.1} parent=1 // pred_fallthru
      _
    // Predicated region
    $region70: #{tpu_custom_call.1} parent=1 // pred_check
      _
    $region71: #{tpu_custom_call.1} parent=1 // pred_check_branch
      %147 = sbr.rel (0) target = $region73
    $region72: #{tpu_custom_call.1} parent=1 // pred_region
      %148 = dma.done [#allocation9], 512
    $region73: #{tpu_custom_call.1} parent=1 // pred_fallthru
      _
    // Predicated region
    $region74: #{tpu_custom_call.1} parent=1 // pred_check
      _
    $region75: #{tpu_custom_call.1} parent=1 // pred_check_branch
      %150 = sbr.rel (0) target = $region77
    $region76: #{tpu_custom_call.1} parent=1 // pred_region
      %151 = dma.done [#allocation12], 512
    $region77: #{tpu_custom_call.1} parent=1 // pred_fallthru
      _
    // Predicated region
    $region78: #{tpu_custom_call.1} parent=1 // pred_check
      _
    $region79: #{tpu_custom_call.1} parent=1 // pred_check_branch
      %153 = sbr.rel (0) target = $region81
    $region80: #{tpu_custom_call.1} parent=1 // pred_region
      %154 = dma.done [#allocation12], 512
    $region81: #{tpu_custom_call.1} parent=1 // pred_fallthru
      _
    // Predicated region
    $region82: #{tpu_custom_call.1} parent=1 // pred_check
      _
    $region83: #{tpu_custom_call.1} parent=1 // pred_check_branch
      %156 = sbr.rel (0) target = $region85
    $region84: #{tpu_custom_call.1} parent=1 // pred_region
      %157 = dma.done [#allocation15], 2048
    $region85: #{tpu_custom_call.1} parent=1 // pred_fallthru
      _
    %v158 = vld [vmem:[#allocation2] sm:$0xff]
    %v159 = vld [vmem:[#allocation2 + $0x8] sm:$0xff]
    %v160 = vcombine.high %v158, 0.0
    %v162 = vunpack.c.l.s4 1983009808
    %v163 = vunpack.c.0.s8 %v162
    %v164 = vlaneseq
    %v165 = vshrl.u32 %v164, 7
    %v166 = vsub.s32 %v163, %v165
    %v167 = vrot.slane %v158, %v166
    %v169 = vunpack.c.l.s4 1983009808
    %v170 = vunpack.c.0.s8 %v169
    %v171 = vlaneseq
    %v172 = vshrl.u32 %v171, 7
    %v173 = vsub.s32 %v170, %v172
    %v174 = vrot.slane %v160, %v173
    %v175 = vcombine.high %v159, 0.0
    %v177 = vunpack.c.l.s4 1983009808
    %v178 = vunpack.c.0.s8 %v177
    %v179 = vlaneseq
    %v180 = vshrl.u32 %v179, 7
    %v181 = vsub.s32 %v178, %v180
    %v182 = vrot.slane %v159, %v181
    %v184 = vunpack.c.l.s4 1983009808
    %v185 = vunpack.c.0.s8 %v184
    %v186 = vlaneseq
    %v187 = vshrl.u32 %v186, 7
    %v188 = vsub.s32 %v185, %v187
    %v189 = vrot.slane %v175, %v188
    %v190 = vcombine.low %v167, %v182
    %v191 = vcombine.high %v167, %v182
    %v193 = vunpack.c.l.s4 1934713408
    %v194 = vunpack.c.0.s8 %v193
    %v195 = vlaneseq
    %v196 = vshrl.u32 %v195, 7
    %v197 = vsub.s32 %v194, %v196
    %v198 = vrot.slane %v190, %v197
    %v200 = vunpack.c.l.s4 1934713408
    %v201 = vunpack.c.0.s8 %v200
    %v202 = vlaneseq
    %v203 = vshrl.u32 %v202, 7
    %v204 = vsub.s32 %v201, %v203
    %v205 = vrot.slane %v191, %v204
    %v206 = vcombine.low %v174, %v189
    %v207 = vcombine.high %v174, %v189
    %v209 = vunpack.c.l.s4 1934713408
    %v210 = vunpack.c.0.s8 %v209
    %v211 = vlaneseq
    %v212 = vshrl.u32 %v211, 7
    %v213 = vsub.s32 %v210, %v212
    %v214 = vrot.slane %v206, %v213
    %v216 = vunpack.c.l.s4 1934713408
    %v217 = vunpack.c.0.s8 %v216
    %v218 = vlaneseq
    %v219 = vshrl.u32 %v218, 7
    %v220 = vsub.s32 %v217, %v219
    %v221 = vrot.slane %v207, %v220
    %v222 = vcombine.high %v198, 0.0
    %v223 = vcombine.high %v205, 0.0
    %v224 = vcombine.high %v214, 0.0
    %v225 = vcombine.high %v221, 0.0
    %v226 = vld [vmem:[#allocation8] sm:$0xff]
    %v227 = vld [vmem:[#allocation8 + $0x8] sm:$0xff]
    %v228 = vld [vmem:[#allocation8 + $0x10] sm:$0xff]
    %v229 = vld [vmem:[#allocation8 + $0x18] sm:$0xff]
    %v230 = vld [vmem:[#allocation8 + $0x20] sm:$0xff]
    %v231 = vld [vmem:[#allocation8 + $0x28] sm:$0xff]
    %v232 = vld [vmem:[%s5] sm:$0x1]
    %v234 = vlaneseq
    %v235 = vshrl.u32 %v234, 7
    %v236 = vsub.s32 0, %v235
    %v237 = vrot.slane %v232, %v236
    %v247 = vcombine.low %v198, %v222
    %v248 = vcombine.low %v205, %v223
    %v250 = vunpack.c.l.s4 1983009808
    %v251 = vunpack.c.0.s8 %v250
    %v252 = vlaneseq
    %v253 = vshrl.u32 %v252, 7
    %v254 = vsub.s32 %v251, %v253
    %v255 = vrot.slane %v247, %v254
    %v257 = vunpack.c.l.s4 1983009808
    %v258 = vunpack.c.0.s8 %v257
    %v259 = vlaneseq
    %v260 = vshrl.u32 %v259, 7
    %v261 = vsub.s32 %v258, %v260
    %v262 = vrot.slane %v248, %v261
    %v263 = vcombine.low %v255, %v262
    %v264 = vcombine.low %v214, %v224
    %v265 = vcombine.low %v221, %v225
    %v267 = vunpack.c.l.s4 1983009808
    %v268 = vunpack.c.0.s8 %v267
    %v269 = vlaneseq
    %v270 = vshrl.u32 %v269, 7
    %v271 = vsub.s32 %v268, %v270
    %v272 = vrot.slane %v264, %v271
    %v274 = vunpack.c.l.s4 1983009808
    %v275 = vunpack.c.0.s8 %v274
    %v276 = vlaneseq
    %v277 = vshrl.u32 %v276, 7
    %v278 = vsub.s32 %v275, %v277
    %v279 = vrot.slane %v265, %v278
    %v280 = vcombine.low %v272, %v279
    %vm281 = vcmask 392192
    %v282 = vsel %vm281, %v263, 0
    %v284 = vsel %vm281, %v280, 0
    %286 = vmatprep.subr.mxu0 0.0
    %287 = vmatpush1.msra.mxu0 %v226
    %288 = vmatprep.subr.mxu0 0.0
    %289 = vmatpush1.msra.mxu0 %v227
    %290 = vmatprep.subr.mxu0 0.0
    %291 = vmatpush1.msra.mxu0 %v228
    %292 = vmatprep.subr.mxu0 0.0
    %293 = vmatpush1.msra.mxu0 %v229
    %294 = vmatprep.subr.mxu0 0.0
    %295 = vmatpush1.msra.mxu0 %v230
    %296 = vmatprep.subr.mxu0 0.0
    %297 = vmatpush1.msra.mxu0 %v231
    %298 = vmatprep.subr.mxu0 0.0
    %299 = vmatpush1.msra.mxu0 0.0
    %300 = vmatprep.subr.mxu0 0.0
    %301 = vmatpush1.msra.mxu0 0.0
    %302 = vmatprep.subr.mxu0 0.0
    %303 = vmatpush1.msra.mxu0 0.0
    %304 = vmatprep.subr.mxu0 0.0
    %305 = vmatpush1.msra.mxu0 0.0
    %306 = vmatprep.subr.mxu0 0.0
    %307 = vmatpush1.msra.mxu0 0.0
    %308 = vmatprep.subr.mxu0 0.0
    %309 = vmatpush1.msra.mxu0 0.0
    %310 = vmatprep.subr.mxu0 0.0
    %311 = vmatpush1.msra.mxu0 0.0
    %312 = vmatprep.subr.mxu0 0.0
    %313 = vmatpush1.msra.mxu0 0.0
    %314 = vmatprep.subr.mxu0 0.0
    %315 = vmatpush1.msra.mxu0 0.0
    %316 = vmatprep.subr.mxu0 0.0
    %317 = vmatpush1.msra.mxu0 0.0
    %318 = vmatprep.subr.mxu0 0.0
    %319 = vmatpush1.msra.mxu0 0.0
    %320 = vmatprep.subr.mxu0 0.0
    %321 = vmatpush1.msra.mxu0 0.0
    %322 = vmatprep.subr.mxu0 0.0
    %323 = vmatpush1.msra.mxu0 0.0
    %324 = vmatprep.subr.mxu0 0.0
    %325 = vmatpush1.msra.mxu0 0.0
    %326 = vmatprep.subr.mxu0 0.0
    %327 = vmatpush1.msra.mxu0 0.0
    %328 = vmatprep.subr.mxu0 0.0
    %329 = vmatpush1.msra.mxu0 0.0
    %330 = vmatprep.subr.mxu0 0.0
    %331 = vmatpush1.msra.mxu0 0.0
    %332 = vmatprep.subr.mxu0 0.0
    %333 = vmatpush1.msra.mxu0 0.0
    %334 = vmatprep.subr.mxu0 0.0
    %335 = vmatpush1.msra.mxu0 0.0
    %336 = vmatprep.subr.mxu0 0.0
    %337 = vmatpush1.msra.mxu0 0.0
    %338 = vmatprep.subr.mxu0 0.0
    %339 = vmatpush1.msra.mxu0 0.0
    %340 = vmatprep.subr.mxu0 0.0
    %341 = vmatpush1.msra.mxu0 0.0
    %342 = vmatprep.subr.mxu0 0.0
    %343 = vmatpush1.msra.mxu0 0.0
    %344 = vmatprep.subr.mxu0 0.0
    %345 = vmatpush1.msra.mxu0 0.0
    %346 = vmatprep.subr.mxu0 0.0
    %347 = vmatpush1.msra.mxu0 0.0
    %348 = vmatprep.subr.mxu0 0.0
    %349 = vmatpush1.msra.mxu0 0.0
    %350 = vmatprep.mubr.f32.mxu0 0.0
    %351 = vmatmul.mubr.f32.gmra.mrb[0].mxu0 %v282
    %v352 = vpop.f32.mrb[0].mxu0
    %v353 = vadd.f32 %v237, %v352
    %v354 = vpop.f32.mrb[0].mxu0
    %355 = vmatprep.mubr.f32.mxu0 0.0
    %356 = vmatmul.mubr.f32.gmra.mrb[0].mxu0 %v284
    %v357 = vpop.f32.mrb[0].mxu0
    %v358 = vadd.f32 %v237, %v357
    %v359 = vpop.f32.mrb[0].mxu0
    %360 = vdwg.mxu0
    %v363 = vcombine.high %v353, %v353
    %v365 = vunpack.c.l.s4 1983009808
    %v366 = vunpack.c.0.s8 %v365
    %v367 = vlaneseq
    %v368 = vshrl.u32 %v367, 7
    %v369 = vsub.s32 %v366, %v368
    %v370 = vrot.slane %v353, %v369
    %v372 = vunpack.c.l.s4 1983009808
    %v373 = vunpack.c.0.s8 %v372
    %v374 = vlaneseq
    %v375 = vshrl.u32 %v374, 7
    %v376 = vsub.s32 %v373, %v375
    %v377 = vrot.slane %v363, %v376
    %v378 = vcombine.high %v370, %v370
    %v379 = vcombine.high %v377, %v377
    %v380 = vcombine.high %v358, %v358
    %v382 = vunpack.c.l.s4 1983009808
    %v383 = vunpack.c.0.s8 %v382
    %v384 = vlaneseq
    %v385 = vshrl.u32 %v384, 7
    %v386 = vsub.s32 %v383, %v385
    %v387 = vrot.slane %v358, %v386
    %v389 = vunpack.c.l.s4 1983009808
    %v390 = vunpack.c.0.s8 %v389
    %v391 = vlaneseq
    %v392 = vshrl.u32 %v391, 7
    %v393 = vsub.s32 %v390, %v392
    %v394 = vrot.slane %v380, %v393
    %v395 = vcombine.high %v387, %v387
    %v396 = vcombine.high %v394, %v394
    %v405 = vld [vmem:[#allocation10] sm:$0xff]
    %v406 = vld [vmem:[#allocation10 + $0x8] sm:$0xff]
    %v407 = vld [vmem:[#allocation10 + $0x10] sm:$0xff]
    %v408 = vld [vmem:[#allocation10 + $0x18] sm:$0xff]
    %v409 = vld [vmem:[#allocation11] sm:$0xff]
    %v410 = vld [vmem:[#allocation11 + $0x8] sm:$0xff]
    %v411 = vld [vmem:[#allocation11 + $0x10] sm:$0xff]
    %v412 = vld [vmem:[#allocation11 + $0x18] sm:$0xff]
    %v413 = vld [vmem:[#allocation13] sm:$0xff]
    %v414 = vld [vmem:[#allocation13 + $0x8] sm:$0xff]
    %v415 = vld [vmem:[#allocation13 + $0x10] sm:$0xff]
    %v416 = vld [vmem:[#allocation13 + $0x18] sm:$0xff]
    %v417 = vld [vmem:[%s8] sm:$0x1]
    %v419 = vlaneseq
    %v420 = vshrl.u32 %v419, 7
    %v421 = vsub.s32 0, %v420
    %v422 = vrot.slane %v417, %v421
    %v424 = vld [vmem:[#allocation5] sm:$0x3]
    %v425 = vld [vmem:[#allocation5 + $0x2] sm:$0x3]
    %v426 = vld [vmem:[#allocation7] sm:$0x3]
    %v427 = vld [vmem:[#allocation7 + $0x2] sm:$0x3]
    %v430 = vrot.slane %v424, 1
    %vm431 = vcmask 1041409
    %v432 = vsel %vm431, %v425, %v430
    %vm433 = vcmask 261120
    %v434 = vsel %vm433, %v432, 0
    %436 = vmatprep.subr.mxu0 0.0
    %437 = vmatpush1.msra.mxu0 %v413
    %438 = vmatprep.subr.mxu0 0.0
    %439 = vmatpush1.msra.mxu0 %v414
    %440 = vmatprep.subr.mxu0 0.0
    %441 = vmatpush1.msra.mxu0 %v415
    %442 = vmatprep.subr.mxu0 0.0
    %443 = vmatpush1.msra.mxu0 %v416
    %444 = vmatprep.subr.mxu0 0.0
    %445 = vmatpush1.msra.mxu0 0.0
    %446 = vmatprep.subr.mxu0 0.0
    %447 = vmatpush1.msra.mxu0 0.0
    %448 = vmatprep.subr.mxu0 0.0
    %449 = vmatpush1.msra.mxu0 0.0
    %450 = vmatprep.subr.mxu0 0.0
    %451 = vmatpush1.msra.mxu0 0.0
    %452 = vmatprep.subr.mxu0 0.0
    %453 = vmatpush1.msra.mxu0 0.0
    %454 = vmatprep.subr.mxu0 0.0
    %455 = vmatpush1.msra.mxu0 0.0
    %456 = vmatprep.subr.mxu0 0.0
    %457 = vmatpush1.msra.mxu0 0.0
    %458 = vmatprep.subr.mxu0 0.0
    %459 = vmatpush1.msra.mxu0 0.0
    %460 = vmatprep.subr.mxu0 0.0
    %461 = vmatpush1.msra.mxu0 0.0
    %462 = vmatprep.subr.mxu0 0.0
    %463 = vmatpush1.msra.mxu0 0.0
    %464 = vmatprep.subr.mxu0 0.0
    %465 = vmatpush1.msra.mxu0 0.0
    %466 = vmatprep.subr.mxu0 0.0
    %467 = vmatpush1.msra.mxu0 0.0
    %468 = vmatprep.subr.mxu0 0.0
    %469 = vmatpush1.msra.mxu0 0.0
    %470 = vmatprep.subr.mxu0 0.0
    %471 = vmatpush1.msra.mxu0 0.0
    %472 = vmatprep.subr.mxu0 0.0
    %473 = vmatpush1.msra.mxu0 0.0
    %474 = vmatprep.subr.mxu0 0.0
    %475 = vmatpush1.msra.mxu0 0.0
    %476 = vmatprep.subr.mxu0 0.0
    %477 = vmatpush1.msra.mxu0 0.0
    %478 = vmatprep.subr.mxu0 0.0
    %479 = vmatpush1.msra.mxu0 0.0
    %480 = vmatprep.subr.mxu0 0.0
    %481 = vmatpush1.msra.mxu0 0.0
    %482 = vmatprep.subr.mxu0 0.0
    %483 = vmatpush1.msra.mxu0 0.0
    %484 = vmatprep.subr.mxu0 0.0
    %485 = vmatpush1.msra.mxu0 0.0
    %486 = vmatprep.subr.mxu0 0.0
    %487 = vmatpush1.msra.mxu0 0.0
    %488 = vmatprep.subr.mxu0 0.0
    %489 = vmatpush1.msra.mxu0 0.0
    %490 = vmatprep.subr.mxu0 0.0
    %491 = vmatpush1.msra.mxu0 0.0
    %492 = vmatprep.subr.mxu0 0.0
    %493 = vmatpush1.msra.mxu0 0.0
    %494 = vmatprep.subr.mxu0 0.0
    %495 = vmatpush1.msra.mxu0 0.0
    %496 = vmatprep.subr.mxu0 0.0
    %497 = vmatpush1.msra.mxu0 0.0
    %498 = vmatprep.subr.mxu0 0.0
    %499 = vmatpush1.msra.mxu0 0.0
    %500 = vmatprep.mubr.f32.mxu0 0.0
    %501 = vmatmul.mubr.f32.gmra.mrb[0].mxu0 %v434
    %v502 = vpop.f32.mrb[0].mxu0
    %v503 = vadd.f32 0.0, %v502
    %v504 = vpop.f32.mrb[0].mxu0
    %505 = vdwg.mxu0
    %v506 = vrot.slane %v425, 7
    %v507 = vsel %vm431, %v506, %v424
    %v508 = vsel %vm433, %v507, 0
    %510 = vmatprep.subr.mxu0 0.0
    %511 = vmatpush1.msra.mxu0 %v405
    %512 = vmatprep.subr.mxu0 0.0
    %513 = vmatpush1.msra.mxu0 %v406
    %514 = vmatprep.subr.mxu0 0.0
    %515 = vmatpush1.msra.mxu0 %v407
    %516 = vmatprep.subr.mxu0 0.0
    %517 = vmatpush1.msra.mxu0 %v408
    %518 = vmatprep.subr.mxu0 0.0
    %519 = vmatpush1.msra.mxu0 0.0
    %520 = vmatprep.subr.mxu0 0.0
    %521 = vmatpush1.msra.mxu0 0.0
    %522 = vmatprep.subr.mxu0 0.0
    %523 = vmatpush1.msra.mxu0 0.0
    %524 = vmatprep.subr.mxu0 0.0
    %525 = vmatpush1.msra.mxu0 0.0
    %526 = vmatprep.subr.mxu0 0.0
    %527 = vmatpush1.msra.mxu0 0.0
    %528 = vmatprep.subr.mxu0 0.0
    %529 = vmatpush1.msra.mxu0 0.0
    %530 = vmatprep.subr.mxu0 0.0
    %531 = vmatpush1.msra.mxu0 0.0
    %532 = vmatprep.subr.mxu0 0.0
    %533 = vmatpush1.msra.mxu0 0.0
    %534 = vmatprep.subr.mxu0 0.0
    %535 = vmatpush1.msra.mxu0 0.0
    %536 = vmatprep.subr.mxu0 0.0
    %537 = vmatpush1.msra.mxu0 0.0
    %538 = vmatprep.subr.mxu0 0.0
    %539 = vmatpush1.msra.mxu0 0.0
    %540 = vmatprep.subr.mxu0 0.0
    %541 = vmatpush1.msra.mxu0 0.0
    %542 = vmatprep.subr.mxu0 0.0
    %543 = vmatpush1.msra.mxu0 0.0
    %544 = vmatprep.subr.mxu0 0.0
    %545 = vmatpush1.msra.mxu0 0.0
    %546 = vmatprep.subr.mxu0 0.0
    %547 = vmatpush1.msra.mxu0 0.0
    %548 = vmatprep.subr.mxu0 0.0
    %549 = vmatpush1.msra.mxu0 0.0
    %550 = vmatprep.subr.mxu0 0.0
    %551 = vmatpush1.msra.mxu0 0.0
    %552 = vmatprep.subr.mxu0 0.0
    %553 = vmatpush1.msra.mxu0 0.0
    %554 = vmatprep.subr.mxu0 0.0
    %555 = vmatpush1.msra.mxu0 0.0
    %556 = vmatprep.subr.mxu0 0.0
    %557 = vmatpush1.msra.mxu0 0.0
    %558 = vmatprep.subr.mxu0 0.0
    %559 = vmatpush1.msra.mxu0 0.0
    %560 = vmatprep.subr.mxu0 0.0
    %561 = vmatpush1.msra.mxu0 0.0
    %562 = vmatprep.subr.mxu0 0.0
    %563 = vmatpush1.msra.mxu0 0.0
    %564 = vmatprep.subr.mxu0 0.0
    %565 = vmatpush1.msra.mxu0 0.0
    %566 = vmatprep.subr.mxu0 0.0
    %567 = vmatpush1.msra.mxu0 0.0
    %568 = vmatprep.subr.mxu0 0.0
    %569 = vmatpush1.msra.mxu0 0.0
    %570 = vmatprep.subr.mxu0 0.0
    %571 = vmatpush1.msra.mxu0 0.0
    %572 = vmatprep.subr.mxu0 0.0
    %573 = vmatpush1.msra.mxu0 0.0
    %574 = vmatprep.mubr.f32.mxu0 0.0
    %575 = vmatmul.mubr.f32.gmra.mrb[0].mxu0 %v508
    %v576 = vpop.f32.mrb[0].mxu0
    %v577 = vadd.f32 0.0, %v576
    %v578 = vpop.f32.mrb[0].mxu0
    %579 = vdwg.mxu0
    %v580 = vadd.f32 %v370, %v577
    %v581 = vxor.u32 %v580, 2147483648
    %v582 = vmul.f32 %v581, 1.442695
    %v583 = vpow.pop %v582
    %v584 = vadd.f32 %v583, 1.0
    %v585 = vrcp.pop %v584
    %v586 = vmul.f32 1.0, %v585
    %v587 = vtanh.pop %v580
    %v591 = vunpack.c.l.s4 1983009808
    %v592 = vunpack.c.0.s8 %v591
    %v593 = vlaneseq
    %v594 = vshrl.u32 %v593, 7
    %v595 = vsub.s32 %v592, %v594
    %v596 = vrot.slane %v426, %v595
    %v598 = vunpack.c.l.s4 1983009808
    %v599 = vunpack.c.0.s8 %v598
    %v600 = vlaneseq
    %v601 = vshrl.u32 %v600, 7
    %v602 = vsub.s32 %v599, %v601
    %v603 = vrot.slane %v427, %v602
    %vm604 = vcmask 1044484
    %v605 = vsel %vm604, %v596, %v596
    %vm606 = vcmask 1046534
    %v607 = vsel %vm606, %v596, %v605
    %v608 = vrot.slane %v603, 7
    %v609 = vsel %vm431, %v608, %v607
    %vm610 = vcmask 1043459
    %v611 = vsel %vm610, %v608, %v609
    %vm612 = vcmask 1045509
    %v613 = vsel %vm612, %v608, %v611
    %vm614 = vcmask 1047559
    %v615 = vsel %vm614, %v608, %v613
    %616 = vrot.lane.b32.xlu0 %v615, 32
    %v617 = vpop.permute.xlu0 %616
    %v619 = vmul.f32 %v586, %v617
    %621 = vrot.lane.b32.xlu0 %v587, 32
    %v622 = vpop.permute.xlu0 %621
    %v624 = vmul.f32 %v586, %v622
    %626 = vrot.lane.b32.xlu0 %v624, 32
    %v627 = vpop.permute.xlu0 %626
    %v629 = vadd.f32 %v619, %v627
    %v630 = vtanh.pop %v629
    %632 = vrot.lane.b32.xlu0 %v630, 32
    %v633 = vpop.permute.xlu0 %632
    %v635 = vmul.f32 %v586, %v633
    %v638 = vunpack.c.l.s4 1983009808
    %v639 = vunpack.c.0.s8 %v638
    %v640 = vlaneseq
    %v641 = vshrl.u32 %v640, 7
    %v642 = vsub.s32 %v639, %v641
    %v643 = vrot.slane %v635, %v642
    %644 = vrot.lane.b32.xlu0 %v643, 64
    %v645 = vpop.permute.xlu0 %644
    %v646 = vsel %vm433, %v645, 0
    %648 = vmatprep.subr.mxu0 0.0
    %649 = vmatpush1.msra.mxu0 %v409
    %650 = vmatprep.subr.mxu0 0.0
    %651 = vmatpush1.msra.mxu0 %v410
    %652 = vmatprep.subr.mxu0 0.0
    %653 = vmatpush1.msra.mxu0 %v411
    %654 = vmatprep.subr.mxu0 0.0
    %655 = vmatpush1.msra.mxu0 %v412
    %656 = vmatprep.subr.mxu0 0.0
    %657 = vmatpush1.msra.mxu0 0.0
    %658 = vmatprep.subr.mxu0 0.0
    %659 = vmatpush1.msra.mxu0 0.0
    %660 = vmatprep.subr.mxu0 0.0
    %661 = vmatpush1.msra.mxu0 0.0
    %662 = vmatprep.subr.mxu0 0.0
    %663 = vmatpush1.msra.mxu0 0.0
    %664 = vmatprep.subr.mxu0 0.0
    %665 = vmatpush1.msra.mxu0 0.0
    %666 = vmatprep.subr.mxu0 0.0
    %667 = vmatpush1.msra.mxu0 0.0
    %668 = vmatprep.subr.mxu0 0.0
    %669 = vmatpush1.msra.mxu0 0.0
    %670 = vmatprep.subr.mxu0 0.0
    %671 = vmatpush1.msra.mxu0 0.0
    %672 = vmatprep.subr.mxu0 0.0
    %673 = vmatpush1.msra.mxu0 0.0
    %674 = vmatprep.subr.mxu0 0.0
    %675 = vmatpush1.msra.mxu0 0.0
    %676 = vmatprep.subr.mxu0 0.0
    %677 = vmatpush1.msra.mxu0 0.0
    %678 = vmatprep.subr.mxu0 0.0
    %679 = vmatpush1.msra.mxu0 0.0
    %680 = vmatprep.subr.mxu0 0.0
    %681 = vmatpush1.msra.mxu0 0.0
    %682 = vmatprep.subr.mxu0 0.0
    %683 = vmatpush1.msra.mxu0 0.0
    %684 = vmatprep.subr.mxu0 0.0
    %685 = vmatpush1.msra.mxu0 0.0
    %686 = vmatprep.subr.mxu0 0.0
    %687 = vmatpush1.msra.mxu0 0.0
    %688 = vmatprep.subr.mxu0 0.0
    %689 = vmatpush1.msra.mxu0 0.0
    %690 = vmatprep.subr.mxu0 0.0
    %691 = vmatpush1.msra.mxu0 0.0
    %692 = vmatprep.subr.mxu0 0.0
    %693 = vmatpush1.msra.mxu0 0.0
    %694 = vmatprep.subr.mxu0 0.0
    %695 = vmatpush1.msra.mxu0 0.0
    %696 = vmatprep.subr.mxu0 0.0
    %697 = vmatpush1.msra.mxu0 0.0
    %698 = vmatprep.subr.mxu0 0.0
    %699 = vmatpush1.msra.mxu0 0.0
    %700 = vmatprep.subr.mxu0 0.0
    %701 = vmatpush1.msra.mxu0 0.0
    %702 = vmatprep.subr.mxu0 0.0
    %703 = vmatpush1.msra.mxu0 0.0
    %704 = vmatprep.subr.mxu0 0.0
    %705 = vmatpush1.msra.mxu0 0.0
    %706 = vmatprep.subr.mxu0 0.0
    %707 = vmatpush1.msra.mxu0 0.0
    %708 = vmatprep.subr.mxu0 0.0
    %709 = vmatpush1.msra.mxu0 0.0
    %710 = vmatprep.subr.mxu0 0.0
    %711 = vmatpush1.msra.mxu0 0.0
    %712 = vmatprep.mubr.f32.mxu0 0.0
    %713 = vmatmul.mubr.f32.gmra.mrb[0].mxu0 %v646
    %v714 = vpop.f32.mrb[0].mxu0
    %v715 = vadd.f32 %v503, %v714
    %v716 = vpop.f32.mrb[0].mxu0
    %717 = vdwg.mxu0
    %v718 = vadd.f32 %v715, %v422
    %v719 = vxor.u32 %v718, 2147483648
    %v720 = vmul.f32 %v719, 1.442695
    %v721 = vpow.pop %v720
    %v722 = vadd.f32 %v721, 1.0
    %v723 = vrcp.pop %v722
    %v724 = vmul.f32 1.0, %v723
    %v725 = vtanh.pop %v718
    %v726 = vrot.slane %v426, 1
    %v727 = vsel %vm431, %v427, %v726
    %728 = vrot.lane.b32.xlu0 %v727, 32
    %v729 = vpop.permute.xlu0 %728
    %v731 = vmul.f32 %v724, %v729
    %733 = vrot.lane.b32.xlu0 %v725, 32
    %v734 = vpop.permute.xlu0 %733
    %v736 = vmul.f32 %v724, %v734
    %738 = vrot.lane.b32.xlu0 %v736, 32
    %v739 = vpop.permute.xlu0 %738
    %v741 = vadd.f32 %v731, %v739
    %v742 = vtanh.pop %v741
    %744 = vrot.lane.b32.xlu0 %v742, 32
    %v745 = vpop.permute.xlu0 %744
    %v747 = vmul.f32 %v724, %v745
    %749 = vrot.lane.b32.xlu0 %v747, 64
    %v750 = vpop.permute.xlu0 %749
    %v751 = vsel %vm433, %v750, 0
    %753 = vmatprep.subr.mxu0 0.0
    %754 = vmatpush1.msra.mxu0 %v413
    %755 = vmatprep.subr.mxu0 0.0
    %756 = vmatpush1.msra.mxu0 %v414
    %757 = vmatprep.subr.mxu0 0.0
    %758 = vmatpush1.msra.mxu0 %v415
    %759 = vmatprep.subr.mxu0 0.0
    %760 = vmatpush1.msra.mxu0 %v416
    %761 = vmatprep.subr.mxu0 0.0
    %762 = vmatpush1.msra.mxu0 0.0
    %763 = vmatprep.subr.mxu0 0.0
    %764 = vmatpush1.msra.mxu0 0.0
    %765 = vmatprep.subr.mxu0 0.0
    %766 = vmatpush1.msra.mxu0 0.0
    %767 = vmatprep.subr.mxu0 0.0
    %768 = vmatpush1.msra.mxu0 0.0
    %769 = vmatprep.subr.mxu0 0.0
    %770 = vmatpush1.msra.mxu0 0.0
    %771 = vmatprep.subr.mxu0 0.0
    %772 = vmatpush1.msra.mxu0 0.0
    %773 = vmatprep.subr.mxu0 0.0
    %774 = vmatpush1.msra.mxu0 0.0
    %775 = vmatprep.subr.mxu0 0.0
    %776 = vmatpush1.msra.mxu0 0.0
    %777 = vmatprep.subr.mxu0 0.0
    %778 = vmatpush1.msra.mxu0 0.0
    %779 = vmatprep.subr.mxu0 0.0
    %780 = vmatpush1.msra.mxu0 0.0
    %781 = vmatprep.subr.mxu0 0.0
    %782 = vmatpush1.msra.mxu0 0.0
    %783 = vmatprep.subr.mxu0 0.0
    %784 = vmatpush1.msra.mxu0 0.0
    %785 = vmatprep.subr.mxu0 0.0
    %786 = vmatpush1.msra.mxu0 0.0
    %787 = vmatprep.subr.mxu0 0.0
    %788 = vmatpush1.msra.mxu0 0.0
    %789 = vmatprep.subr.mxu0 0.0
    %790 = vmatpush1.msra.mxu0 0.0
    %791 = vmatprep.subr.mxu0 0.0
    %792 = vmatpush1.msra.mxu0 0.0
    %793 = vmatprep.subr.mxu0 0.0
    %794 = vmatpush1.msra.mxu0 0.0
    %795 = vmatprep.subr.mxu0 0.0
    %796 = vmatpush1.msra.mxu0 0.0
    %797 = vmatprep.subr.mxu0 0.0
    %798 = vmatpush1.msra.mxu0 0.0
    %799 = vmatprep.subr.mxu0 0.0
    %800 = vmatpush1.msra.mxu0 0.0
    %801 = vmatprep.subr.mxu0 0.0
    %802 = vmatpush1.msra.mxu0 0.0
    %803 = vmatprep.subr.mxu0 0.0
    %804 = vmatpush1.msra.mxu0 0.0
    %805 = vmatprep.subr.mxu0 0.0
    %806 = vmatpush1.msra.mxu0 0.0
    %807 = vmatprep.subr.mxu0 0.0
    %808 = vmatpush1.msra.mxu0 0.0
    %809 = vmatprep.subr.mxu0 0.0
    %810 = vmatpush1.msra.mxu0 0.0
    %811 = vmatprep.subr.mxu0 0.0
    %812 = vmatpush1.msra.mxu0 0.0
    %813 = vmatprep.subr.mxu0 0.0
    %814 = vmatpush1.msra.mxu0 0.0
    %815 = vmatprep.subr.mxu0 0.0
    %816 = vmatpush1.msra.mxu0 0.0
    %817 = vmatprep.mubr.f32.mxu0 0.0
    %818 = vmatmul.mubr.f32.gmra.mrb[0].mxu0 %v751
    %v819 = vpop.f32.mrb[0].mxu0
    %v820 = vadd.f32 0.0, %v819
    %v821 = vpop.f32.mrb[0].mxu0
    %822 = vdwg.mxu0
    %823 = vmatprep.subr.mxu0 0.0
    %824 = vmatpush1.msra.mxu0 %v405
    %825 = vmatprep.subr.mxu0 0.0
    %826 = vmatpush1.msra.mxu0 %v406
    %827 = vmatprep.subr.mxu0 0.0
    %828 = vmatpush1.msra.mxu0 %v407
    %829 = vmatprep.subr.mxu0 0.0
    %830 = vmatpush1.msra.mxu0 %v408
    %831 = vmatprep.subr.mxu0 0.0
    %832 = vmatpush1.msra.mxu0 0.0
    %833 = vmatprep.subr.mxu0 0.0
    %834 = vmatpush1.msra.mxu0 0.0
    %835 = vmatprep.subr.mxu0 0.0
    %836 = vmatpush1.msra.mxu0 0.0
    %837 = vmatprep.subr.mxu0 0.0
    %838 = vmatpush1.msra.mxu0 0.0
    %839 = vmatprep.subr.mxu0 0.0
    %840 = vmatpush1.msra.mxu0 0.0
    %841 = vmatprep.subr.mxu0 0.0
    %842 = vmatpush1.msra.mxu0 0.0
    %843 = vmatprep.subr.mxu0 0.0
    %844 = vmatpush1.msra.mxu0 0.0
    %845 = vmatprep.subr.mxu0 0.0
    %846 = vmatpush1.msra.mxu0 0.0
    %847 = vmatprep.subr.mxu0 0.0
    %848 = vmatpush1.msra.mxu0 0.0
    %849 = vmatprep.subr.mxu0 0.0
    %850 = vmatpush1.msra.mxu0 0.0
    %851 = vmatprep.subr.mxu0 0.0
    %852 = vmatpush1.msra.mxu0 0.0
    %853 = vmatprep.subr.mxu0 0.0
    %854 = vmatpush1.msra.mxu0 0.0
    %855 = vmatprep.subr.mxu0 0.0
    %856 = vmatpush1.msra.mxu0 0.0
    %857 = vmatprep.subr.mxu0 0.0
    %858 = vmatpush1.msra.mxu0 0.0
    %859 = vmatprep.subr.mxu0 0.0
    %860 = vmatpush1.msra.mxu0 0.0
    %861 = vmatprep.subr.mxu0 0.0
    %862 = vmatpush1.msra.mxu0 0.0
    %863 = vmatprep.subr.mxu0 0.0
    %864 = vmatpush1.msra.mxu0 0.0
    %865 = vmatprep.subr.mxu0 0.0
    %866 = vmatpush1.msra.mxu0 0.0
    %867 = vmatprep.subr.mxu0 0.0
    %868 = vmatpush1.msra.mxu0 0.0
    %869 = vmatprep.subr.mxu0 0.0
    %870 = vmatpush1.msra.mxu0 0.0
    %871 = vmatprep.subr.mxu0 0.0
    %872 = vmatpush1.msra.mxu0 0.0
    %873 = vmatprep.subr.mxu0 0.0
    %874 = vmatpush1.msra.mxu0 0.0
    %875 = vmatprep.subr.mxu0 0.0
    %876 = vmatpush1.msra.mxu0 0.0
    %877 = vmatprep.subr.mxu0 0.0
    %878 = vmatpush1.msra.mxu0 0.0
    %879 = vmatprep.subr.mxu0 0.0
    %880 = vmatpush1.msra.mxu0 0.0
    %881 = vmatprep.subr.mxu0 0.0
    %882 = vmatpush1.msra.mxu0 0.0
    %883 = vmatprep.subr.mxu0 0.0
    %884 = vmatpush1.msra.mxu0 0.0
    %885 = vmatprep.subr.mxu0 0.0
    %886 = vmatpush1.msra.mxu0 0.0
    %887 = vmatprep.mubr.f32.mxu0 0.0
    %888 = vmatmul.mubr.f32.gmra.mrb[0].mxu0 %v646
    %v889 = vpop.f32.mrb[0].mxu0
    %v890 = vadd.f32 0.0, %v889
    %v891 = vpop.f32.mrb[0].mxu0
    %892 = vdwg.mxu0
    %v893 = vadd.f32 %v378, %v890
    %v894 = vxor.u32 %v893, 2147483648
    %v895 = vmul.f32 %v894, 1.442695
    %v896 = vpow.pop %v895
    %v897 = vadd.f32 %v896, 1.0
    %v898 = vrcp.pop %v897
    %v899 = vmul.f32 1.0, %v898
    %v900 = vtanh.pop %v893
    %v901 = vmul.f32 %v899, %v629
    %903 = vrot.lane.b32.xlu0 %v900, 32
    %v904 = vpop.permute.xlu0 %903
    %v906 = vmul.f32 %v899, %v904
    %908 = vrot.lane.b32.xlu0 %v906, 32
    %v909 = vpop.permute.xlu0 %908
    %v911 = vadd.f32 %v901, %v909
    %v912 = vtanh.pop %v911
    %914 = vrot.lane.b32.xlu0 %v912, 32
    %v915 = vpop.permute.xlu0 %914
    %v917 = vmul.f32 %v899, %v915
    %v920 = vunpack.c.l.s4 1983009808
    %v921 = vunpack.c.0.s8 %v920
    %v922 = vlaneseq
    %v923 = vshrl.u32 %v922, 7
    %v924 = vsub.s32 %v921, %v923
    %v925 = vrot.slane %v917, %v924
    %926 = vrot.lane.b32.xlu0 %v925, 64
    %v927 = vpop.permute.xlu0 %926
    %v928 = vsel %vm433, %v927, 0
    %930 = vmatprep.subr.mxu0 0.0
    %931 = vmatpush1.msra.mxu0 %v409
    %932 = vmatprep.subr.mxu0 0.0
    %933 = vmatpush1.msra.mxu0 %v410
    %934 = vmatprep.subr.mxu0 0.0
    %935 = vmatpush1.msra.mxu0 %v411
    %936 = vmatprep.subr.mxu0 0.0
    %937 = vmatpush1.msra.mxu0 %v412
    %938 = vmatprep.subr.mxu0 0.0
    %939 = vmatpush1.msra.mxu0 0.0
    %940 = vmatprep.subr.mxu0 0.0
    %941 = vmatpush1.msra.mxu0 0.0
    %942 = vmatprep.subr.mxu0 0.0
    %943 = vmatpush1.msra.mxu0 0.0
    %944 = vmatprep.subr.mxu0 0.0
    %945 = vmatpush1.msra.mxu0 0.0
    %946 = vmatprep.subr.mxu0 0.0
    %947 = vmatpush1.msra.mxu0 0.0
    %948 = vmatprep.subr.mxu0 0.0
    %949 = vmatpush1.msra.mxu0 0.0
    %950 = vmatprep.subr.mxu0 0.0
    %951 = vmatpush1.msra.mxu0 0.0
    %952 = vmatprep.subr.mxu0 0.0
    %953 = vmatpush1.msra.mxu0 0.0
    %954 = vmatprep.subr.mxu0 0.0
    %955 = vmatpush1.msra.mxu0 0.0
    %956 = vmatprep.subr.mxu0 0.0
    %957 = vmatpush1.msra.mxu0 0.0
    %958 = vmatprep.subr.mxu0 0.0
    %959 = vmatpush1.msra.mxu0 0.0
    %960 = vmatprep.subr.mxu0 0.0
    %961 = vmatpush1.msra.mxu0 0.0
    %962 = vmatprep.subr.mxu0 0.0
    %963 = vmatpush1.msra.mxu0 0.0
    %964 = vmatprep.subr.mxu0 0.0
    %965 = vmatpush1.msra.mxu0 0.0
    %966 = vmatprep.subr.mxu0 0.0
    %967 = vmatpush1.msra.mxu0 0.0
    %968 = vmatprep.subr.mxu0 0.0
    %969 = vmatpush1.msra.mxu0 0.0
    %970 = vmatprep.subr.mxu0 0.0
    %971 = vmatpush1.msra.mxu0 0.0
    %972 = vmatprep.subr.mxu0 0.0
    %973 = vmatpush1.msra.mxu0 0.0
    %974 = vmatprep.subr.mxu0 0.0
    %975 = vmatpush1.msra.mxu0 0.0
    %976 = vmatprep.subr.mxu0 0.0
    %977 = vmatpush1.msra.mxu0 0.0
    %978 = vmatprep.subr.mxu0 0.0
    %979 = vmatpush1.msra.mxu0 0.0
    %980 = vmatprep.subr.mxu0 0.0
    %981 = vmatpush1.msra.mxu0 0.0
    %982 = vmatprep.subr.mxu0 0.0
    %983 = vmatpush1.msra.mxu0 0.0
    %984 = vmatprep.subr.mxu0 0.0
    %985 = vmatpush1.msra.mxu0 0.0
    %986 = vmatprep.subr.mxu0 0.0
    %987 = vmatpush1.msra.mxu0 0.0
    %988 = vmatprep.subr.mxu0 0.0
    %989 = vmatpush1.msra.mxu0 0.0
    %990 = vmatprep.subr.mxu0 0.0
    %991 = vmatpush1.msra.mxu0 0.0
    %992 = vmatprep.subr.mxu0 0.0
    %993 = vmatpush1.msra.mxu0 0.0
    %994 = vmatprep.mubr.f32.mxu0 0.0
    %995 = vmatmul.mubr.f32.gmra.mrb[0].mxu0 %v928
    %v996 = vpop.f32.mrb[0].mxu0
    %v997 = vadd.f32 %v820, %v996
    %v998 = vpop.f32.mrb[0].mxu0
    %999 = vdwg.mxu0
    %v1000 = vadd.f32 %v997, %v422
    %v1001 = vxor.u32 %v1000, 2147483648
    %v1002 = vmul.f32 %v1001, 1.442695
    %v1003 = vpow.pop %v1002
    %v1004 = vadd.f32 %v1003, 1.0
    %v1005 = vrcp.pop %v1004
    %v1006 = vmul.f32 1.0, %v1005
    %v1007 = vtanh.pop %v1000
    %v1008 = vmul.f32 %v1006, %v741
    %1010 = vrot.lane.b32.xlu0 %v1007, 32
    %v1011 = vpop.permute.xlu0 %1010
    %v1013 = vmul.f32 %v1006, %v1011
    %1015 = vrot.lane.b32.xlu0 %v1013, 32
    %v1016 = vpop.permute.xlu0 %1015
    %v1018 = vadd.f32 %v1008, %v1016
    %v1019 = vtanh.pop %v1018
    %1021 = vrot.lane.b32.xlu0 %v1019, 32
    %v1022 = vpop.permute.xlu0 %1021
    %v1024 = vmul.f32 %v1006, %v1022
    %1026 = vrot.lane.b32.xlu0 %v1024, 64
    %v1027 = vpop.permute.xlu0 %1026
    %v1028 = vsel %vm433, %v1027, 0
    %1030 = vmatprep.subr.mxu0 0.0
    %1031 = vmatpush1.msra.mxu0 %v413
    %1032 = vmatprep.subr.mxu0 0.0
    %1033 = vmatpush1.msra.mxu0 %v414
    %1034 = vmatprep.subr.mxu0 0.0
    %1035 = vmatpush1.msra.mxu0 %v415
    %1036 = vmatprep.subr.mxu0 0.0
    %1037 = vmatpush1.msra.mxu0 %v416
    %1038 = vmatprep.subr.mxu0 0.0
    %1039 = vmatpush1.msra.mxu0 0.0
    %1040 = vmatprep.subr.mxu0 0.0
    %1041 = vmatpush1.msra.mxu0 0.0
    %1042 = vmatprep.subr.mxu0 0.0
    %1043 = vmatpush1.msra.mxu0 0.0
    %1044 = vmatprep.subr.mxu0 0.0
    %1045 = vmatpush1.msra.mxu0 0.0
    %1046 = vmatprep.subr.mxu0 0.0
    %1047 = vmatpush1.msra.mxu0 0.0
    %1048 = vmatprep.subr.mxu0 0.0
    %1049 = vmatpush1.msra.mxu0 0.0
    %1050 = vmatprep.subr.mxu0 0.0
    %1051 = vmatpush1.msra.mxu0 0.0
    %1052 = vmatprep.subr.mxu0 0.0
    %1053 = vmatpush1.msra.mxu0 0.0
    %1054 = vmatprep.subr.mxu0 0.0
    %1055 = vmatpush1.msra.mxu0 0.0
    %1056 = vmatprep.subr.mxu0 0.0
    %1057 = vmatpush1.msra.mxu0 0.0
    %1058 = vmatprep.subr.mxu0 0.0
    %1059 = vmatpush1.msra.mxu0 0.0
    %1060 = vmatprep.subr.mxu0 0.0
    %1061 = vmatpush1.msra.mxu0 0.0
    %1062 = vmatprep.subr.mxu0 0.0
    %1063 = vmatpush1.msra.mxu0 0.0
    %1064 = vmatprep.subr.mxu0 0.0
    %1065 = vmatpush1.msra.mxu0 0.0
    %1066 = vmatprep.subr.mxu0 0.0
    %1067 = vmatpush1.msra.mxu0 0.0
    %1068 = vmatprep.subr.mxu0 0.0
    %1069 = vmatpush1.msra.mxu0 0.0
    %1070 = vmatprep.subr.mxu0 0.0
    %1071 = vmatpush1.msra.mxu0 0.0
    %1072 = vmatprep.subr.mxu0 0.0
    %1073 = vmatpush1.msra.mxu0 0.0
    %1074 = vmatprep.subr.mxu0 0.0
    %1075 = vmatpush1.msra.mxu0 0.0
    %1076 = vmatprep.subr.mxu0 0.0
    %1077 = vmatpush1.msra.mxu0 0.0
    %1078 = vmatprep.subr.mxu0 0.0
    %1079 = vmatpush1.msra.mxu0 0.0
    %1080 = vmatprep.subr.mxu0 0.0
    %1081 = vmatpush1.msra.mxu0 0.0
    %1082 = vmatprep.subr.mxu0 0.0
    %1083 = vmatpush1.msra.mxu0 0.0
    %1084 = vmatprep.subr.mxu0 0.0
    %1085 = vmatpush1.msra.mxu0 0.0
    %1086 = vmatprep.subr.mxu0 0.0
    %1087 = vmatpush1.msra.mxu0 0.0
    %1088 = vmatprep.subr.mxu0 0.0
    %1089 = vmatpush1.msra.mxu0 0.0
    %1090 = vmatprep.subr.mxu0 0.0
    %1091 = vmatpush1.msra.mxu0 0.0
    %1092 = vmatprep.subr.mxu0 0.0
    %1093 = vmatpush1.msra.mxu0 0.0
    %1094 = vmatprep.mubr.f32.mxu0 0.0
    %1095 = vmatmul.mubr.f32.gmra.mrb[0].mxu0 %v1028
    %v1096 = vpop.f32.mrb[0].mxu0
    %v1097 = vadd.f32 0.0, %v1096
    %v1098 = vpop.f32.mrb[0].mxu0
    %1099 = vdwg.mxu0
    %1100 = vmatprep.subr.mxu0 0.0
    %1101 = vmatpush1.msra.mxu0 %v405
    %1102 = vmatprep.subr.mxu0 0.0
    %1103 = vmatpush1.msra.mxu0 %v406
    %1104 = vmatprep.subr.mxu0 0.0
    %1105 = vmatpush1.msra.mxu0 %v407
    %1106 = vmatprep.subr.mxu0 0.0
    %1107 = vmatpush1.msra.mxu0 %v408
    %1108 = vmatprep.subr.mxu0 0.0
    %1109 = vmatpush1.msra.mxu0 0.0
    %1110 = vmatprep.subr.mxu0 0.0
    %1111 = vmatpush1.msra.mxu0 0.0
    %1112 = vmatprep.subr.mxu0 0.0
    %1113 = vmatpush1.msra.mxu0 0.0
    %1114 = vmatprep.subr.mxu0 0.0
    %1115 = vmatpush1.msra.mxu0 0.0
    %1116 = vmatprep.subr.mxu0 0.0
    %1117 = vmatpush1.msra.mxu0 0.0
    %1118 = vmatprep.subr.mxu0 0.0
    %1119 = vmatpush1.msra.mxu0 0.0
    %1120 = vmatprep.subr.mxu0 0.0
    %1121 = vmatpush1.msra.mxu0 0.0
    %1122 = vmatprep.subr.mxu0 0.0
    %1123 = vmatpush1.msra.mxu0 0.0
    %1124 = vmatprep.subr.mxu0 0.0
    %1125 = vmatpush1.msra.mxu0 0.0
    %1126 = vmatprep.subr.mxu0 0.0
    %1127 = vmatpush1.msra.mxu0 0.0
    %1128 = vmatprep.subr.mxu0 0.0
    %1129 = vmatpush1.msra.mxu0 0.0
    %1130 = vmatprep.subr.mxu0 0.0
    %1131 = vmatpush1.msra.mxu0 0.0
    %1132 = vmatprep.subr.mxu0 0.0
    %1133 = vmatpush1.msra.mxu0 0.0
    %1134 = vmatprep.subr.mxu0 0.0
    %1135 = vmatpush1.msra.mxu0 0.0
    %1136 = vmatprep.subr.mxu0 0.0
    %1137 = vmatpush1.msra.mxu0 0.0
    %1138 = vmatprep.subr.mxu0 0.0
    %1139 = vmatpush1.msra.mxu0 0.0
    %1140 = vmatprep.subr.mxu0 0.0
    %1141 = vmatpush1.msra.mxu0 0.0
    %1142 = vmatprep.subr.mxu0 0.0
    %1143 = vmatpush1.msra.mxu0 0.0
    %1144 = vmatprep.subr.mxu0 0.0
    %1145 = vmatpush1.msra.mxu0 0.0
    %1146 = vmatprep.subr.mxu0 0.0
    %1147 = vmatpush1.msra.mxu0 0.0
    %1148 = vmatprep.subr.mxu0 0.0
    %1149 = vmatpush1.msra.mxu0 0.0
    %1150 = vmatprep.subr.mxu0 0.0
    %1151 = vmatpush1.msra.mxu0 0.0
    %1152 = vmatprep.subr.mxu0 0.0
    %1153 = vmatpush1.msra.mxu0 0.0
    %1154 = vmatprep.subr.mxu0 0.0
    %1155 = vmatpush1.msra.mxu0 0.0
    %1156 = vmatprep.subr.mxu0 0.0
    %1157 = vmatpush1.msra.mxu0 0.0
    %1158 = vmatprep.subr.mxu0 0.0
    %1159 = vmatpush1.msra.mxu0 0.0
    %1160 = vmatprep.subr.mxu0 0.0
    %1161 = vmatpush1.msra.mxu0 0.0
    %1162 = vmatprep.subr.mxu0 0.0
    %1163 = vmatpush1.msra.mxu0 0.0
    %1164 = vmatprep.mubr.f32.mxu0 0.0
    %1165 = vmatmul.mubr.f32.gmra.mrb[0].mxu0 %v928
    %v1166 = vpop.f32.mrb[0].mxu0
    %v1167 = vadd.f32 0.0, %v1166
    %v1168 = vpop.f32.mrb[0].mxu0
    %1169 = vdwg.mxu0
    %v1170 = vadd.f32 %v377, %v1167
    %v1171 = vxor.u32 %v1170, 2147483648
    %v1172 = vmul.f32 %v1171, 1.442695
    %v1173 = vpow.pop %v1172
    %v1174 = vadd.f32 %v1173, 1.0
    %v1175 = vrcp.pop %v1174
    %v1176 = vmul.f32 1.0, %v1175
    %v1177 = vtanh.pop %v1170
    %v1178 = vmul.f32 %v1176, %v911
    %1180 = vrot.lane.b32.xlu0 %v1177, 32
    %v1181 = vpop.permute.xlu0 %1180
    %v1183 = vmul.f32 %v1176, %v1181
    %1185 = vrot.lane.b32.xlu0 %v1183, 32
    %v1186 = vpop.permute.xlu0 %1185
    %v1188 = vadd.f32 %v1178, %v1186
    %v1189 = vtanh.pop %v1188
    %1191 = vrot.lane.b32.xlu0 %v1189, 32
    %v1192 = vpop.permute.xlu0 %1191
    %v1194 = vmul.f32 %v1176, %v1192
    %v1197 = vunpack.c.l.s4 1983009808
    %v1198 = vunpack.c.0.s8 %v1197
    %v1199 = vlaneseq
    %v1200 = vshrl.u32 %v1199, 7
    %v1201 = vsub.s32 %v1198, %v1200
    %v1202 = vrot.slane %v1194, %v1201
    %1203 = vrot.lane.b32.xlu0 %v1202, 64
    %v1204 = vpop.permute.xlu0 %1203
    %v1205 = vsel %vm433, %v1204, 0
    %1207 = vmatprep.subr.mxu0 0.0
    %1208 = vmatpush1.msra.mxu0 %v409
    %1209 = vmatprep.subr.mxu0 0.0
    %1210 = vmatpush1.msra.mxu0 %v410
    %1211 = vmatprep.subr.mxu0 0.0
    %1212 = vmatpush1.msra.mxu0 %v411
    %1213 = vmatprep.subr.mxu0 0.0
    %1214 = vmatpush1.msra.mxu0 %v412
    %1215 = vmatprep.subr.mxu0 0.0
    %1216 = vmatpush1.msra.mxu0 0.0
    %1217 = vmatprep.subr.mxu0 0.0
    %1218 = vmatpush1.msra.mxu0 0.0
    %1219 = vmatprep.subr.mxu0 0.0
    %1220 = vmatpush1.msra.mxu0 0.0
    %1221 = vmatprep.subr.mxu0 0.0
    %1222 = vmatpush1.msra.mxu0 0.0
    %1223 = vmatprep.subr.mxu0 0.0
    %1224 = vmatpush1.msra.mxu0 0.0
    %1225 = vmatprep.subr.mxu0 0.0
    %1226 = vmatpush1.msra.mxu0 0.0
    %1227 = vmatprep.subr.mxu0 0.0
    %1228 = vmatpush1.msra.mxu0 0.0
    %1229 = vmatprep.subr.mxu0 0.0
    %1230 = vmatpush1.msra.mxu0 0.0
    %1231 = vmatprep.subr.mxu0 0.0
    %1232 = vmatpush1.msra.mxu0 0.0
    %1233 = vmatprep.subr.mxu0 0.0
    %1234 = vmatpush1.msra.mxu0 0.0
    %1235 = vmatprep.subr.mxu0 0.0
    %1236 = vmatpush1.msra.mxu0 0.0
    %1237 = vmatprep.subr.mxu0 0.0
    %1238 = vmatpush1.msra.mxu0 0.0
    %1239 = vmatprep.subr.mxu0 0.0
    %1240 = vmatpush1.msra.mxu0 0.0
    %1241 = vmatprep.subr.mxu0 0.0
    %1242 = vmatpush1.msra.mxu0 0.0
    %1243 = vmatprep.subr.mxu0 0.0
    %1244 = vmatpush1.msra.mxu0 0.0
    %1245 = vmatprep.subr.mxu0 0.0
    %1246 = vmatpush1.msra.mxu0 0.0
    %1247 = vmatprep.subr.mxu0 0.0
    %1248 = vmatpush1.msra.mxu0 0.0
    %1249 = vmatprep.subr.mxu0 0.0
    %1250 = vmatpush1.msra.mxu0 0.0
    %1251 = vmatprep.subr.mxu0 0.0
    %1252 = vmatpush1.msra.mxu0 0.0
    %1253 = vmatprep.subr.mxu0 0.0
    %1254 = vmatpush1.msra.mxu0 0.0
    %1255 = vmatprep.subr.mxu0 0.0
    %1256 = vmatpush1.msra.mxu0 0.0
    %1257 = vmatprep.subr.mxu0 0.0
    %1258 = vmatpush1.msra.mxu0 0.0
    %1259 = vmatprep.subr.mxu0 0.0
    %1260 = vmatpush1.msra.mxu0 0.0
    %1261 = vmatprep.subr.mxu0 0.0
    %1262 = vmatpush1.msra.mxu0 0.0
    %1263 = vmatprep.subr.mxu0 0.0
    %1264 = vmatpush1.msra.mxu0 0.0
    %1265 = vmatprep.subr.mxu0 0.0
    %1266 = vmatpush1.msra.mxu0 0.0
    %1267 = vmatprep.subr.mxu0 0.0
    %1268 = vmatpush1.msra.mxu0 0.0
    %1269 = vmatprep.subr.mxu0 0.0
    %1270 = vmatpush1.msra.mxu0 0.0
    %1271 = vmatprep.mubr.f32.mxu0 0.0
    %1272 = vmatmul.mubr.f32.gmra.mrb[0].mxu0 %v1205
    %v1273 = vpop.f32.mrb[0].mxu0
    %v1274 = vadd.f32 %v1097, %v1273
    %v1275 = vpop.f32.mrb[0].mxu0
    %1276 = vdwg.mxu0
    %v1277 = vadd.f32 %v1274, %v422
    %v1278 = vxor.u32 %v1277, 2147483648
    %v1279 = vmul.f32 %v1278, 1.442695
    %v1280 = vpow.pop %v1279
    %v1281 = vadd.f32 %v1280, 1.0
    %v1282 = vrcp.pop %v1281
    %v1283 = vmul.f32 1.0, %v1282
    %v1284 = vtanh.pop %v1277
    %v1285 = vmul.f32 %v1283, %v1018
    %1287 = vrot.lane.b32.xlu0 %v1284, 32
    %v1288 = vpop.permute.xlu0 %1287
    %v1290 = vmul.f32 %v1283, %v1288
    %1292 = vrot.lane.b32.xlu0 %v1290, 32
    %v1293 = vpop.permute.xlu0 %1292
    %v1295 = vadd.f32 %v1285, %v1293
    %v1296 = vtanh.pop %v1295
    %1298 = vrot.lane.b32.xlu0 %v1296, 32
    %v1299 = vpop.permute.xlu0 %1298
    %v1301 = vmul.f32 %v1283, %v1299
    %1303 = vrot.lane.b32.xlu0 %v1301, 64
    %v1304 = vpop.permute.xlu0 %1303
    %v1305 = vsel %vm433, %v1304, 0
    %1307 = vmatprep.subr.mxu0 0.0
    %1308 = vmatpush1.msra.mxu0 %v413
    %1309 = vmatprep.subr.mxu0 0.0
    %1310 = vmatpush1.msra.mxu0 %v414
    %1311 = vmatprep.subr.mxu0 0.0
    %1312 = vmatpush1.msra.mxu0 %v415
    %1313 = vmatprep.subr.mxu0 0.0
    %1314 = vmatpush1.msra.mxu0 %v416
    %1315 = vmatprep.subr.mxu0 0.0
    %1316 = vmatpush1.msra.mxu0 0.0
    %1317 = vmatprep.subr.mxu0 0.0
    %1318 = vmatpush1.msra.mxu0 0.0
    %1319 = vmatprep.subr.mxu0 0.0
    %1320 = vmatpush1.msra.mxu0 0.0
    %1321 = vmatprep.subr.mxu0 0.0
    %1322 = vmatpush1.msra.mxu0 0.0
    %1323 = vmatprep.subr.mxu0 0.0
    %1324 = vmatpush1.msra.mxu0 0.0
    %1325 = vmatprep.subr.mxu0 0.0
    %1326 = vmatpush1.msra.mxu0 0.0
    %1327 = vmatprep.subr.mxu0 0.0
    %1328 = vmatpush1.msra.mxu0 0.0
    %1329 = vmatprep.subr.mxu0 0.0
    %1330 = vmatpush1.msra.mxu0 0.0
    %1331 = vmatprep.subr.mxu0 0.0
    %1332 = vmatpush1.msra.mxu0 0.0
    %1333 = vmatprep.subr.mxu0 0.0
    %1334 = vmatpush1.msra.mxu0 0.0
    %1335 = vmatprep.subr.mxu0 0.0
    %1336 = vmatpush1.msra.mxu0 0.0
    %1337 = vmatprep.subr.mxu0 0.0
    %1338 = vmatpush1.msra.mxu0 0.0
    %1339 = vmatprep.subr.mxu0 0.0
    %1340 = vmatpush1.msra.mxu0 0.0
    %1341 = vmatprep.subr.mxu0 0.0
    %1342 = vmatpush1.msra.mxu0 0.0
    %1343 = vmatprep.subr.mxu0 0.0
    %1344 = vmatpush1.msra.mxu0 0.0
    %1345 = vmatprep.subr.mxu0 0.0
    %1346 = vmatpush1.msra.mxu0 0.0
    %1347 = vmatprep.subr.mxu0 0.0
    %1348 = vmatpush1.msra.mxu0 0.0
    %1349 = vmatprep.subr.mxu0 0.0
    %1350 = vmatpush1.msra.mxu0 0.0
    %1351 = vmatprep.subr.mxu0 0.0
    %1352 = vmatpush1.msra.mxu0 0.0
    %1353 = vmatprep.subr.mxu0 0.0
    %1354 = vmatpush1.msra.mxu0 0.0
    %1355 = vmatprep.subr.mxu0 0.0
    %1356 = vmatpush1.msra.mxu0 0.0
    %1357 = vmatprep.subr.mxu0 0.0
    %1358 = vmatpush1.msra.mxu0 0.0
    %1359 = vmatprep.subr.mxu0 0.0
    %1360 = vmatpush1.msra.mxu0 0.0
    %1361 = vmatprep.subr.mxu0 0.0
    %1362 = vmatpush1.msra.mxu0 0.0
    %1363 = vmatprep.subr.mxu0 0.0
    %1364 = vmatpush1.msra.mxu0 0.0
    %1365 = vmatprep.subr.mxu0 0.0
    %1366 = vmatpush1.msra.mxu0 0.0
    %1367 = vmatprep.subr.mxu0 0.0
    %1368 = vmatpush1.msra.mxu0 0.0
    %1369 = vmatprep.subr.mxu0 0.0
    %1370 = vmatpush1.msra.mxu0 0.0
    %1371 = vmatprep.mubr.f32.mxu0 0.0
    %1372 = vmatmul.mubr.f32.gmra.mrb[0].mxu0 %v1305
    %v1373 = vpop.f32.mrb[0].mxu0
    %v1374 = vadd.f32 0.0, %v1373
    %v1375 = vpop.f32.mrb[0].mxu0
    %1376 = vdwg.mxu0
    %1377 = vmatprep.subr.mxu0 0.0
    %1378 = vmatpush1.msra.mxu0 %v405
    %1379 = vmatprep.subr.mxu0 0.0
    %1380 = vmatpush1.msra.mxu0 %v406
    %1381 = vmatprep.subr.mxu0 0.0
    %1382 = vmatpush1.msra.mxu0 %v407
    %1383 = vmatprep.subr.mxu0 0.0
    %1384 = vmatpush1.msra.mxu0 %v408
    %1385 = vmatprep.subr.mxu0 0.0
    %1386 = vmatpush1.msra.mxu0 0.0
    %1387 = vmatprep.subr.mxu0 0.0
    %1388 = vmatpush1.msra.mxu0 0.0
    %1389 = vmatprep.subr.mxu0 0.0
    %1390 = vmatpush1.msra.mxu0 0.0
    %1391 = vmatprep.subr.mxu0 0.0
    %1392 = vmatpush1.msra.mxu0 0.0
    %1393 = vmatprep.subr.mxu0 0.0
    %1394 = vmatpush1.msra.mxu0 0.0
    %1395 = vmatprep.subr.mxu0 0.0
    %1396 = vmatpush1.msra.mxu0 0.0
    %1397 = vmatprep.subr.mxu0 0.0
    %1398 = vmatpush1.msra.mxu0 0.0
    %1399 = vmatprep.subr.mxu0 0.0
    %1400 = vmatpush1.msra.mxu0 0.0
    %1401 = vmatprep.subr.mxu0 0.0
    %1402 = vmatpush1.msra.mxu0 0.0
    %1403 = vmatprep.subr.mxu0 0.0
    %1404 = vmatpush1.msra.mxu0 0.0
    %1405 = vmatprep.subr.mxu0 0.0
    %1406 = vmatpush1.msra.mxu0 0.0
    %1407 = vmatprep.subr.mxu0 0.0
    %1408 = vmatpush1.msra.mxu0 0.0
    %1409 = vmatprep.subr.mxu0 0.0
    %1410 = vmatpush1.msra.mxu0 0.0
    %1411 = vmatprep.subr.mxu0 0.0
    %1412 = vmatpush1.msra.mxu0 0.0
    %1413 = vmatprep.subr.mxu0 0.0
    %1414 = vmatpush1.msra.mxu0 0.0
    %1415 = vmatprep.subr.mxu0 0.0
    %1416 = vmatpush1.msra.mxu0 0.0
    %1417 = vmatprep.subr.mxu0 0.0
    %1418 = vmatpush1.msra.mxu0 0.0
    %1419 = vmatprep.subr.mxu0 0.0
    %1420 = vmatpush1.msra.mxu0 0.0
    %1421 = vmatprep.subr.mxu0 0.0
    %1422 = vmatpush1.msra.mxu0 0.0
    %1423 = vmatprep.subr.mxu0 0.0
    %1424 = vmatpush1.msra.mxu0 0.0
    %1425 = vmatprep.subr.mxu0 0.0
    %1426 = vmatpush1.msra.mxu0 0.0
    %1427 = vmatprep.subr.mxu0 0.0
    %1428 = vmatpush1.msra.mxu0 0.0
    %1429 = vmatprep.subr.mxu0 0.0
    %1430 = vmatpush1.msra.mxu0 0.0
    %1431 = vmatprep.subr.mxu0 0.0
    %1432 = vmatpush1.msra.mxu0 0.0
    %1433 = vmatprep.subr.mxu0 0.0
    %1434 = vmatpush1.msra.mxu0 0.0
    %1435 = vmatprep.subr.mxu0 0.0
    %1436 = vmatpush1.msra.mxu0 0.0
    %1437 = vmatprep.subr.mxu0 0.0
    %1438 = vmatpush1.msra.mxu0 0.0
    %1439 = vmatprep.subr.mxu0 0.0
    %1440 = vmatpush1.msra.mxu0 0.0
    %1441 = vmatprep.mubr.f32.mxu0 0.0
    %1442 = vmatmul.mubr.f32.gmra.mrb[0].mxu0 %v1205
    %v1443 = vpop.f32.mrb[0].mxu0
    %v1444 = vadd.f32 0.0, %v1443
    %v1445 = vpop.f32.mrb[0].mxu0
    %1446 = vdwg.mxu0
    %v1447 = vadd.f32 %v379, %v1444
    %v1448 = vxor.u32 %v1447, 2147483648
    %v1449 = vmul.f32 %v1448, 1.442695
    %v1450 = vpow.pop %v1449
    %v1451 = vadd.f32 %v1450, 1.0
    %v1452 = vrcp.pop %v1451
    %v1453 = vmul.f32 1.0, %v1452
    %v1454 = vtanh.pop %v1447
    %v1455 = vmul.f32 %v1453, %v1188
    %1457 = vrot.lane.b32.xlu0 %v1454, 32
    %v1458 = vpop.permute.xlu0 %1457
    %v1460 = vmul.f32 %v1453, %v1458
    %1462 = vrot.lane.b32.xlu0 %v1460, 32
    %v1463 = vpop.permute.xlu0 %1462
    %v1465 = vadd.f32 %v1455, %v1463
    %v1466 = vtanh.pop %v1465
    %1468 = vrot.lane.b32.xlu0 %v1466, 32
    %v1469 = vpop.permute.xlu0 %1468
    %v1471 = vmul.f32 %v1453, %v1469
    %v1474 = vunpack.c.l.s4 1983009808
    %v1475 = vunpack.c.0.s8 %v1474
    %v1476 = vlaneseq
    %v1477 = vshrl.u32 %v1476, 7
    %v1478 = vsub.s32 %v1475, %v1477
    %v1479 = vrot.slane %v1471, %v1478
    %1480 = vrot.lane.b32.xlu0 %v1479, 64
    %v1481 = vpop.permute.xlu0 %1480
    %v1482 = vsel %vm433, %v1481, 0
    %1484 = vmatprep.subr.mxu0 0.0
    %1485 = vmatpush1.msra.mxu0 %v409
    %1486 = vmatprep.subr.mxu0 0.0
    %1487 = vmatpush1.msra.mxu0 %v410
    %1488 = vmatprep.subr.mxu0 0.0
    %1489 = vmatpush1.msra.mxu0 %v411
    %1490 = vmatprep.subr.mxu0 0.0
    %1491 = vmatpush1.msra.mxu0 %v412
    %1492 = vmatprep.subr.mxu0 0.0
    %1493 = vmatpush1.msra.mxu0 0.0
    %1494 = vmatprep.subr.mxu0 0.0
    %1495 = vmatpush1.msra.mxu0 0.0
    %1496 = vmatprep.subr.mxu0 0.0
    %1497 = vmatpush1.msra.mxu0 0.0
    %1498 = vmatprep.subr.mxu0 0.0
    %1499 = vmatpush1.msra.mxu0 0.0
    %1500 = vmatprep.subr.mxu0 0.0
    %1501 = vmatpush1.msra.mxu0 0.0
    %1502 = vmatprep.subr.mxu0 0.0
    %1503 = vmatpush1.msra.mxu0 0.0
    %1504 = vmatprep.subr.mxu0 0.0
    %1505 = vmatpush1.msra.mxu0 0.0
    %1506 = vmatprep.subr.mxu0 0.0
    %1507 = vmatpush1.msra.mxu0 0.0
    %1508 = vmatprep.subr.mxu0 0.0
    %1509 = vmatpush1.msra.mxu0 0.0
    %1510 = vmatprep.subr.mxu0 0.0
    %1511 = vmatpush1.msra.mxu0 0.0
    %1512 = vmatprep.subr.mxu0 0.0
    %1513 = vmatpush1.msra.mxu0 0.0
    %1514 = vmatprep.subr.mxu0 0.0
    %1515 = vmatpush1.msra.mxu0 0.0
    %1516 = vmatprep.subr.mxu0 0.0
    %1517 = vmatpush1.msra.mxu0 0.0
    %1518 = vmatprep.subr.mxu0 0.0
    %1519 = vmatpush1.msra.mxu0 0.0
    %1520 = vmatprep.subr.mxu0 0.0
    %1521 = vmatpush1.msra.mxu0 0.0
    %1522 = vmatprep.subr.mxu0 0.0
    %1523 = vmatpush1.msra.mxu0 0.0
    %1524 = vmatprep.subr.mxu0 0.0
    %1525 = vmatpush1.msra.mxu0 0.0
    %1526 = vmatprep.subr.mxu0 0.0
    %1527 = vmatpush1.msra.mxu0 0.0
    %1528 = vmatprep.subr.mxu0 0.0
    %1529 = vmatpush1.msra.mxu0 0.0
    %1530 = vmatprep.subr.mxu0 0.0
    %1531 = vmatpush1.msra.mxu0 0.0
    %1532 = vmatprep.subr.mxu0 0.0
    %1533 = vmatpush1.msra.mxu0 0.0
    %1534 = vmatprep.subr.mxu0 0.0
    %1535 = vmatpush1.msra.mxu0 0.0
    %1536 = vmatprep.subr.mxu0 0.0
    %1537 = vmatpush1.msra.mxu0 0.0
    %1538 = vmatprep.subr.mxu0 0.0
    %1539 = vmatpush1.msra.mxu0 0.0
    %1540 = vmatprep.subr.mxu0 0.0
    %1541 = vmatpush1.msra.mxu0 0.0
    %1542 = vmatprep.subr.mxu0 0.0
    %1543 = vmatpush1.msra.mxu0 0.0
    %1544 = vmatprep.subr.mxu0 0.0
    %1545 = vmatpush1.msra.mxu0 0.0
    %1546 = vmatprep.subr.mxu0 0.0
    %1547 = vmatpush1.msra.mxu0 0.0
    %1548 = vmatprep.mubr.f32.mxu0 0.0
    %1549 = vmatmul.mubr.f32.gmra.mrb[0].mxu0 %v1482
    %v1550 = vpop.f32.mrb[0].mxu0
    %v1551 = vadd.f32 %v1374, %v1550
    %v1552 = vpop.f32.mrb[0].mxu0
    %1553 = vdwg.mxu0
    %v1554 = vadd.f32 %v1551, %v422
    %v1555 = vxor.u32 %v1554, 2147483648
    %v1556 = vmul.f32 %v1555, 1.442695
    %v1557 = vpow.pop %v1556
    %v1558 = vadd.f32 %v1557, 1.0
    %v1559 = vrcp.pop %v1558
    %v1560 = vmul.f32 1.0, %v1559
    %v1561 = vtanh.pop %v1554
    %v1562 = vmul.f32 %v1560, %v1295
    %1564 = vrot.lane.b32.xlu0 %v1561, 32
    %v1565 = vpop.permute.xlu0 %1564
    %v1567 = vmul.f32 %v1560, %v1565
    %1569 = vrot.lane.b32.xlu0 %v1567, 32
    %v1570 = vpop.permute.xlu0 %1569
    %v1572 = vadd.f32 %v1562, %v1570
    %v1573 = vtanh.pop %v1572
    %1575 = vrot.lane.b32.xlu0 %v1573, 32
    %v1576 = vpop.permute.xlu0 %1575
    %v1578 = vmul.f32 %v1560, %v1576
    %1580 = vrot.lane.b32.xlu0 %v1578, 64
    %v1581 = vpop.permute.xlu0 %1580
    %v1582 = vsel %vm433, %v1581, 0
    %1584 = vmatprep.subr.mxu0 0.0
    %1585 = vmatpush1.msra.mxu0 %v413
    %1586 = vmatprep.subr.mxu0 0.0
    %1587 = vmatpush1.msra.mxu0 %v414
    %1588 = vmatprep.subr.mxu0 0.0
    %1589 = vmatpush1.msra.mxu0 %v415
    %1590 = vmatprep.subr.mxu0 0.0
    %1591 = vmatpush1.msra.mxu0 %v416
    %1592 = vmatprep.subr.mxu0 0.0
    %1593 = vmatpush1.msra.mxu0 0.0
    %1594 = vmatprep.subr.mxu0 0.0
    %1595 = vmatpush1.msra.mxu0 0.0
    %1596 = vmatprep.subr.mxu0 0.0
    %1597 = vmatpush1.msra.mxu0 0.0
    %1598 = vmatprep.subr.mxu0 0.0
    %1599 = vmatpush1.msra.mxu0 0.0
    %1600 = vmatprep.subr.mxu0 0.0
    %1601 = vmatpush1.msra.mxu0 0.0
    %1602 = vmatprep.subr.mxu0 0.0
    %1603 = vmatpush1.msra.mxu0 0.0
    %1604 = vmatprep.subr.mxu0 0.0
    %1605 = vmatpush1.msra.mxu0 0.0
    %1606 = vmatprep.subr.mxu0 0.0
    %1607 = vmatpush1.msra.mxu0 0.0
    %1608 = vmatprep.subr.mxu0 0.0
    %1609 = vmatpush1.msra.mxu0 0.0
    %1610 = vmatprep.subr.mxu0 0.0
    %1611 = vmatpush1.msra.mxu0 0.0
    %1612 = vmatprep.subr.mxu0 0.0
    %1613 = vmatpush1.msra.mxu0 0.0
    %1614 = vmatprep.subr.mxu0 0.0
    %1615 = vmatpush1.msra.mxu0 0.0
    %1616 = vmatprep.subr.mxu0 0.0
    %1617 = vmatpush1.msra.mxu0 0.0
    %1618 = vmatprep.subr.mxu0 0.0
    %1619 = vmatpush1.msra.mxu0 0.0
    %1620 = vmatprep.subr.mxu0 0.0
    %1621 = vmatpush1.msra.mxu0 0.0
    %1622 = vmatprep.subr.mxu0 0.0
    %1623 = vmatpush1.msra.mxu0 0.0
    %1624 = vmatprep.subr.mxu0 0.0
    %1625 = vmatpush1.msra.mxu0 0.0
    %1626 = vmatprep.subr.mxu0 0.0
    %1627 = vmatpush1.msra.mxu0 0.0
    %1628 = vmatprep.subr.mxu0 0.0
    %1629 = vmatpush1.msra.mxu0 0.0
    %1630 = vmatprep.subr.mxu0 0.0
    %1631 = vmatpush1.msra.mxu0 0.0
    %1632 = vmatprep.subr.mxu0 0.0
    %1633 = vmatpush1.msra.mxu0 0.0
    %1634 = vmatprep.subr.mxu0 0.0
    %1635 = vmatpush1.msra.mxu0 0.0
    %1636 = vmatprep.subr.mxu0 0.0
    %1637 = vmatpush1.msra.mxu0 0.0
    %1638 = vmatprep.subr.mxu0 0.0
    %1639 = vmatpush1.msra.mxu0 0.0
    %1640 = vmatprep.subr.mxu0 0.0
    %1641 = vmatpush1.msra.mxu0 0.0
    %1642 = vmatprep.subr.mxu0 0.0
    %1643 = vmatpush1.msra.mxu0 0.0
    %1644 = vmatprep.subr.mxu0 0.0
    %1645 = vmatpush1.msra.mxu0 0.0
    %1646 = vmatprep.subr.mxu0 0.0
    %1647 = vmatpush1.msra.mxu0 0.0
    %1648 = vmatprep.mubr.f32.mxu0 0.0
    %1649 = vmatmul.mubr.f32.gmra.mrb[0].mxu0 %v1582
    %v1650 = vpop.f32.mrb[0].mxu0
    %v1651 = vadd.f32 0.0, %v1650
    %v1652 = vpop.f32.mrb[0].mxu0
    %1653 = vdwg.mxu0
    %1654 = vmatprep.subr.mxu0 0.0
    %1655 = vmatpush1.msra.mxu0 %v405
    %1656 = vmatprep.subr.mxu0 0.0
    %1657 = vmatpush1.msra.mxu0 %v406
    %1658 = vmatprep.subr.mxu0 0.0
    %1659 = vmatpush1.msra.mxu0 %v407
    %1660 = vmatprep.subr.mxu0 0.0
    %1661 = vmatpush1.msra.mxu0 %v408
    %1662 = vmatprep.subr.mxu0 0.0
    %1663 = vmatpush1.msra.mxu0 0.0
    %1664 = vmatprep.subr.mxu0 0.0
    %1665 = vmatpush1.msra.mxu0 0.0
    %1666 = vmatprep.subr.mxu0 0.0
    %1667 = vmatpush1.msra.mxu0 0.0
    %1668 = vmatprep.subr.mxu0 0.0
    %1669 = vmatpush1.msra.mxu0 0.0
    %1670 = vmatprep.subr.mxu0 0.0
    %1671 = vmatpush1.msra.mxu0 0.0
    %1672 = vmatprep.subr.mxu0 0.0
    %1673 = vmatpush1.msra.mxu0 0.0
    %1674 = vmatprep.subr.mxu0 0.0
    %1675 = vmatpush1.msra.mxu0 0.0
    %1676 = vmatprep.subr.mxu0 0.0
    %1677 = vmatpush1.msra.mxu0 0.0
    %1678 = vmatprep.subr.mxu0 0.0
    %1679 = vmatpush1.msra.mxu0 0.0
    %1680 = vmatprep.subr.mxu0 0.0
    %1681 = vmatpush1.msra.mxu0 0.0
    %1682 = vmatprep.subr.mxu0 0.0
    %1683 = vmatpush1.msra.mxu0 0.0
    %1684 = vmatprep.subr.mxu0 0.0
    %1685 = vmatpush1.msra.mxu0 0.0
    %1686 = vmatprep.subr.mxu0 0.0
    %1687 = vmatpush1.msra.mxu0 0.0
    %1688 = vmatprep.subr.mxu0 0.0
    %1689 = vmatpush1.msra.mxu0 0.0
    %1690 = vmatprep.subr.mxu0 0.0
    %1691 = vmatpush1.msra.mxu0 0.0
    %1692 = vmatprep.subr.mxu0 0.0
    %1693 = vmatpush1.msra.mxu0 0.0
    %1694 = vmatprep.subr.mxu0 0.0
    %1695 = vmatpush1.msra.mxu0 0.0
    %1696 = vmatprep.subr.mxu0 0.0
    %1697 = vmatpush1.msra.mxu0 0.0
    %1698 = vmatprep.subr.mxu0 0.0
    %1699 = vmatpush1.msra.mxu0 0.0
    %1700 = vmatprep.subr.mxu0 0.0
    %1701 = vmatpush1.msra.mxu0 0.0
    %1702 = vmatprep.subr.mxu0 0.0
    %1703 = vmatpush1.msra.mxu0 0.0
    %1704 = vmatprep.subr.mxu0 0.0
    %1705 = vmatpush1.msra.mxu0 0.0
    %1706 = vmatprep.subr.mxu0 0.0
    %1707 = vmatpush1.msra.mxu0 0.0
    %1708 = vmatprep.subr.mxu0 0.0
    %1709 = vmatpush1.msra.mxu0 0.0
    %1710 = vmatprep.subr.mxu0 0.0
    %1711 = vmatpush1.msra.mxu0 0.0
    %1712 = vmatprep.subr.mxu0 0.0
    %1713 = vmatpush1.msra.mxu0 0.0
    %1714 = vmatprep.subr.mxu0 0.0
    %1715 = vmatpush1.msra.mxu0 0.0
    %1716 = vmatprep.subr.mxu0 0.0
    %1717 = vmatpush1.msra.mxu0 0.0
    %1718 = vmatprep.mubr.f32.mxu0 0.0
    %1719 = vmatmul.mubr.f32.gmra.mrb[0].mxu0 %v1482
    %v1720 = vpop.f32.mrb[0].mxu0
    %v1721 = vadd.f32 0.0, %v1720
    %v1722 = vpop.f32.mrb[0].mxu0
    %1723 = vdwg.mxu0
    %v1724 = vadd.f32 %v387, %v1721
    %v1725 = vxor.u32 %v1724, 2147483648
    %v1726 = vmul.f32 %v1725, 1.442695
    %v1727 = vpow.pop %v1726
    %v1728 = vadd.f32 %v1727, 1.0
    %v1729 = vrcp.pop %v1728
    %v1730 = vmul.f32 1.0, %v1729
    %v1731 = vtanh.pop %v1724
    %v1732 = vmul.f32 %v1730, %v1465
    %1734 = vrot.lane.b32.xlu0 %v1731, 32
    %v1735 = vpop.permute.xlu0 %1734
    %v1737 = vmul.f32 %v1730, %v1735
    %1739 = vrot.lane.b32.xlu0 %v1737, 32
    %v1740 = vpop.permute.xlu0 %1739
    %v1742 = vadd.f32 %v1732, %v1740
    %v1743 = vtanh.pop %v1742
    %1745 = vrot.lane.b32.xlu0 %v1743, 32
    %v1746 = vpop.permute.xlu0 %1745
    %v1748 = vmul.f32 %v1730, %v1746
    %v1751 = vunpack.c.l.s4 1983009808
    %v1752 = vunpack.c.0.s8 %v1751
    %v1753 = vlaneseq
    %v1754 = vshrl.u32 %v1753, 7
    %v1755 = vsub.s32 %v1752, %v1754
    %v1756 = vrot.slane %v1748, %v1755
    %1757 = vrot.lane.b32.xlu0 %v1756, 64
    %v1758 = vpop.permute.xlu0 %1757
    %v1759 = vsel %vm433, %v1758, 0
    %1761 = vmatprep.subr.mxu0 0.0
    %1762 = vmatpush1.msra.mxu0 %v409
    %1763 = vmatprep.subr.mxu0 0.0
    %1764 = vmatpush1.msra.mxu0 %v410
    %1765 = vmatprep.subr.mxu0 0.0
    %1766 = vmatpush1.msra.mxu0 %v411
    %1767 = vmatprep.subr.mxu0 0.0
    %1768 = vmatpush1.msra.mxu0 %v412
    %1769 = vmatprep.subr.mxu0 0.0
    %1770 = vmatpush1.msra.mxu0 0.0
    %1771 = vmatprep.subr.mxu0 0.0
    %1772 = vmatpush1.msra.mxu0 0.0
    %1773 = vmatprep.subr.mxu0 0.0
    %1774 = vmatpush1.msra.mxu0 0.0
    %1775 = vmatprep.subr.mxu0 0.0
    %1776 = vmatpush1.msra.mxu0 0.0
    %1777 = vmatprep.subr.mxu0 0.0
    %1778 = vmatpush1.msra.mxu0 0.0
    %1779 = vmatprep.subr.mxu0 0.0
    %1780 = vmatpush1.msra.mxu0 0.0
    %1781 = vmatprep.subr.mxu0 0.0
    %1782 = vmatpush1.msra.mxu0 0.0
    %1783 = vmatprep.subr.mxu0 0.0
    %1784 = vmatpush1.msra.mxu0 0.0
    %1785 = vmatprep.subr.mxu0 0.0
    %1786 = vmatpush1.msra.mxu0 0.0
    %1787 = vmatprep.subr.mxu0 0.0
    %1788 = vmatpush1.msra.mxu0 0.0
    %1789 = vmatprep.subr.mxu0 0.0
    %1790 = vmatpush1.msra.mxu0 0.0
    %1791 = vmatprep.subr.mxu0 0.0
    %1792 = vmatpush1.msra.mxu0 0.0
    %1793 = vmatprep.subr.mxu0 0.0
    %1794 = vmatpush1.msra.mxu0 0.0
    %1795 = vmatprep.subr.mxu0 0.0
    %1796 = vmatpush1.msra.mxu0 0.0
    %1797 = vmatprep.subr.mxu0 0.0
    %1798 = vmatpush1.msra.mxu0 0.0
    %1799 = vmatprep.subr.mxu0 0.0
    %1800 = vmatpush1.msra.mxu0 0.0
    %1801 = vmatprep.subr.mxu0 0.0
    %1802 = vmatpush1.msra.mxu0 0.0
    %1803 = vmatprep.subr.mxu0 0.0
    %1804 = vmatpush1.msra.mxu0 0.0
    %1805 = vmatprep.subr.mxu0 0.0
    %1806 = vmatpush1.msra.mxu0 0.0
    %1807 = vmatprep.subr.mxu0 0.0
    %1808 = vmatpush1.msra.mxu0 0.0
    %1809 = vmatprep.subr.mxu0 0.0
    %1810 = vmatpush1.msra.mxu0 0.0
    %1811 = vmatprep.subr.mxu0 0.0
    %1812 = vmatpush1.msra.mxu0 0.0
    %1813 = vmatprep.subr.mxu0 0.0
    %1814 = vmatpush1.msra.mxu0 0.0
    %1815 = vmatprep.subr.mxu0 0.0
    %1816 = vmatpush1.msra.mxu0 0.0
    %1817 = vmatprep.subr.mxu0 0.0
    %1818 = vmatpush1.msra.mxu0 0.0
    %1819 = vmatprep.subr.mxu0 0.0
    %1820 = vmatpush1.msra.mxu0 0.0
    %1821 = vmatprep.subr.mxu0 0.0
    %1822 = vmatpush1.msra.mxu0 0.0
    %1823 = vmatprep.subr.mxu0 0.0
    %1824 = vmatpush1.msra.mxu0 0.0
    %1825 = vmatprep.mubr.f32.mxu0 0.0
    %1826 = vmatmul.mubr.f32.gmra.mrb[0].mxu0 %v1759
    %v1827 = vpop.f32.mrb[0].mxu0
    %v1828 = vadd.f32 %v1651, %v1827
    %v1829 = vpop.f32.mrb[0].mxu0
    %1830 = vdwg.mxu0
    %v1831 = vadd.f32 %v1828, %v422
    %v1832 = vxor.u32 %v1831, 2147483648
    %v1833 = vmul.f32 %v1832, 1.442695
    %v1834 = vpow.pop %v1833
    %v1835 = vadd.f32 %v1834, 1.0
    %v1836 = vrcp.pop %v1835
    %v1837 = vmul.f32 1.0, %v1836
    %v1838 = vtanh.pop %v1831
    %v1839 = vmul.f32 %v1837, %v1572
    %1841 = vrot.lane.b32.xlu0 %v1838, 32
    %v1842 = vpop.permute.xlu0 %1841
    %v1844 = vmul.f32 %v1837, %v1842
    %1846 = vrot.lane.b32.xlu0 %v1844, 32
    %v1847 = vpop.permute.xlu0 %1846
    %v1849 = vadd.f32 %v1839, %v1847
    %v1850 = vtanh.pop %v1849
    %1852 = vrot.lane.b32.xlu0 %v1850, 32
    %v1853 = vpop.permute.xlu0 %1852
    %v1855 = vmul.f32 %v1837, %v1853
    %1857 = vrot.lane.b32.xlu0 %v1855, 64
    %v1858 = vpop.permute.xlu0 %1857
    %v1859 = vsel %vm433, %v1858, 0
    %1861 = vmatprep.subr.mxu0 0.0
    %1862 = vmatpush1.msra.mxu0 %v413
    %1863 = vmatprep.subr.mxu0 0.0
    %1864 = vmatpush1.msra.mxu0 %v414
    %1865 = vmatprep.subr.mxu0 0.0
    %1866 = vmatpush1.msra.mxu0 %v415
    %1867 = vmatprep.subr.mxu0 0.0
    %1868 = vmatpush1.msra.mxu0 %v416
    %1869 = vmatprep.subr.mxu0 0.0
    %1870 = vmatpush1.msra.mxu0 0.0
    %1871 = vmatprep.subr.mxu0 0.0
    %1872 = vmatpush1.msra.mxu0 0.0
    %1873 = vmatprep.subr.mxu0 0.0
    %1874 = vmatpush1.msra.mxu0 0.0
    %1875 = vmatprep.subr.mxu0 0.0
    %1876 = vmatpush1.msra.mxu0 0.0
    %1877 = vmatprep.subr.mxu0 0.0
    %1878 = vmatpush1.msra.mxu0 0.0
    %1879 = vmatprep.subr.mxu0 0.0
    %1880 = vmatpush1.msra.mxu0 0.0
    %1881 = vmatprep.subr.mxu0 0.0
    %1882 = vmatpush1.msra.mxu0 0.0
    %1883 = vmatprep.subr.mxu0 0.0
    %1884 = vmatpush1.msra.mxu0 0.0
    %1885 = vmatprep.subr.mxu0 0.0
    %1886 = vmatpush1.msra.mxu0 0.0
    %1887 = vmatprep.subr.mxu0 0.0
    %1888 = vmatpush1.msra.mxu0 0.0
    %1889 = vmatprep.subr.mxu0 0.0
    %1890 = vmatpush1.msra.mxu0 0.0
    %1891 = vmatprep.subr.mxu0 0.0
    %1892 = vmatpush1.msra.mxu0 0.0
    %1893 = vmatprep.subr.mxu0 0.0
    %1894 = vmatpush1.msra.mxu0 0.0
    %1895 = vmatprep.subr.mxu0 0.0
    %1896 = vmatpush1.msra.mxu0 0.0
    %1897 = vmatprep.subr.mxu0 0.0
    %1898 = vmatpush1.msra.mxu0 0.0
    %1899 = vmatprep.subr.mxu0 0.0
    %1900 = vmatpush1.msra.mxu0 0.0
    %1901 = vmatprep.subr.mxu0 0.0
    %1902 = vmatpush1.msra.mxu0 0.0
    %1903 = vmatprep.subr.mxu0 0.0
    %1904 = vmatpush1.msra.mxu0 0.0
    %1905 = vmatprep.subr.mxu0 0.0
    %1906 = vmatpush1.msra.mxu0 0.0
    %1907 = vmatprep.subr.mxu0 0.0
    %1908 = vmatpush1.msra.mxu0 0.0
    %1909 = vmatprep.subr.mxu0 0.0
    %1910 = vmatpush1.msra.mxu0 0.0
    %1911 = vmatprep.subr.mxu0 0.0
    %1912 = vmatpush1.msra.mxu0 0.0
    %1913 = vmatprep.subr.mxu0 0.0
    %1914 = vmatpush1.msra.mxu0 0.0
    %1915 = vmatprep.subr.mxu0 0.0
    %1916 = vmatpush1.msra.mxu0 0.0
    %1917 = vmatprep.subr.mxu0 0.0
    %1918 = vmatpush1.msra.mxu0 0.0
    %1919 = vmatprep.subr.mxu0 0.0
    %1920 = vmatpush1.msra.mxu0 0.0
    %1921 = vmatprep.subr.mxu0 0.0
    %1922 = vmatpush1.msra.mxu0 0.0
    %1923 = vmatprep.subr.mxu0 0.0
    %1924 = vmatpush1.msra.mxu0 0.0
    %1925 = vmatprep.mubr.f32.mxu0 0.0
    %1926 = vmatmul.mubr.f32.gmra.mrb[0].mxu0 %v1859
    %v1927 = vpop.f32.mrb[0].mxu0
    %v1928 = vadd.f32 0.0, %v1927
    %v1929 = vpop.f32.mrb[0].mxu0
    %1930 = vdwg.mxu0
    %1931 = vmatprep.subr.mxu0 0.0
    %1932 = vmatpush1.msra.mxu0 %v405
    %1933 = vmatprep.subr.mxu0 0.0
    %1934 = vmatpush1.msra.mxu0 %v406
    %1935 = vmatprep.subr.mxu0 0.0
    %1936 = vmatpush1.msra.mxu0 %v407
    %1937 = vmatprep.subr.mxu0 0.0
    %1938 = vmatpush1.msra.mxu0 %v408
    %1939 = vmatprep.subr.mxu0 0.0
    %1940 = vmatpush1.msra.mxu0 0.0
    %1941 = vmatprep.subr.mxu0 0.0
    %1942 = vmatpush1.msra.mxu0 0.0
    %1943 = vmatprep.subr.mxu0 0.0
    %1944 = vmatpush1.msra.mxu0 0.0
    %1945 = vmatprep.subr.mxu0 0.0
    %1946 = vmatpush1.msra.mxu0 0.0
    %1947 = vmatprep.subr.mxu0 0.0
    %1948 = vmatpush1.msra.mxu0 0.0
    %1949 = vmatprep.subr.mxu0 0.0
    %1950 = vmatpush1.msra.mxu0 0.0
    %1951 = vmatprep.subr.mxu0 0.0
    %1952 = vmatpush1.msra.mxu0 0.0
    %1953 = vmatprep.subr.mxu0 0.0
    %1954 = vmatpush1.msra.mxu0 0.0
    %1955 = vmatprep.subr.mxu0 0.0
    %1956 = vmatpush1.msra.mxu0 0.0
    %1957 = vmatprep.subr.mxu0 0.0
    %1958 = vmatpush1.msra.mxu0 0.0
    %1959 = vmatprep.subr.mxu0 0.0
    %1960 = vmatpush1.msra.mxu0 0.0
    %1961 = vmatprep.subr.mxu0 0.0
    %1962 = vmatpush1.msra.mxu0 0.0
    %1963 = vmatprep.subr.mxu0 0.0
    %1964 = vmatpush1.msra.mxu0 0.0
    %1965 = vmatprep.subr.mxu0 0.0
    %1966 = vmatpush1.msra.mxu0 0.0
    %1967 = vmatprep.subr.mxu0 0.0
    %1968 = vmatpush1.msra.mxu0 0.0
    %1969 = vmatprep.subr.mxu0 0.0
    %1970 = vmatpush1.msra.mxu0 0.0
    %1971 = vmatprep.subr.mxu0 0.0
    %1972 = vmatpush1.msra.mxu0 0.0
    %1973 = vmatprep.subr.mxu0 0.0
    %1974 = vmatpush1.msra.mxu0 0.0
    %1975 = vmatprep.subr.mxu0 0.0
    %1976 = vmatpush1.msra.mxu0 0.0
    %1977 = vmatprep.subr.mxu0 0.0
    %1978 = vmatpush1.msra.mxu0 0.0
    %1979 = vmatprep.subr.mxu0 0.0
    %1980 = vmatpush1.msra.mxu0 0.0
    %1981 = vmatprep.subr.mxu0 0.0
    %1982 = vmatpush1.msra.mxu0 0.0
    %1983 = vmatprep.subr.mxu0 0.0
    %1984 = vmatpush1.msra.mxu0 0.0
    %1985 = vmatprep.subr.mxu0 0.0
    %1986 = vmatpush1.msra.mxu0 0.0
    %1987 = vmatprep.subr.mxu0 0.0
    %1988 = vmatpush1.msra.mxu0 0.0
    %1989 = vmatprep.subr.mxu0 0.0
    %1990 = vmatpush1.msra.mxu0 0.0
    %1991 = vmatprep.subr.mxu0 0.0
    %1992 = vmatpush1.msra.mxu0 0.0
    %1993 = vmatprep.subr.mxu0 0.0
    %1994 = vmatpush1.msra.mxu0 0.0
    %1995 = vmatprep.mubr.f32.mxu0 0.0
    %1996 = vmatmul.mubr.f32.gmra.mrb[0].mxu0 %v1759
    %v1997 = vpop.f32.mrb[0].mxu0
    %v1998 = vadd.f32 0.0, %v1997
    %v1999 = vpop.f32.mrb[0].mxu0
    %2000 = vdwg.mxu0
    %v2001 = vadd.f32 %v395, %v1998
    %v2002 = vxor.u32 %v2001, 2147483648
    %v2003 = vmul.f32 %v2002, 1.442695
    %v2004 = vpow.pop %v2003
    %v2005 = vadd.f32 %v2004, 1.0
    %v2006 = vrcp.pop %v2005
    %v2007 = vmul.f32 1.0, %v2006
    %v2008 = vtanh.pop %v2001
    %v2009 = vmul.f32 %v2007, %v1742
    %2011 = vrot.lane.b32.xlu0 %v2008, 32
    %v2012 = vpop.permute.xlu0 %2011
    %v2014 = vmul.f32 %v2007, %v2012
    %2016 = vrot.lane.b32.xlu0 %v2014, 32
    %v2017 = vpop.permute.xlu0 %2016
    %v2019 = vadd.f32 %v2009, %v2017
    %v2020 = vtanh.pop %v2019
    %2022 = vrot.lane.b32.xlu0 %v2020, 32
    %v2023 = vpop.permute.xlu0 %2022
    %v2025 = vmul.f32 %v2007, %v2023
    %v2028 = vunpack.c.l.s4 1983009808
    %v2029 = vunpack.c.0.s8 %v2028
    %v2030 = vlaneseq
    %v2031 = vshrl.u32 %v2030, 7
    %v2032 = vsub.s32 %v2029, %v2031
    %v2033 = vrot.slane %v2025, %v2032
    %2034 = vrot.lane.b32.xlu0 %v2033, 64
    %v2035 = vpop.permute.xlu0 %2034
    %v2036 = vsel %vm433, %v2035, 0
    %2038 = vmatprep.subr.mxu0 0.0
    %2039 = vmatpush1.msra.mxu0 %v409
    %2040 = vmatprep.subr.mxu0 0.0
    %2041 = vmatpush1.msra.mxu0 %v410
    %2042 = vmatprep.subr.mxu0 0.0
    %2043 = vmatpush1.msra.mxu0 %v411
    %2044 = vmatprep.subr.mxu0 0.0
    %2045 = vmatpush1.msra.mxu0 %v412
    %2046 = vmatprep.subr.mxu0 0.0
    %2047 = vmatpush1.msra.mxu0 0.0
    %2048 = vmatprep.subr.mxu0 0.0
    %2049 = vmatpush1.msra.mxu0 0.0
    %2050 = vmatprep.subr.mxu0 0.0
    %2051 = vmatpush1.msra.mxu0 0.0
    %2052 = vmatprep.subr.mxu0 0.0
    %2053 = vmatpush1.msra.mxu0 0.0
    %2054 = vmatprep.subr.mxu0 0.0
    %2055 = vmatpush1.msra.mxu0 0.0
    %2056 = vmatprep.subr.mxu0 0.0
    %2057 = vmatpush1.msra.mxu0 0.0
    %2058 = vmatprep.subr.mxu0 0.0
    %2059 = vmatpush1.msra.mxu0 0.0
    %2060 = vmatprep.subr.mxu0 0.0
    %2061 = vmatpush1.msra.mxu0 0.0
    %2062 = vmatprep.subr.mxu0 0.0
    %2063 = vmatpush1.msra.mxu0 0.0
    %2064 = vmatprep.subr.mxu0 0.0
    %2065 = vmatpush1.msra.mxu0 0.0
    %2066 = vmatprep.subr.mxu0 0.0
    %2067 = vmatpush1.msra.mxu0 0.0
    %2068 = vmatprep.subr.mxu0 0.0
    %2069 = vmatpush1.msra.mxu0 0.0
    %2070 = vmatprep.subr.mxu0 0.0
    %2071 = vmatpush1.msra.mxu0 0.0
    %2072 = vmatprep.subr.mxu0 0.0
    %2073 = vmatpush1.msra.mxu0 0.0
    %2074 = vmatprep.subr.mxu0 0.0
    %2075 = vmatpush1.msra.mxu0 0.0
    %2076 = vmatprep.subr.mxu0 0.0
    %2077 = vmatpush1.msra.mxu0 0.0
    %2078 = vmatprep.subr.mxu0 0.0
    %2079 = vmatpush1.msra.mxu0 0.0
    %2080 = vmatprep.subr.mxu0 0.0
    %2081 = vmatpush1.msra.mxu0 0.0
    %2082 = vmatprep.subr.mxu0 0.0
    %2083 = vmatpush1.msra.mxu0 0.0
    %2084 = vmatprep.subr.mxu0 0.0
    %2085 = vmatpush1.msra.mxu0 0.0
    %2086 = vmatprep.subr.mxu0 0.0
    %2087 = vmatpush1.msra.mxu0 0.0
    %2088 = vmatprep.subr.mxu0 0.0
    %2089 = vmatpush1.msra.mxu0 0.0
    %2090 = vmatprep.subr.mxu0 0.0
    %2091 = vmatpush1.msra.mxu0 0.0
    %2092 = vmatprep.subr.mxu0 0.0
    %2093 = vmatpush1.msra.mxu0 0.0
    %2094 = vmatprep.subr.mxu0 0.0
    %2095 = vmatpush1.msra.mxu0 0.0
    %2096 = vmatprep.subr.mxu0 0.0
    %2097 = vmatpush1.msra.mxu0 0.0
    %2098 = vmatprep.subr.mxu0 0.0
    %2099 = vmatpush1.msra.mxu0 0.0
    %2100 = vmatprep.subr.mxu0 0.0
    %2101 = vmatpush1.msra.mxu0 0.0
    %2102 = vmatprep.mubr.f32.mxu0 0.0
    %2103 = vmatmul.mubr.f32.gmra.mrb[0].mxu0 %v2036
    %v2104 = vpop.f32.mrb[0].mxu0
    %v2105 = vadd.f32 %v1928, %v2104
    %v2106 = vpop.f32.mrb[0].mxu0
    %2107 = vdwg.mxu0
    %v2108 = vadd.f32 %v2105, %v422
    %v2109 = vxor.u32 %v2108, 2147483648
    %v2110 = vmul.f32 %v2109, 1.442695
    %v2111 = vpow.pop %v2110
    %v2112 = vadd.f32 %v2111, 1.0
    %v2113 = vrcp.pop %v2112
    %v2114 = vmul.f32 1.0, %v2113
    %v2115 = vtanh.pop %v2108
    %v2116 = vmul.f32 %v2114, %v1849
    %2118 = vrot.lane.b32.xlu0 %v2115, 32
    %v2119 = vpop.permute.xlu0 %2118
    %v2121 = vmul.f32 %v2114, %v2119
    %2123 = vrot.lane.b32.xlu0 %v2121, 32
    %v2124 = vpop.permute.xlu0 %2123
    %v2126 = vadd.f32 %v2116, %v2124
    %v2127 = vtanh.pop %v2126
    %2129 = vrot.lane.b32.xlu0 %v2127, 32
    %v2130 = vpop.permute.xlu0 %2129
    %v2132 = vmul.f32 %v2114, %v2130
    %2134 = vrot.lane.b32.xlu0 %v2132, 64
    %v2135 = vpop.permute.xlu0 %2134
    %v2136 = vsel %vm433, %v2135, 0
    %2138 = vmatprep.subr.mxu0 0.0
    %2139 = vmatpush1.msra.mxu0 %v413
    %2140 = vmatprep.subr.mxu0 0.0
    %2141 = vmatpush1.msra.mxu0 %v414
    %2142 = vmatprep.subr.mxu0 0.0
    %2143 = vmatpush1.msra.mxu0 %v415
    %2144 = vmatprep.subr.mxu0 0.0
    %2145 = vmatpush1.msra.mxu0 %v416
    %2146 = vmatprep.subr.mxu0 0.0
    %2147 = vmatpush1.msra.mxu0 0.0
    %2148 = vmatprep.subr.mxu0 0.0
    %2149 = vmatpush1.msra.mxu0 0.0
    %2150 = vmatprep.subr.mxu0 0.0
    %2151 = vmatpush1.msra.mxu0 0.0
    %2152 = vmatprep.subr.mxu0 0.0
    %2153 = vmatpush1.msra.mxu0 0.0
    %2154 = vmatprep.subr.mxu0 0.0
    %2155 = vmatpush1.msra.mxu0 0.0
    %2156 = vmatprep.subr.mxu0 0.0
    %2157 = vmatpush1.msra.mxu0 0.0
    %2158 = vmatprep.subr.mxu0 0.0
    %2159 = vmatpush1.msra.mxu0 0.0
    %2160 = vmatprep.subr.mxu0 0.0
    %2161 = vmatpush1.msra.mxu0 0.0
    %2162 = vmatprep.subr.mxu0 0.0
    %2163 = vmatpush1.msra.mxu0 0.0
    %2164 = vmatprep.subr.mxu0 0.0
    %2165 = vmatpush1.msra.mxu0 0.0
    %2166 = vmatprep.subr.mxu0 0.0
    %2167 = vmatpush1.msra.mxu0 0.0
    %2168 = vmatprep.subr.mxu0 0.0
    %2169 = vmatpush1.msra.mxu0 0.0
    %2170 = vmatprep.subr.mxu0 0.0
    %2171 = vmatpush1.msra.mxu0 0.0
    %2172 = vmatprep.subr.mxu0 0.0
    %2173 = vmatpush1.msra.mxu0 0.0
    %2174 = vmatprep.subr.mxu0 0.0
    %2175 = vmatpush1.msra.mxu0 0.0
    %2176 = vmatprep.subr.mxu0 0.0
    %2177 = vmatpush1.msra.mxu0 0.0
    %2178 = vmatprep.subr.mxu0 0.0
    %2179 = vmatpush1.msra.mxu0 0.0
    %2180 = vmatprep.subr.mxu0 0.0
    %2181 = vmatpush1.msra.mxu0 0.0
    %2182 = vmatprep.subr.mxu0 0.0
    %2183 = vmatpush1.msra.mxu0 0.0
    %2184 = vmatprep.subr.mxu0 0.0
    %2185 = vmatpush1.msra.mxu0 0.0
    %2186 = vmatprep.subr.mxu0 0.0
    %2187 = vmatpush1.msra.mxu0 0.0
    %2188 = vmatprep.subr.mxu0 0.0
    %2189 = vmatpush1.msra.mxu0 0.0
    %2190 = vmatprep.subr.mxu0 0.0
    %2191 = vmatpush1.msra.mxu0 0.0
    %2192 = vmatprep.subr.mxu0 0.0
    %2193 = vmatpush1.msra.mxu0 0.0
    %2194 = vmatprep.subr.mxu0 0.0
    %2195 = vmatpush1.msra.mxu0 0.0
    %2196 = vmatprep.subr.mxu0 0.0
    %2197 = vmatpush1.msra.mxu0 0.0
    %2198 = vmatprep.subr.mxu0 0.0
    %2199 = vmatpush1.msra.mxu0 0.0
    %2200 = vmatprep.subr.mxu0 0.0
    %2201 = vmatpush1.msra.mxu0 0.0
    %2202 = vmatprep.mubr.f32.mxu0 0.0
    %2203 = vmatmul.mubr.f32.gmra.mrb[0].mxu0 %v2136
    %v2204 = vpop.f32.mrb[0].mxu0
    %v2205 = vadd.f32 0.0, %v2204
    %v2206 = vpop.f32.mrb[0].mxu0
    %2207 = vdwg.mxu0
    %2208 = vmatprep.subr.mxu0 0.0
    %2209 = vmatpush1.msra.mxu0 %v405
    %2210 = vmatprep.subr.mxu0 0.0
    %2211 = vmatpush1.msra.mxu0 %v406
    %2212 = vmatprep.subr.mxu0 0.0
    %2213 = vmatpush1.msra.mxu0 %v407
    %2214 = vmatprep.subr.mxu0 0.0
    %2215 = vmatpush1.msra.mxu0 %v408
    %2216 = vmatprep.subr.mxu0 0.0
    %2217 = vmatpush1.msra.mxu0 0.0
    %2218 = vmatprep.subr.mxu0 0.0
    %2219 = vmatpush1.msra.mxu0 0.0
    %2220 = vmatprep.subr.mxu0 0.0
    %2221 = vmatpush1.msra.mxu0 0.0
    %2222 = vmatprep.subr.mxu0 0.0
    %2223 = vmatpush1.msra.mxu0 0.0
    %2224 = vmatprep.subr.mxu0 0.0
    %2225 = vmatpush1.msra.mxu0 0.0
    %2226 = vmatprep.subr.mxu0 0.0
    %2227 = vmatpush1.msra.mxu0 0.0
    %2228 = vmatprep.subr.mxu0 0.0
    %2229 = vmatpush1.msra.mxu0 0.0
    %2230 = vmatprep.subr.mxu0 0.0
    %2231 = vmatpush1.msra.mxu0 0.0
    %2232 = vmatprep.subr.mxu0 0.0
    %2233 = vmatpush1.msra.mxu0 0.0
    %2234 = vmatprep.subr.mxu0 0.0
    %2235 = vmatpush1.msra.mxu0 0.0
    %2236 = vmatprep.subr.mxu0 0.0
    %2237 = vmatpush1.msra.mxu0 0.0
    %2238 = vmatprep.subr.mxu0 0.0
    %2239 = vmatpush1.msra.mxu0 0.0
    %2240 = vmatprep.subr.mxu0 0.0
    %2241 = vmatpush1.msra.mxu0 0.0
    %2242 = vmatprep.subr.mxu0 0.0
    %2243 = vmatpush1.msra.mxu0 0.0
    %2244 = vmatprep.subr.mxu0 0.0
    %2245 = vmatpush1.msra.mxu0 0.0
    %2246 = vmatprep.subr.mxu0 0.0
    %2247 = vmatpush1.msra.mxu0 0.0
    %2248 = vmatprep.subr.mxu0 0.0
    %2249 = vmatpush1.msra.mxu0 0.0
    %2250 = vmatprep.subr.mxu0 0.0
    %2251 = vmatpush1.msra.mxu0 0.0
    %2252 = vmatprep.subr.mxu0 0.0
    %2253 = vmatpush1.msra.mxu0 0.0
    %2254 = vmatprep.subr.mxu0 0.0
    %2255 = vmatpush1.msra.mxu0 0.0
    %2256 = vmatprep.subr.mxu0 0.0
    %2257 = vmatpush1.msra.mxu0 0.0
    %2258 = vmatprep.subr.mxu0 0.0
    %2259 = vmatpush1.msra.mxu0 0.0
    %2260 = vmatprep.subr.mxu0 0.0
    %2261 = vmatpush1.msra.mxu0 0.0
    %2262 = vmatprep.subr.mxu0 0.0
    %2263 = vmatpush1.msra.mxu0 0.0
    %2264 = vmatprep.subr.mxu0 0.0
    %2265 = vmatpush1.msra.mxu0 0.0
    %2266 = vmatprep.subr.mxu0 0.0
    %2267 = vmatpush1.msra.mxu0 0.0
    %2268 = vmatprep.subr.mxu0 0.0
    %2269 = vmatpush1.msra.mxu0 0.0
    %2270 = vmatprep.subr.mxu0 0.0
    %2271 = vmatpush1.msra.mxu0 0.0
    %2272 = vmatprep.mubr.f32.mxu0 0.0
    %2273 = vmatmul.mubr.f32.gmra.mrb[0].mxu0 %v2036
    %v2274 = vpop.f32.mrb[0].mxu0
    %v2275 = vadd.f32 0.0, %v2274
    %v2276 = vpop.f32.mrb[0].mxu0
    %2277 = vdwg.mxu0
    %v2278 = vadd.f32 %v394, %v2275
    %v2279 = vxor.u32 %v2278, 2147483648
    %v2280 = vmul.f32 %v2279, 1.442695
    %v2281 = vpow.pop %v2280
    %v2282 = vadd.f32 %v2281, 1.0
    %v2283 = vrcp.pop %v2282
    %v2284 = vmul.f32 1.0, %v2283
    %v2285 = vtanh.pop %v2278
    %v2286 = vmul.f32 %v2284, %v2019
    %2288 = vrot.lane.b32.xlu0 %v2285, 32
    %v2289 = vpop.permute.xlu0 %2288
    %v2291 = vmul.f32 %v2284, %v2289
    %2293 = vrot.lane.b32.xlu0 %v2291, 32
    %v2294 = vpop.permute.xlu0 %2293
    %v2296 = vadd.f32 %v2286, %v2294
    %v2297 = vtanh.pop %v2296
    %2299 = vrot.lane.b32.xlu0 %v2297, 32
    %v2300 = vpop.permute.xlu0 %2299
    %v2302 = vmul.f32 %v2284, %v2300
    %v2305 = vunpack.c.l.s4 1983009808
    %v2306 = vunpack.c.0.s8 %v2305
    %v2307 = vlaneseq
    %v2308 = vshrl.u32 %v2307, 7
    %v2309 = vsub.s32 %v2306, %v2308
    %v2310 = vrot.slane %v2302, %v2309
    %2311 = vrot.lane.b32.xlu0 %v2310, 64
    %v2312 = vpop.permute.xlu0 %2311
    %v2313 = vsel %vm433, %v2312, 0
    %2315 = vmatprep.subr.mxu0 0.0
    %2316 = vmatpush1.msra.mxu0 %v409
    %2317 = vmatprep.subr.mxu0 0.0
    %2318 = vmatpush1.msra.mxu0 %v410
    %2319 = vmatprep.subr.mxu0 0.0
    %2320 = vmatpush1.msra.mxu0 %v411
    %2321 = vmatprep.subr.mxu0 0.0
    %2322 = vmatpush1.msra.mxu0 %v412
    %2323 = vmatprep.subr.mxu0 0.0
    %2324 = vmatpush1.msra.mxu0 0.0
    %2325 = vmatprep.subr.mxu0 0.0
    %2326 = vmatpush1.msra.mxu0 0.0
    %2327 = vmatprep.subr.mxu0 0.0
    %2328 = vmatpush1.msra.mxu0 0.0
    %2329 = vmatprep.subr.mxu0 0.0
    %2330 = vmatpush1.msra.mxu0 0.0
    %2331 = vmatprep.subr.mxu0 0.0
    %2332 = vmatpush1.msra.mxu0 0.0
    %2333 = vmatprep.subr.mxu0 0.0
    %2334 = vmatpush1.msra.mxu0 0.0
    %2335 = vmatprep.subr.mxu0 0.0
    %2336 = vmatpush1.msra.mxu0 0.0
    %2337 = vmatprep.subr.mxu0 0.0
    %2338 = vmatpush1.msra.mxu0 0.0
    %2339 = vmatprep.subr.mxu0 0.0
    %2340 = vmatpush1.msra.mxu0 0.0
    %2341 = vmatprep.subr.mxu0 0.0
    %2342 = vmatpush1.msra.mxu0 0.0
    %2343 = vmatprep.subr.mxu0 0.0
    %2344 = vmatpush1.msra.mxu0 0.0
    %2345 = vmatprep.subr.mxu0 0.0
    %2346 = vmatpush1.msra.mxu0 0.0
    %2347 = vmatprep.subr.mxu0 0.0
    %2348 = vmatpush1.msra.mxu0 0.0
    %2349 = vmatprep.subr.mxu0 0.0
    %2350 = vmatpush1.msra.mxu0 0.0
    %2351 = vmatprep.subr.mxu0 0.0
    %2352 = vmatpush1.msra.mxu0 0.0
    %2353 = vmatprep.subr.mxu0 0.0
    %2354 = vmatpush1.msra.mxu0 0.0
    %2355 = vmatprep.subr.mxu0 0.0
    %2356 = vmatpush1.msra.mxu0 0.0
    %2357 = vmatprep.subr.mxu0 0.0
    %2358 = vmatpush1.msra.mxu0 0.0
    %2359 = vmatprep.subr.mxu0 0.0
    %2360 = vmatpush1.msra.mxu0 0.0
    %2361 = vmatprep.subr.mxu0 0.0
    %2362 = vmatpush1.msra.mxu0 0.0
    %2363 = vmatprep.subr.mxu0 0.0
    %2364 = vmatpush1.msra.mxu0 0.0
    %2365 = vmatprep.subr.mxu0 0.0
    %2366 = vmatpush1.msra.mxu0 0.0
    %2367 = vmatprep.subr.mxu0 0.0
    %2368 = vmatpush1.msra.mxu0 0.0
    %2369 = vmatprep.subr.mxu0 0.0
    %2370 = vmatpush1.msra.mxu0 0.0
    %2371 = vmatprep.subr.mxu0 0.0
    %2372 = vmatpush1.msra.mxu0 0.0
    %2373 = vmatprep.subr.mxu0 0.0
    %2374 = vmatpush1.msra.mxu0 0.0
    %2375 = vmatprep.subr.mxu0 0.0
    %2376 = vmatpush1.msra.mxu0 0.0
    %2377 = vmatprep.subr.mxu0 0.0
    %2378 = vmatpush1.msra.mxu0 0.0
    %2379 = vmatprep.mubr.f32.mxu0 0.0
    %2380 = vmatmul.mubr.f32.gmra.mrb[0].mxu0 %v2313
    %v2381 = vpop.f32.mrb[0].mxu0
    %v2382 = vadd.f32 %v2205, %v2381
    %v2383 = vpop.f32.mrb[0].mxu0
    %2384 = vdwg.mxu0
    %v2385 = vadd.f32 %v2382, %v422
    %v2386 = vxor.u32 %v2385, 2147483648
    %v2387 = vmul.f32 %v2386, 1.442695
    %v2388 = vpow.pop %v2387
    %v2389 = vadd.f32 %v2388, 1.0
    %v2390 = vrcp.pop %v2389
    %v2391 = vmul.f32 1.0, %v2390
    %v2392 = vtanh.pop %v2385
    %v2393 = vmul.f32 %v2391, %v2126
    %2395 = vrot.lane.b32.xlu0 %v2392, 32
    %v2396 = vpop.permute.xlu0 %2395
    %v2398 = vmul.f32 %v2391, %v2396
    %2400 = vrot.lane.b32.xlu0 %v2398, 32
    %v2401 = vpop.permute.xlu0 %2400
    %v2403 = vadd.f32 %v2393, %v2401
    %v2404 = vtanh.pop %v2403
    %2406 = vrot.lane.b32.xlu0 %v2404, 32
    %v2407 = vpop.permute.xlu0 %2406
    %v2409 = vmul.f32 %v2391, %v2407
    %2411 = vrot.lane.b32.xlu0 %v2409, 64
    %v2412 = vpop.permute.xlu0 %2411
    %v2413 = vsel %vm433, %v2412, 0
    %2415 = vmatprep.subr.mxu0 0.0
    %2416 = vmatpush1.msra.mxu0 %v413
    %2417 = vmatprep.subr.mxu0 0.0
    %2418 = vmatpush1.msra.mxu0 %v414
    %2419 = vmatprep.subr.mxu0 0.0
    %2420 = vmatpush1.msra.mxu0 %v415
    %2421 = vmatprep.subr.mxu0 0.0
    %2422 = vmatpush1.msra.mxu0 %v416
    %2423 = vmatprep.subr.mxu0 0.0
    %2424 = vmatpush1.msra.mxu0 0.0
    %2425 = vmatprep.subr.mxu0 0.0
    %2426 = vmatpush1.msra.mxu0 0.0
    %2427 = vmatprep.subr.mxu0 0.0
    %2428 = vmatpush1.msra.mxu0 0.0
    %2429 = vmatprep.subr.mxu0 0.0
    %2430 = vmatpush1.msra.mxu0 0.0
    %2431 = vmatprep.subr.mxu0 0.0
    %2432 = vmatpush1.msra.mxu0 0.0
    %2433 = vmatprep.subr.mxu0 0.0
    %2434 = vmatpush1.msra.mxu0 0.0
    %2435 = vmatprep.subr.mxu0 0.0
    %2436 = vmatpush1.msra.mxu0 0.0
    %2437 = vmatprep.subr.mxu0 0.0
    %2438 = vmatpush1.msra.mxu0 0.0
    %2439 = vmatprep.subr.mxu0 0.0
    %2440 = vmatpush1.msra.mxu0 0.0
    %2441 = vmatprep.subr.mxu0 0.0
    %2442 = vmatpush1.msra.mxu0 0.0
    %2443 = vmatprep.subr.mxu0 0.0
    %2444 = vmatpush1.msra.mxu0 0.0
    %2445 = vmatprep.subr.mxu0 0.0
    %2446 = vmatpush1.msra.mxu0 0.0
    %2447 = vmatprep.subr.mxu0 0.0
    %2448 = vmatpush1.msra.mxu0 0.0
    %2449 = vmatprep.subr.mxu0 0.0
    %2450 = vmatpush1.msra.mxu0 0.0
    %2451 = vmatprep.subr.mxu0 0.0
    %2452 = vmatpush1.msra.mxu0 0.0
    %2453 = vmatprep.subr.mxu0 0.0
    %2454 = vmatpush1.msra.mxu0 0.0
    %2455 = vmatprep.subr.mxu0 0.0
    %2456 = vmatpush1.msra.mxu0 0.0
    %2457 = vmatprep.subr.mxu0 0.0
    %2458 = vmatpush1.msra.mxu0 0.0
    %2459 = vmatprep.subr.mxu0 0.0
    %2460 = vmatpush1.msra.mxu0 0.0
    %2461 = vmatprep.subr.mxu0 0.0
    %2462 = vmatpush1.msra.mxu0 0.0
    %2463 = vmatprep.subr.mxu0 0.0
    %2464 = vmatpush1.msra.mxu0 0.0
    %2465 = vmatprep.subr.mxu0 0.0
    %2466 = vmatpush1.msra.mxu0 0.0
    %2467 = vmatprep.subr.mxu0 0.0
    %2468 = vmatpush1.msra.mxu0 0.0
    %2469 = vmatprep.subr.mxu0 0.0
    %2470 = vmatpush1.msra.mxu0 0.0
    %2471 = vmatprep.subr.mxu0 0.0
    %2472 = vmatpush1.msra.mxu0 0.0
    %2473 = vmatprep.subr.mxu0 0.0
    %2474 = vmatpush1.msra.mxu0 0.0
    %2475 = vmatprep.subr.mxu0 0.0
    %2476 = vmatpush1.msra.mxu0 0.0
    %2477 = vmatprep.subr.mxu0 0.0
    %2478 = vmatpush1.msra.mxu0 0.0
    %2479 = vmatprep.mubr.f32.mxu0 0.0
    %2480 = vmatmul.mubr.f32.gmra.mrb[0].mxu0 %v2413
    %v2481 = vpop.f32.mrb[0].mxu0
    %v2482 = vadd.f32 0.0, %v2481
    %v2483 = vpop.f32.mrb[0].mxu0
    %2484 = vdwg.mxu0
    %2485 = vmatprep.subr.mxu0 0.0
    %2486 = vmatpush1.msra.mxu0 %v405
    %2487 = vmatprep.subr.mxu0 0.0
    %2488 = vmatpush1.msra.mxu0 %v406
    %2489 = vmatprep.subr.mxu0 0.0
    %2490 = vmatpush1.msra.mxu0 %v407
    %2491 = vmatprep.subr.mxu0 0.0
    %2492 = vmatpush1.msra.mxu0 %v408
    %2493 = vmatprep.subr.mxu0 0.0
    %2494 = vmatpush1.msra.mxu0 0.0
    %2495 = vmatprep.subr.mxu0 0.0
    %2496 = vmatpush1.msra.mxu0 0.0
    %2497 = vmatprep.subr.mxu0 0.0
    %2498 = vmatpush1.msra.mxu0 0.0
    %2499 = vmatprep.subr.mxu0 0.0
    %2500 = vmatpush1.msra.mxu0 0.0
    %2501 = vmatprep.subr.mxu0 0.0
    %2502 = vmatpush1.msra.mxu0 0.0
    %2503 = vmatprep.subr.mxu0 0.0
    %2504 = vmatpush1.msra.mxu0 0.0
    %2505 = vmatprep.subr.mxu0 0.0
    %2506 = vmatpush1.msra.mxu0 0.0
    %2507 = vmatprep.subr.mxu0 0.0
    %2508 = vmatpush1.msra.mxu0 0.0
    %2509 = vmatprep.subr.mxu0 0.0
    %2510 = vmatpush1.msra.mxu0 0.0
    %2511 = vmatprep.subr.mxu0 0.0
    %2512 = vmatpush1.msra.mxu0 0.0
    %2513 = vmatprep.subr.mxu0 0.0
    %2514 = vmatpush1.msra.mxu0 0.0
    %2515 = vmatprep.subr.mxu0 0.0
    %2516 = vmatpush1.msra.mxu0 0.0
    %2517 = vmatprep.subr.mxu0 0.0
    %2518 = vmatpush1.msra.mxu0 0.0
    %2519 = vmatprep.subr.mxu0 0.0
    %2520 = vmatpush1.msra.mxu0 0.0
    %2521 = vmatprep.subr.mxu0 0.0
    %2522 = vmatpush1.msra.mxu0 0.0
    %2523 = vmatprep.subr.mxu0 0.0
    %2524 = vmatpush1.msra.mxu0 0.0
    %2525 = vmatprep.subr.mxu0 0.0
    %2526 = vmatpush1.msra.mxu0 0.0
    %2527 = vmatprep.subr.mxu0 0.0
    %2528 = vmatpush1.msra.mxu0 0.0
    %2529 = vmatprep.subr.mxu0 0.0
    %2530 = vmatpush1.msra.mxu0 0.0
    %2531 = vmatprep.subr.mxu0 0.0
    %2532 = vmatpush1.msra.mxu0 0.0
    %2533 = vmatprep.subr.mxu0 0.0
    %2534 = vmatpush1.msra.mxu0 0.0
    %2535 = vmatprep.subr.mxu0 0.0
    %2536 = vmatpush1.msra.mxu0 0.0
    %2537 = vmatprep.subr.mxu0 0.0
    %2538 = vmatpush1.msra.mxu0 0.0
    %2539 = vmatprep.subr.mxu0 0.0
    %2540 = vmatpush1.msra.mxu0 0.0
    %2541 = vmatprep.subr.mxu0 0.0
    %2542 = vmatpush1.msra.mxu0 0.0
    %2543 = vmatprep.subr.mxu0 0.0
    %2544 = vmatpush1.msra.mxu0 0.0
    %2545 = vmatprep.subr.mxu0 0.0
    %2546 = vmatpush1.msra.mxu0 0.0
    %2547 = vmatprep.subr.mxu0 0.0
    %2548 = vmatpush1.msra.mxu0 0.0
    %2549 = vmatprep.mubr.f32.mxu0 0.0
    %2550 = vmatmul.mubr.f32.gmra.mrb[0].mxu0 %v2313
    %v2551 = vpop.f32.mrb[0].mxu0
    %v2552 = vadd.f32 0.0, %v2551
    %v2553 = vpop.f32.mrb[0].mxu0
    %2554 = vdwg.mxu0
    %v2555 = vadd.f32 %v396, %v2552
    %v2556 = vxor.u32 %v2555, 2147483648
    %v2557 = vmul.f32 %v2556, 1.442695
    %v2558 = vpow.pop %v2557
    %v2559 = vadd.f32 %v2558, 1.0
    %v2560 = vrcp.pop %v2559
    %v2561 = vmul.f32 1.0, %v2560
    %v2562 = vtanh.pop %v2555
    %v2563 = vmul.f32 %v2561, %v2296
    %2565 = vrot.lane.b32.xlu0 %v2562, 32
    %v2566 = vpop.permute.xlu0 %2565
    %v2568 = vmul.f32 %v2561, %v2566
    %2570 = vrot.lane.b32.xlu0 %v2568, 32
    %v2571 = vpop.permute.xlu0 %2570
    %v2573 = vadd.f32 %v2563, %v2571
    %v2574 = vtanh.pop %v2573
    %2576 = vrot.lane.b32.xlu0 %v2574, 32
    %v2577 = vpop.permute.xlu0 %2576
    %v2579 = vmul.f32 %v2561, %v2577
    %v2582 = vunpack.c.l.s4 1983009808
    %v2583 = vunpack.c.0.s8 %v2582
    %v2584 = vlaneseq
    %v2585 = vshrl.u32 %v2584, 7
    %v2586 = vsub.s32 %v2583, %v2585
    %v2587 = vrot.slane %v2579, %v2586
    %2588 = vrot.lane.b32.xlu0 %v2587, 64
    %v2589 = vpop.permute.xlu0 %2588
    %v2590 = vsel %vm433, %v2589, 0
    %2592 = vmatprep.subr.mxu0 0.0
    %2593 = vmatpush1.msra.mxu0 %v409
    %2594 = vmatprep.subr.mxu0 0.0
    %2595 = vmatpush1.msra.mxu0 %v410
    %2596 = vmatprep.subr.mxu0 0.0
    %2597 = vmatpush1.msra.mxu0 %v411
    %2598 = vmatprep.subr.mxu0 0.0
    %2599 = vmatpush1.msra.mxu0 %v412
    %2600 = vmatprep.subr.mxu0 0.0
    %2601 = vmatpush1.msra.mxu0 0.0
    %2602 = vmatprep.subr.mxu0 0.0
    %2603 = vmatpush1.msra.mxu0 0.0
    %2604 = vmatprep.subr.mxu0 0.0
    %2605 = vmatpush1.msra.mxu0 0.0
    %2606 = vmatprep.subr.mxu0 0.0
    %2607 = vmatpush1.msra.mxu0 0.0
    %2608 = vmatprep.subr.mxu0 0.0
    %2609 = vmatpush1.msra.mxu0 0.0
    %2610 = vmatprep.subr.mxu0 0.0
    %2611 = vmatpush1.msra.mxu0 0.0
    %2612 = vmatprep.subr.mxu0 0.0
    %2613 = vmatpush1.msra.mxu0 0.0
    %2614 = vmatprep.subr.mxu0 0.0
    %2615 = vmatpush1.msra.mxu0 0.0
    %2616 = vmatprep.subr.mxu0 0.0
    %2617 = vmatpush1.msra.mxu0 0.0
    %2618 = vmatprep.subr.mxu0 0.0
    %2619 = vmatpush1.msra.mxu0 0.0
    %2620 = vmatprep.subr.mxu0 0.0
    %2621 = vmatpush1.msra.mxu0 0.0
    %2622 = vmatprep.subr.mxu0 0.0
    %2623 = vmatpush1.msra.mxu0 0.0
    %2624 = vmatprep.subr.mxu0 0.0
    %2625 = vmatpush1.msra.mxu0 0.0
    %2626 = vmatprep.subr.mxu0 0.0
    %2627 = vmatpush1.msra.mxu0 0.0
    %2628 = vmatprep.subr.mxu0 0.0
    %2629 = vmatpush1.msra.mxu0 0.0
    %2630 = vmatprep.subr.mxu0 0.0
    %2631 = vmatpush1.msra.mxu0 0.0
    %2632 = vmatprep.subr.mxu0 0.0
    %2633 = vmatpush1.msra.mxu0 0.0
    %2634 = vmatprep.subr.mxu0 0.0
    %2635 = vmatpush1.msra.mxu0 0.0
    %2636 = vmatprep.subr.mxu0 0.0
    %2637 = vmatpush1.msra.mxu0 0.0
    %2638 = vmatprep.subr.mxu0 0.0
    %2639 = vmatpush1.msra.mxu0 0.0
    %2640 = vmatprep.subr.mxu0 0.0
    %2641 = vmatpush1.msra.mxu0 0.0
    %2642 = vmatprep.subr.mxu0 0.0
    %2643 = vmatpush1.msra.mxu0 0.0
    %2644 = vmatprep.subr.mxu0 0.0
    %2645 = vmatpush1.msra.mxu0 0.0
    %2646 = vmatprep.subr.mxu0 0.0
    %2647 = vmatpush1.msra.mxu0 0.0
    %2648 = vmatprep.subr.mxu0 0.0
    %2649 = vmatpush1.msra.mxu0 0.0
    %2650 = vmatprep.subr.mxu0 0.0
    %2651 = vmatpush1.msra.mxu0 0.0
    %2652 = vmatprep.subr.mxu0 0.0
    %2653 = vmatpush1.msra.mxu0 0.0
    %2654 = vmatprep.subr.mxu0 0.0
    %2655 = vmatpush1.msra.mxu0 0.0
    %2656 = vmatprep.mubr.f32.mxu0 0.0
    %2657 = vmatmul.mubr.f32.gmra.mrb[0].mxu0 %v2590
    %v2658 = vpop.f32.mrb[0].mxu0
    %v2659 = vadd.f32 %v2482, %v2658
    %v2660 = vpop.f32.mrb[0].mxu0
    %2661 = vdwg.mxu0
    %v2662 = vadd.f32 %v2659, %v422
    %v2663 = vxor.u32 %v2662, 2147483648
    %v2664 = vmul.f32 %v2663, 1.442695
    %v2665 = vpow.pop %v2664
    %v2666 = vadd.f32 %v2665, 1.0
    %v2667 = vrcp.pop %v2666
    %v2668 = vmul.f32 1.0, %v2667
    %v2669 = vtanh.pop %v2662
    %v2670 = vmul.f32 %v2668, %v2403
    %2672 = vrot.lane.b32.xlu0 %v2669, 32
    %v2673 = vpop.permute.xlu0 %2672
    %v2675 = vmul.f32 %v2668, %v2673
    %2677 = vrot.lane.b32.xlu0 %v2675, 32
    %v2678 = vpop.permute.xlu0 %2677
    %v2680 = vadd.f32 %v2670, %v2678
    %v2681 = vtanh.pop %v2680
    %2683 = vrot.lane.b32.xlu0 %v2681, 32
    %v2684 = vpop.permute.xlu0 %2683
    %v2686 = vmul.f32 %v2668, %v2684
    %v2688 = vunpack.c.l.s4 1966171168
    %v2689 = vunpack.c.0.s8 %v2688
    %v2690 = vlaneseq
    %v2691 = vshrl.u32 %v2690, 7
    %v2692 = vsub.s32 %v2689, %v2691
    %v2693 = vrot.slane %v2579, %v2692
    %v2694 = vcombine.high %v2693, %v2693
    %v2699 = vunpack.c.l.s4 1966171168
    %v2700 = vunpack.c.0.s8 %v2699
    %v2701 = vlaneseq
    %v2702 = vshrl.u32 %v2701, 7
    %v2703 = vsub.s32 %v2700, %v2702
    %v2704 = vrot.slane %v2686, %v2703
    %v2705 = vcombine.high %v2704, %v2704
    %v2707 = vunpack.c.l.s4 1966171168
    %v2708 = vunpack.c.0.s8 %v2707
    %v2709 = vlaneseq
    %v2710 = vshrl.u32 %v2709, 7
    %v2711 = vsub.s32 %v2708, %v2710
    %v2712 = vrot.slane %v2704, %v2711
    %v2714 = vunpack.c.l.s4 1966171168
    %v2715 = vunpack.c.0.s8 %v2714
    %v2716 = vlaneseq
    %v2717 = vshrl.u32 %v2716, 7
    %v2718 = vsub.s32 %v2715, %v2717
    %v2719 = vrot.slane %v2705, %v2718
    %v2720 = vlaneseq
    %v2721 = vshrl.u32 %v2720, 7
    %v2722 = vsub.s32 0, %v2721
    %v2723 = vrot.slane %v2712, %v2722
    %v2724 = vlaneseq
    %v2725 = vshrl.u32 %v2724, 7
    %v2726 = vsub.s32 0, %v2725
    %v2727 = vrot.slane %v2719, %v2726
    %vm2730 = vcmask 1040384
    %v2731 = vsel %vm2730, %v2693, %v2723
    %v2732 = vsel %vm2730, %v2694, %v2727
    %2735 = vrot.lane.b32.xlu0 %v2731, 64
    %v2736 = vpop.permute.xlu0 %2735
    %2737 = vrot.lane.b32.xlu0 %v2732, 64
    %v2738 = vpop.permute.xlu0 %2737
    %vm2741 = vcmask 254976
    %2742 = vst.msk [vmem:[#allocation17] sm:$0x3] %vm2741, %v2736
    %2743 = vst.msk [vmem:[#allocation17 + $0x2] sm:$0x3] %vm2741, %v2738
    %v2746 = vunpack.c.l.s4 1966171168
    %v2747 = vunpack.c.0.s8 %v2746
    %v2748 = vlaneseq
    %v2749 = vshrl.u32 %v2748, 7
    %v2750 = vsub.s32 %v2747, %v2749
    %v2751 = vrot.slane %v2573, %v2750
    %v2752 = vcombine.high %v2751, %v2751
    %v2757 = vunpack.c.l.s4 1966171168
    %v2758 = vunpack.c.0.s8 %v2757
    %v2759 = vlaneseq
    %v2760 = vshrl.u32 %v2759, 7
    %v2761 = vsub.s32 %v2758, %v2760
    %v2762 = vrot.slane %v2680, %v2761
    %v2763 = vcombine.high %v2762, %v2762
    %v2765 = vunpack.c.l.s4 1966171168
    %v2766 = vunpack.c.0.s8 %v2765
    %v2767 = vlaneseq
    %v2768 = vshrl.u32 %v2767, 7
    %v2769 = vsub.s32 %v2766, %v2768
    %v2770 = vrot.slane %v2762, %v2769
    %v2772 = vunpack.c.l.s4 1966171168
    %v2773 = vunpack.c.0.s8 %v2772
    %v2774 = vlaneseq
    %v2775 = vshrl.u32 %v2774, 7
    %v2776 = vsub.s32 %v2773, %v2775
    %v2777 = vrot.slane %v2763, %v2776
    %v2778 = vlaneseq
    %v2779 = vshrl.u32 %v2778, 7
    %v2780 = vsub.s32 0, %v2779
    %v2781 = vrot.slane %v2770, %v2780
    %v2782 = vlaneseq
    %v2783 = vshrl.u32 %v2782, 7
    %v2784 = vsub.s32 0, %v2783
    %v2785 = vrot.slane %v2777, %v2784
    %v2788 = vsel %vm2730, %v2751, %v2781
    %v2789 = vsel %vm2730, %v2752, %v2785
    %2792 = vrot.lane.b32.xlu0 %v2788, 96
    %v2793 = vpop.permute.xlu0 %2792
    %2794 = vrot.lane.b32.xlu0 %v2789, 96
    %v2795 = vpop.permute.xlu0 %2794
    %2798 = vst.msk [vmem:[#allocation19] sm:$0x3] %vm2741, %v2793
    %2799 = vst.msk [vmem:[#allocation19 + $0x2] sm:$0x3] %vm2741, %v2795
    %v2800 = vld [vmem:[%s9] sm:$0xff]
    %v2801 = vld [vmem:[%s9 + $0x8] sm:$0xff]
    %v2802 = vld [vmem:[%s9 + $0x10] sm:$0xff]
    %v2803 = vld [vmem:[%s9 + $0x18] sm:$0xff]
    %v2804 = vld [vmem:[%s10] sm:$0x1]
    %v2806 = vlaneseq
    %v2807 = vshrl.u32 %v2806, 7
    %v2808 = vsub.s32 0, %v2807
    %v2809 = vrot.slane %v2804, %v2808
    %v2811 = vcombine.low %v747, %v1024
    %v2812 = vcombine.low %v1301, %v1578
    %v2814 = vunpack.c.l.s4 1983009808
    %v2815 = vunpack.c.0.s8 %v2814
    %v2816 = vlaneseq
    %v2817 = vshrl.u32 %v2816, 7
    %v2818 = vsub.s32 %v2815, %v2817
    %v2819 = vrot.slane %v2811, %v2818
    %v2821 = vunpack.c.l.s4 1983009808
    %v2822 = vunpack.c.0.s8 %v2821
    %v2823 = vlaneseq
    %v2824 = vshrl.u32 %v2823, 7
    %v2825 = vsub.s32 %v2822, %v2824
    %v2826 = vrot.slane %v2812, %v2825
    %v2827 = vcombine.low %v2819, %v2826
    %v2828 = vcombine.low %v1855, %v2132
    %v2829 = vcombine.low %v2409, %v2686
    %v2831 = vunpack.c.l.s4 1983009808
    %v2832 = vunpack.c.0.s8 %v2831
    %v2833 = vlaneseq
    %v2834 = vshrl.u32 %v2833, 7
    %v2835 = vsub.s32 %v2832, %v2834
    %v2836 = vrot.slane %v2828, %v2835
    %v2838 = vunpack.c.l.s4 1983009808
    %v2839 = vunpack.c.0.s8 %v2838
    %v2840 = vlaneseq
    %v2841 = vshrl.u32 %v2840, 7
    %v2842 = vsub.s32 %v2839, %v2841
    %v2843 = vrot.slane %v2829, %v2842
    %v2844 = vcombine.low %v2836, %v2843
    %2845 = vrot.lane.b32.xlu0 %v2827, 64
    %v2846 = vpop.permute.xlu0 %2845
    %2847 = vrot.lane.b32.xlu0 %v2844, 64
    %v2848 = vpop.permute.xlu0 %2847
    %v2849 = vsel %vm433, %v2846, 0
    %v2851 = vsel %vm433, %v2848, 0
    %2853 = vmatprep.subr.mxu0 0.0
    %2854 = vmatpush1.msra.mxu0 %v2800
    %2855 = vmatprep.subr.mxu0 0.0
    %2856 = vmatpush1.msra.mxu0 %v2801
    %2857 = vmatprep.subr.mxu0 0.0
    %2858 = vmatpush1.msra.mxu0 %v2802
    %2859 = vmatprep.subr.mxu0 0.0
    %2860 = vmatpush1.msra.mxu0 %v2803
    %2861 = vmatprep.subr.mxu0 0.0
    %2862 = vmatpush1.msra.mxu0 0.0
    %2863 = vmatprep.subr.mxu0 0.0
    %2864 = vmatpush1.msra.mxu0 0.0
    %2865 = vmatprep.subr.mxu0 0.0
    %2866 = vmatpush1.msra.mxu0 0.0
    %2867 = vmatprep.subr.mxu0 0.0
    %2868 = vmatpush1.msra.mxu0 0.0
    %2869 = vmatprep.subr.mxu0 0.0
    %2870 = vmatpush1.msra.mxu0 0.0
    %2871 = vmatprep.subr.mxu0 0.0
    %2872 = vmatpush1.msra.mxu0 0.0
    %2873 = vmatprep.subr.mxu0 0.0
    %2874 = vmatpush1.msra.mxu0 0.0
    %2875 = vmatprep.subr.mxu0 0.0
    %2876 = vmatpush1.msra.mxu0 0.0
    %2877 = vmatprep.subr.mxu0 0.0
    %2878 = vmatpush1.msra.mxu0 0.0
    %2879 = vmatprep.subr.mxu0 0.0
    %2880 = vmatpush1.msra.mxu0 0.0
    %2881 = vmatprep.subr.mxu0 0.0
    %2882 = vmatpush1.msra.mxu0 0.0
    %2883 = vmatprep.subr.mxu0 0.0
    %2884 = vmatpush1.msra.mxu0 0.0
    %2885 = vmatprep.subr.mxu0 0.0
    %2886 = vmatpush1.msra.mxu0 0.0
    %2887 = vmatprep.subr.mxu0 0.0
    %2888 = vmatpush1.msra.mxu0 0.0
    %2889 = vmatprep.subr.mxu0 0.0
    %2890 = vmatpush1.msra.mxu0 0.0
    %2891 = vmatprep.subr.mxu0 0.0
    %2892 = vmatpush1.msra.mxu0 0.0
    %2893 = vmatprep.subr.mxu0 0.0
    %2894 = vmatpush1.msra.mxu0 0.0
    %2895 = vmatprep.subr.mxu0 0.0
    %2896 = vmatpush1.msra.mxu0 0.0
    %2897 = vmatprep.subr.mxu0 0.0
    %2898 = vmatpush1.msra.mxu0 0.0
    %2899 = vmatprep.subr.mxu0 0.0
    %2900 = vmatpush1.msra.mxu0 0.0
    %2901 = vmatprep.subr.mxu0 0.0
    %2902 = vmatpush1.msra.mxu0 0.0
    %2903 = vmatprep.subr.mxu0 0.0
    %2904 = vmatpush1.msra.mxu0 0.0
    %2905 = vmatprep.subr.mxu0 0.0
    %2906 = vmatpush1.msra.mxu0 0.0
    %2907 = vmatprep.subr.mxu0 0.0
    %2908 = vmatpush1.msra.mxu0 0.0
    %2909 = vmatprep.subr.mxu0 0.0
    %2910 = vmatpush1.msra.mxu0 0.0
    %2911 = vmatprep.subr.mxu0 0.0
    %2912 = vmatpush1.msra.mxu0 0.0
    %2913 = vmatprep.subr.mxu0 0.0
    %2914 = vmatpush1.msra.mxu0 0.0
    %2915 = vmatprep.subr.mxu0 0.0
    %2916 = vmatpush1.msra.mxu0 0.0
    %2917 = vmatprep.mubr.f32.mxu0 0.0
    %2918 = vmatmul.mubr.f32.gmra.mrb[0].mxu0 %v2849
    %v2919 = vpop.f32.mrb[0].mxu0
    %v2920 = vadd.f32 %v2809, %v2919
    %v2921 = vpop.f32.mrb[0].mxu0
    %2922 = vmatprep.mubr.f32.mxu0 0.0
    %2923 = vmatmul.mubr.f32.gmra.mrb[0].mxu0 %v2851
    %v2924 = vpop.f32.mrb[0].mxu0
    %v2925 = vadd.f32 %v2809, %v2924
    %v2926 = vpop.f32.mrb[0].mxu0
    %2927 = vdwg.mxu0
    %vm2928 = vcmp.gt.f32.partialorder %v2920, 0.0
    %vm2929 = vcmp.gt.f32.partialorder %v2925, 0.0
    %v2930 = vmul.f32 %v2920, 0.1
    %v2931 = vmul.f32 %v2925, 0.1
    %v2932 = vsel %vm2928, %v2920, %v2930
    %v2933 = vsel %vm2929, %v2925, %v2931
    %v2934 = vld [vmem:[#allocation14] sm:$0xff]
    %v2935 = vld [vmem:[#allocation14 + $0x8] sm:$0xff]
    %v2936 = vld [vmem:[#allocation14 + $0x10] sm:$0xff]
    %v2937 = vld [vmem:[#allocation14 + $0x18] sm:$0xff]
    %v2938 = vld [vmem:[#allocation14 + $0x20] sm:$0xff]
    %v2939 = vld [vmem:[#allocation14 + $0x28] sm:$0xff]
    %v2940 = vld [vmem:[#allocation14 + $0x30] sm:$0xff]
    %v2941 = vld [vmem:[#allocation14 + $0x38] sm:$0xff]
    %v2942 = vld [vmem:[#allocation14 + $0x40] sm:$0xff]
    %v2943 = vld [vmem:[#allocation14 + $0x48] sm:$0xff]
    %v2944 = vld [vmem:[#allocation14 + $0x50] sm:$0xff]
    %v2945 = vld [vmem:[#allocation14 + $0x58] sm:$0xff]
    %v2946 = vld [vmem:[#allocation14 + $0x60] sm:$0xff]
    %v2947 = vld [vmem:[#allocation14 + $0x68] sm:$0xff]
    %v2948 = vld [vmem:[#allocation14 + $0x70] sm:$0xff]
    %v2949 = vld [vmem:[#allocation14 + $0x78] sm:$0xff]
    %v2950 = vld [vmem:[%s12] sm:$0x1]
    %v2952 = vlaneseq
    %v2953 = vshrl.u32 %v2952, 7
    %v2954 = vsub.s32 0, %v2953
    %v2955 = vrot.slane %v2950, %v2954
    %2957 = vmatprep.subr.mxu0 0.0
    %2958 = vmatpush1.msra.mxu0 %v2934
    %2959 = vmatprep.subr.mxu0 0.0
    %2960 = vmatpush1.msra.mxu0 %v2935
    %2961 = vmatprep.subr.mxu0 0.0
    %2962 = vmatpush1.msra.mxu0 %v2936
    %2963 = vmatprep.subr.mxu0 0.0
    %2964 = vmatpush1.msra.mxu0 %v2937
    %2965 = vmatprep.subr.mxu0 0.0
    %2966 = vmatpush1.msra.mxu0 %v2938
    %2967 = vmatprep.subr.mxu0 0.0
    %2968 = vmatpush1.msra.mxu0 %v2939
    %2969 = vmatprep.subr.mxu0 0.0
    %2970 = vmatpush1.msra.mxu0 %v2940
    %2971 = vmatprep.subr.mxu0 0.0
    %2972 = vmatpush1.msra.mxu0 %v2941
    %2973 = vmatprep.subr.mxu0 0.0
    %2974 = vmatpush1.msra.mxu0 %v2942
    %2975 = vmatprep.subr.mxu0 0.0
    %2976 = vmatpush1.msra.mxu0 %v2943
    %2977 = vmatprep.subr.mxu0 0.0
    %2978 = vmatpush1.msra.mxu0 %v2944
    %2979 = vmatprep.subr.mxu0 0.0
    %2980 = vmatpush1.msra.mxu0 %v2945
    %2981 = vmatprep.subr.mxu0 0.0
    %2982 = vmatpush1.msra.mxu0 %v2946
    %2983 = vmatprep.subr.mxu0 0.0
    %2984 = vmatpush1.msra.mxu0 %v2947
    %2985 = vmatprep.subr.mxu0 0.0
    %2986 = vmatpush1.msra.mxu0 %v2948
    %2987 = vmatprep.subr.mxu0 0.0
    %2988 = vmatpush1.msra.mxu0 %v2949
    %2989 = vmatprep.subr.mxu0 0.0
    %2990 = vmatpush1.msra.mxu0 0.0
    %2991 = vmatprep.subr.mxu0 0.0
    %2992 = vmatpush1.msra.mxu0 0.0
    %2993 = vmatprep.subr.mxu0 0.0
    %2994 = vmatpush1.msra.mxu0 0.0
    %2995 = vmatprep.subr.mxu0 0.0
    %2996 = vmatpush1.msra.mxu0 0.0
    %2997 = vmatprep.subr.mxu0 0.0
    %2998 = vmatpush1.msra.mxu0 0.0
    %2999 = vmatprep.subr.mxu0 0.0
    %3000 = vmatpush1.msra.mxu0 0.0
    %3001 = vmatprep.subr.mxu0 0.0
    %3002 = vmatpush1.msra.mxu0 0.0
    %3003 = vmatprep.subr.mxu0 0.0
    %3004 = vmatpush1.msra.mxu0 0.0
    %3005 = vmatprep.subr.mxu0 0.0
    %3006 = vmatpush1.msra.mxu0 0.0
    %3007 = vmatprep.subr.mxu0 0.0
    %3008 = vmatpush1.msra.mxu0 0.0
    %3009 = vmatprep.subr.mxu0 0.0
    %3010 = vmatpush1.msra.mxu0 0.0
    %3011 = vmatprep.subr.mxu0 0.0
    %3012 = vmatpush1.msra.mxu0 0.0
    %3013 = vmatprep.subr.mxu0 0.0
    %3014 = vmatpush1.msra.mxu0 0.0
    %3015 = vmatprep.subr.mxu0 0.0
    %3016 = vmatpush1.msra.mxu0 0.0
    %3017 = vmatprep.subr.mxu0 0.0
    %3018 = vmatpush1.msra.mxu0 0.0
    %3019 = vmatprep.subr.mxu0 0.0
    %3020 = vmatpush1.msra.mxu0 0.0
    %3021 = vmatprep.mubr.f32.mxu0 0.0
    %3022 = vmatmul.mubr.f32.gmra.mrb[0].mxu0 %v2932
    %v3023 = vpop.f32.mrb[0].mxu0
    %v3024 = vadd.f32 %v2955, %v3023
    %v3025 = vpop.f32.mrb[0].mxu0
    %3026 = vmatprep.mubr.f32.mxu0 0.0
    %3027 = vmatmul.mubr.f32.gmra.mrb[0].mxu0 %v2933
    %v3028 = vpop.f32.mrb[0].mxu0
    %v3029 = vadd.f32 %v2955, %v3028
    %v3030 = vpop.f32.mrb[0].mxu0
    %3031 = vdwg.mxu0
    %v3034 = vcombine.high %v3024, %v3024
    %v3036 = vunpack.c.l.s4 1983009808
    %v3037 = vunpack.c.0.s8 %v3036
    %v3038 = vlaneseq
    %v3039 = vshrl.u32 %v3038, 7
    %v3040 = vsub.s32 %v3037, %v3039
    %v3041 = vrot.slane %v3024, %v3040
    %v3043 = vunpack.c.l.s4 1983009808
    %v3044 = vunpack.c.0.s8 %v3043
    %v3045 = vlaneseq
    %v3046 = vshrl.u32 %v3045, 7
    %v3047 = vsub.s32 %v3044, %v3046
    %v3048 = vrot.slane %v3034, %v3047
    %v3049 = vcombine.high %v3041, %v3041
    %v3050 = vcombine.high %v3048, %v3048
    %v3051 = vcombine.high %v3029, %v3029
    %v3053 = vunpack.c.l.s4 1983009808
    %v3054 = vunpack.c.0.s8 %v3053
    %v3055 = vlaneseq
    %v3056 = vshrl.u32 %v3055, 7
    %v3057 = vsub.s32 %v3054, %v3056
    %v3058 = vrot.slane %v3029, %v3057
    %v3060 = vunpack.c.l.s4 1983009808
    %v3061 = vunpack.c.0.s8 %v3060
    %v3062 = vlaneseq
    %v3063 = vshrl.u32 %v3062, 7
    %v3064 = vsub.s32 %v3061, %v3063
    %v3065 = vrot.slane %v3051, %v3064
    %v3066 = vcombine.high %v3058, %v3058
    %v3067 = vcombine.high %v3065, %v3065
    %v3076 = vcombine.low %v3041, %v3049
    %v3078 = vunpack.c.l.s4 1934713408
    %v3079 = vunpack.c.0.s8 %v3078
    %v3080 = vlaneseq
    %v3081 = vshrl.u32 %v3080, 7
    %v3082 = vsub.s32 %v3079, %v3081
    %v3083 = vrot.slane %v3076, %v3082
    %v3084 = vcombine.high %v3083, 0.0
    %v3085 = vcombine.low %v3048, %v3050
    %v3087 = vunpack.c.l.s4 1934713408
    %v3088 = vunpack.c.0.s8 %v3087
    %v3089 = vlaneseq
    %v3090 = vshrl.u32 %v3089, 7
    %v3091 = vsub.s32 %v3088, %v3090
    %v3092 = vrot.slane %v3085, %v3091
    %v3093 = vcombine.high %v3092, 0.0
    %v3094 = vcombine.low %v3058, %v3066
    %v3096 = vunpack.c.l.s4 1934713408
    %v3097 = vunpack.c.0.s8 %v3096
    %v3098 = vlaneseq
    %v3099 = vshrl.u32 %v3098, 7
    %v3100 = vsub.s32 %v3097, %v3099
    %v3101 = vrot.slane %v3094, %v3100
    %v3102 = vcombine.high %v3101, 0.0
    %v3103 = vcombine.low %v3065, %v3067
    %v3105 = vunpack.c.l.s4 1934713408
    %v3106 = vunpack.c.0.s8 %v3105
    %v3107 = vlaneseq
    %v3108 = vshrl.u32 %v3107, 7
    %v3109 = vsub.s32 %v3106, %v3108
    %v3110 = vrot.slane %v3103, %v3109
    %v3111 = vcombine.high %v3110, 0.0
    %v3120 = vcombine.low %v3083, %v3092
    %v3121 = vcombine.low %v3101, %v3110
    %v3123 = vunpack.c.l.s4 1983009808
    %v3124 = vunpack.c.0.s8 %v3123
    %v3125 = vlaneseq
    %v3126 = vshrl.u32 %v3125, 7
    %v3127 = vsub.s32 %v3124, %v3126
    %v3128 = vrot.slane %v3120, %v3127
    %v3130 = vunpack.c.l.s4 1983009808
    %v3131 = vunpack.c.0.s8 %v3130
    %v3132 = vlaneseq
    %v3133 = vshrl.u32 %v3132, 7
    %v3134 = vsub.s32 %v3131, %v3133
    %v3135 = vrot.slane %v3121, %v3134
    %v3136 = vcombine.low %v3128, %v3135
    %v3137 = vcombine.low %v3084, %v3093
    %v3138 = vcombine.low %v3102, %v3111
    %v3140 = vunpack.c.l.s4 1983009808
    %v3141 = vunpack.c.0.s8 %v3140
    %v3142 = vlaneseq
    %v3143 = vshrl.u32 %v3142, 7
    %v3144 = vsub.s32 %v3141, %v3143
    %v3145 = vrot.slane %v3137, %v3144
    %v3147 = vunpack.c.l.s4 1983009808
    %v3148 = vunpack.c.0.s8 %v3147
    %v3149 = vlaneseq
    %v3150 = vshrl.u32 %v3149, 7
    %v3151 = vsub.s32 %v3148, %v3150
    %v3152 = vrot.slane %v3138, %v3151
    %v3153 = vcombine.low %v3145, %v3152
    %3156 = vst [vmem:[#allocation16] sm:$0xff] %v3136
    %3157 = vst [vmem:[#allocation16 + $0x8] sm:$0xff] %v3153
    // Predicated region
    $region86: #{tpu_custom_call.1} parent=1 // pred_check
      _
    $region87: #{tpu_custom_call.1} parent=1 // pred_check_branch
      %3159 = sbr.rel (0) target = $region89
    $region88: #{tpu_custom_call.1} parent=1 // pred_region
      %s3161 = ssub.s32 256, 256
      %3162 = vsyncadd [#allocation4], %s3161
      %s3163 = sshll.u32 [#allocation16], 4
      %s3164 = int_to_ptr.vmem [resolvable:$true] %s3163
      %3169 = dma.vmem_to_hbm [thread:$0]  %s3164, 256, %s13, [#allocation4], 128, 128, 8
    $region89: #{tpu_custom_call.1} parent=1 // pred_fallthru
      _
    // Predicated region
    $region90: #{tpu_custom_call.1} parent=1 // pred_check
      _
    $region91: #{tpu_custom_call.1} parent=1 // pred_check_branch
      %3171 = sbr.rel (0) target = $region93
    $region92: #{tpu_custom_call.1} parent=1 // pred_region
      %s3173 = ssub.s32 64, 64
      %3174 = vsyncadd [#allocation18], %s3173
      %s3175 = sshll.u32 [#allocation17], 4
      %s3176 = int_to_ptr.vmem [resolvable:$true] %s3175
      %3181 = dma.vmem_to_hbm [thread:$0]  %s3176, 64, %s14, [#allocation18], 32, 32, 2
    $region93: #{tpu_custom_call.1} parent=1 // pred_fallthru
      _
    // Predicated region
    $region94: #{tpu_custom_call.1} parent=1 // pred_check
      _
    $region95: #{tpu_custom_call.1} parent=1 // pred_check_branch
      %3183 = sbr.rel (0) target = $region97
    $region96: #{tpu_custom_call.1} parent=1 // pred_region
      %s3185 = ssub.s32 64, 64
      %3186 = vsyncadd [#allocation18], %s3185
      %s3187 = sshll.u32 [#allocation19], 4
      %s3188 = int_to_ptr.vmem [resolvable:$true] %s3187
      %3193 = dma.vmem_to_hbm [thread:$0]  %s3188, 64, %s15, [#allocation18], 32, 32, 2
    $region97: #{tpu_custom_call.1} parent=1 // pred_fallthru
      _
    // Predicated region
    $region98: #{tpu_custom_call.1} parent=1 // pred_check
      _
    $region99: #{tpu_custom_call.1} parent=1 // pred_check_branch
      %3195 = sbr.rel (0) target = $region101
    $region100: #{tpu_custom_call.1} parent=1 // pred_region
      %3196 = dma.done [#allocation4], 256
    $region101: #{tpu_custom_call.1} parent=1 // pred_fallthru
      _
    // Predicated region
    $region102: #{tpu_custom_call.1} parent=1 // pred_check
      _
    $region103: #{tpu_custom_call.1} parent=1 // pred_check_branch
      %3198 = sbr.rel (0) target = $region105
    $region104: #{tpu_custom_call.1} parent=1 // pred_region
      %3199 = dma.done [#allocation18], 64
    $region105: #{tpu_custom_call.1} parent=1 // pred_fallthru
      _
    // Predicated region
    $region106: #{tpu_custom_call.1} parent=1 // pred_check
      _
    $region107: #{tpu_custom_call.1} parent=1 // pred_check_branch
      %3201 = sbr.rel (0) target = $region109
    $region108: #{tpu_custom_call.1} parent=1 // pred_region
      %3202 = dma.done [#allocation18], 64
    $region109: #{tpu_custom_call.1} parent=1 // pred_fallthru
      _
    %3203 = vsyncpa [#allocation3], 1
    %3204 = vsyncpa [#allocation6], 1
    %3205 = vsyncpa [#allocation9], 1
    %3206 = vsyncpa [#allocation12], 1
    %3207 = vsyncpa [#allocation15], 1
    %3208 = vsyncpa [#allocation4], 1
    %3209 = vsyncpa [#allocation18], 1

</llo_original>
